<compile_context>
chip_gen: v6e
topology: v6e:2x2x1
jax: 0.10.0
libtpu: 0.0.40
codegen_flags: <defaults>
</compile_context>

<pallas_src>
import functools

import jax
import jax.numpy as jnp
from jax import lax
from jax.experimental import pallas as pl
from jax.experimental.pallas import tpu as pltpu

DIM = 512
HEADS = 8
DIM_HEAD = DIM // HEADS          # 64
NUM_LANDMARKS = DIM // 2         # 256
PINV_ITERS = 6
CONV_K = 33                      # residual_conv_kernel
HALF = CONV_K // 2               # 16
LN_EPS = 1e-5

_VMEM_LIMIT = 32 * 1024 * 1024


def _cparams(dimension_semantics):
    return pltpu.CompilerParams(
        dimension_semantics=dimension_semantics,
        vmem_limit_bytes=_VMEM_LIMIT,
    )


def _round_up(x, mult):
    return ((x + mult - 1) // mult) * mult


def _pick_tile(n, candidates):
    for c in candidates:
        if n % c == 0:
            return c
    return n


# --------------------------------------------------------------------------
# Fused [LayerNorm] + Linear [+bias] [+residual] [+ReLU] kernel, row tiled.
# MXU operands are cast to bf16 (f32 accumulation).
# --------------------------------------------------------------------------
def _make_linear_kernel(has_ln, has_bias, has_res, relu):
    def kernel(*refs):
        it = iter(refs)
        x_ref = next(it)
        if has_ln:
            g_ref = next(it)
            bln_ref = next(it)
        w_ref = next(it)
        b_ref = next(it) if has_bias else None
        r_ref = next(it) if has_res else None
        o_ref = next(it)

        x = x_ref[...]
        if has_ln:
            mu = jnp.mean(x, axis=-1, keepdims=True)
            xc = x - mu
            var = jnp.mean(xc * xc, axis=-1, keepdims=True)
            x = xc * lax.rsqrt(var + LN_EPS) * g_ref[...] + bln_ref[...]
        acc = jnp.dot(x.astype(jnp.bfloat16), w_ref[...].astype(jnp.bfloat16),
                      preferred_element_type=jnp.float32)
        if has_bias:
            acc = acc + b_ref[...]
        if has_res:
            acc = acc + r_ref[...]
        if relu:
            acc = jnp.maximum(acc, 0.0)
        o_ref[...] = acc

    return kernel


def fused_linear(x, w, b=None, *, ln_g=None, ln_b=None, residual=None,
                 relu=False, bm=512):
    """y = [LayerNorm](x) @ w [+ b] [+ residual] [ReLU], 512-row tiles."""
    M, K = x.shape
    N = w.shape[1]
    has_ln = ln_g is not None
    has_bias = b is not None
    has_res = residual is not None

    Mp = _round_up(max(M, 1), bm)
    if Mp != M:
        x = jnp.pad(x, ((0, Mp - M), (0, 0)))
        if has_res:
            residual = jnp.pad(residual, ((0, Mp - M), (0, 0)))

    in_specs = [pl.BlockSpec((bm, K), lambda i: (i, 0))]
    args = [x]
    if has_ln:
        in_specs += [pl.BlockSpec((1, K), lambda i: (0, 0)),
                     pl.BlockSpec((1, K), lambda i: (0, 0))]
        args += [ln_g.reshape(1, K), ln_b.reshape(1, K)]
    in_specs.append(pl.BlockSpec((K, N), lambda i: (0, 0)))
    args.append(w)
    if has_bias:
        in_specs.append(pl.BlockSpec((1, N), lambda i: (0, 0)))
        args.append(b.reshape(1, N))
    if has_res:
        in_specs.append(pl.BlockSpec((bm, N), lambda i: (i, 0)))
        args.append(residual)

    out = pl.pallas_call(
        _make_linear_kernel(has_ln, has_bias, has_res, relu),
        out_shape=jax.ShapeDtypeStruct((Mp, N), jnp.float32),
        grid_spec=pltpu.PrefetchScalarGridSpec(
            num_scalar_prefetch=0,
            grid=(Mp // bm,),
            in_specs=in_specs,
            out_specs=pl.BlockSpec((bm, N), lambda i: (i, 0)),
        ),
        compiler_params=_cparams(("parallel",)),
    )(*args)
    return out[:M] if Mp != M else out


# --------------------------------------------------------------------------
# Nystrom pass 1 (per batch*head, Np tiled):
#   a2  = softmax(ql @ kl^T)                     (landmark x landmark)
#   a3v = softmax(ql @ k^T) @ v                  (online softmax over Np tiles)
# --------------------------------------------------------------------------
def _attn_stats_kernel(ql_ref, kl_ref, k_ref, v_ref, a2_ref, a3v_ref,
                       m_sc, l_sc, acc_sc):
    npi = pl.program_id(1)
    ql = ql_ref[0].astype(jnp.bfloat16)
    dn = (((1,), (1,)), ((), ()))          # A @ B^T

    @pl.when(npi == 0)
    def _():
        m_sc[...] = jnp.full(m_sc.shape, -jnp.inf, jnp.float32)
        l_sc[...] = jnp.zeros(l_sc.shape, jnp.float32)
        acc_sc[...] = jnp.zeros(acc_sc.shape, jnp.float32)
        sim2 = lax.dot_general(ql, kl_ref[0].astype(jnp.bfloat16), dn,
                               preferred_element_type=jnp.float32)
        sim2 = sim2 - jnp.max(sim2, axis=-1, keepdims=True)
        e2 = jnp.exp(sim2)
        a2_ref[0] = e2 * pl.reciprocal(jnp.sum(e2, axis=-1, keepdims=True),
                                       approx=True)

    sim3 = lax.dot_general(ql, k_ref[0].astype(jnp.bfloat16), dn,
                           preferred_element_type=jnp.float32)     # (m, tile)
    m_new = jnp.maximum(m_sc[...], jnp.max(sim3, axis=-1, keepdims=True))
    alpha = jnp.exp(m_sc[...] - m_new)
    p = jnp.exp(sim3 - m_new)
    l_sc[...] = alpha * l_sc[...] + jnp.sum(p, axis=-1, keepdims=True)
    acc_sc[...] = alpha * acc_sc[...] + jnp.dot(
        p.astype(jnp.bfloat16), v_ref[0].astype(jnp.bfloat16),
        preferred_element_type=jnp.float32)
    m_sc[...] = m_new

    @pl.when(npi == pl.num_programs(1) - 1)
    def _():
        a3v_ref[0] = acc_sc[...] * pl.reciprocal(l_sc[...], approx=True)


def attn_stats(ql, kl, k, v, tile_np):
    BH, m, dh = ql.shape
    Np = k.shape[1]
    return pl.pallas_call(
        _attn_stats_kernel,
        out_shape=(
            jax.ShapeDtypeStruct((BH, m, m), jnp.float32),
            jax.ShapeDtypeStruct((BH, m, dh), jnp.float32),
        ),
        grid_spec=pltpu.PrefetchScalarGridSpec(
            num_scalar_prefetch=0,
            grid=(BH, Np // tile_np),
            in_specs=[
                pl.BlockSpec((1, m, dh), lambda i, j: (i, 0, 0)),       # ql
                pl.BlockSpec((1, m, dh), lambda i, j: (i, 0, 0)),       # kl
                pl.BlockSpec((1, tile_np, dh), lambda i, j: (i, j, 0)),  # k
                pl.BlockSpec((1, tile_np, dh), lambda i, j: (i, j, 0)),  # v
            ],
            out_specs=[
                pl.BlockSpec((1, m, m), lambda i, j: (i, 0, 0)),
                pl.BlockSpec((1, m, dh), lambda i, j: (i, 0, 0)),
            ],
            scratch_shapes=[
                pltpu.VMEM((m, 1), jnp.float32),   # running max
                pltpu.VMEM((m, 1), jnp.float32),   # running sum
                pltpu.VMEM((m, dh), jnp.float32),  # running acc
            ],
        ),
        compiler_params=_cparams(("parallel", "arbitrary")),
    )(ql, kl, k, v)


# --------------------------------------------------------------------------
# Nystrom pass 2 (per batch*head, Np tiled):
#   once per (b,h):  z = pinv(a2) via 6 Newton-Schulz iterations (f32),
#                    za3v = z @ a3v          (reassociated combine)
#   per Np tile:     out = softmax(q_tile @ kl^T) @ za3v + conv33(v_tile)
#   The conv window (tile + 16-row halo each side) is fetched by manual DMA
#   from a pre-padded HBM copy of v.
# --------------------------------------------------------------------------
def _combine_kernel(q_ref, kl_ref, a2_ref, a3v_ref, vpad_hbm, denom_ref,
                    cw_ref, o_ref, za_sc, vwin, sem, *, tile_np):
    bh = pl.program_id(0)
    npi = pl.program_id(1)

    # Kick off the conv-window DMA early so it overlaps the matmuls below.
    start = pl.multiple_of(npi * tile_np, 256)
    cp = pltpu.make_async_copy(
        vpad_hbm.at[bh, pl.ds(start, tile_np + 2 * HALF), :], vwin, sem)
    cp.start()

    @pl.when(npi == 0)
    def _():
        a2 = a2_ref[0]
        m = a2.shape[0]
        ri = lax.broadcasted_iota(jnp.int32, (m, m), 0)
        ci = lax.broadcasted_iota(jnp.int32, (m, m), 1)
        ident = (ri == ci).astype(jnp.float32)
        # z0 = a2^T / (max(col_sums) * max(row_sums)); denom is global over
        # all batch*head (torch.max over all dims).  Keep the whole chain f32.
        z = jnp.transpose(a2) / denom_ref[0, 0]
        for _ in range(PINV_ITERS):
            xz = jnp.dot(a2, z, preferred_element_type=jnp.float32)
            t = 7.0 * ident - xz
            t = jnp.dot(xz, t, preferred_element_type=jnp.float32)
            t = 15.0 * ident - t
            t = jnp.dot(xz, t, preferred_element_type=jnp.float32)
            t = 13.0 * ident - t
            z = 0.25 * jnp.dot(z, t, preferred_element_type=jnp.float32)
        za_sc[...] = jnp.dot(z, a3v_ref[0],
                             preferred_element_type=jnp.float32
                             ).astype(jnp.bfloat16)

    # Recompute attn1 tile = softmax(q_tile @ kl^T) (never stored to HBM).
    sim = lax.dot_general(q_ref[0].astype(jnp.bfloat16),
                          kl_ref[0].astype(jnp.bfloat16),
                          (((1,), (1,)), ((), ())),
                          preferred_element_type=jnp.float32)
    sim = sim - jnp.max(sim, axis=-1, keepdims=True)
    e = jnp.exp(sim)
    p = e * pl.reciprocal(jnp.sum(e, axis=-1, keepdims=True), approx=True)
    out = jnp.dot(p.astype(jnp.bfloat16), za_sc[...],
                  preferred_element_type=jnp.float32)

    # Depthwise residual conv along the sequence axis (one 33-tap filter/head).
    cp.wait()
    h = pl.program_id(0) % HEADS
    conv = jnp.zeros_like(out)
    for j in range(CONV_K):
        conv = conv + cw_ref[h, j] * vwin[pl.ds(j, tile_np), :]

    o_ref[0] = out + conv


def pinv_combine(q, kl, a2, a3v, v_pad, denom, conv_w, tile_np):
    BH, Np, dh = q.shape
    m = kl.shape[1]
    kern = functools.partial(_combine_kernel, tile_np=tile_np)
    return pl.pallas_call(
        kern,
        out_shape=jax.ShapeDtypeStruct((BH, Np, dh), jnp.float32),
        grid_spec=pltpu.PrefetchScalarGridSpec(
            num_scalar_prefetch=0,
            grid=(BH, Np // tile_np),
            in_specs=[
                pl.BlockSpec((1, tile_np, dh), lambda i, j: (i, j, 0)),  # q
                pl.BlockSpec((1, m, dh), lambda i, j: (i, 0, 0)),        # kl
                pl.BlockSpec((1, m, m), lambda i, j: (i, 0, 0)),         # a2
                pl.BlockSpec((1, m, dh), lambda i, j: (i, 0, 0)),        # a3v
                pl.BlockSpec(memory_space=pl.ANY),                       # v_pad
                pl.BlockSpec(memory_space=pltpu.MemorySpace.SMEM),       # denom
                pl.BlockSpec(memory_space=pltpu.MemorySpace.SMEM),       # conv_w
            ],
            out_specs=pl.BlockSpec((1, tile_np, dh), lambda i, j: (i, j, 0)),
            scratch_shapes=[
                pltpu.VMEM((m, dh), jnp.bfloat16),                  # z @ a3v
                pltpu.VMEM((tile_np + 2 * HALF, dh), jnp.float32),  # conv window
                pltpu.SemaphoreType.DMA,
            ],
        ),
        compiler_params=_cparams(("parallel", "arbitrary")),
    )(q, kl, a2, a3v, v_pad, denom, conv_w)


# --------------------------------------------------------------------------
# Sum pool over the patch axis (Sum().pool(patch_logits, dim=1)), tiled over N.
# --------------------------------------------------------------------------
def _sumpool_kernel(x_ref, o_ref):
    @pl.when(pl.program_id(0) == 0)
    def _():
        o_ref[...] = jnp.zeros_like(o_ref)

    o_ref[...] += jnp.sum(x_ref[...], axis=1)


def pallas_sumpool(x):
    B, N, C = x.shape
    tile_n = _pick_tile(N, (2048, 1024, 512, 256, 128, 64, 32, 16, 8))
    return pl.pallas_call(
        _sumpool_kernel,
        out_shape=jax.ShapeDtypeStruct((B, C), jnp.float32),
        grid_spec=pltpu.PrefetchScalarGridSpec(
            num_scalar_prefetch=0,
            grid=(N // tile_n,),
            in_specs=[pl.BlockSpec((B, tile_n, C), lambda j: (0, j, 0))],
            out_specs=pl.BlockSpec((B, C), lambda j: (0, 0)),
        ),
        compiler_params=_cparams(("arbitrary",)),
    )(x)


# --------------------------------------------------------------------------
# NystromAttention + TransLayer + full forward (JAX glue around the kernels).
# --------------------------------------------------------------------------
def nystrom_attention_core(qkv2d, B, N, p):
    """qkv2d: (B*N, 3*DIM) projections of LayerNorm(x) with the q scale folded
    into the weights.  Returns the per-token attention output (B*N, DIM) before
    to_out."""
    m = NUM_LANDMARKS
    pad = (m - N % m) % m
    Np = N + pad
    BH = B * HEADS

    qkv = qkv2d.reshape(B, N, 3, HEADS, DIM_HEAD)
    if pad:
        # Front-pad with exact zeros (to_qkv has no bias, so this matches
        # padding the attention input before the projection).
        qkv = jnp.pad(qkv, ((0, 0), (pad, 0), (0, 0), (0, 0), (0, 0)))
    q = jnp.transpose(qkv[:, :, 0], (0, 2, 1, 3)).reshape(BH, Np, DIM_HEAD)
    k = jnp.transpose(qkv[:, :, 1], (0, 2, 1, 3)).reshape(BH, Np, DIM_HEAD)
    v = jnp.transpose(qkv[:, :, 2], (0, 2, 1, 3)).reshape(BH, Np, DIM_HEAD)

    # Landmark means (padded zero tokens intentionally included -> unmasked path).
    lgrp = Np // m
    ql = q.reshape(BH, m, lgrp, DIM_HEAD).mean(axis=2)
    kl = k.reshape(BH, m, lgrp, DIM_HEAD).mean(axis=2)

    tile_np = _pick_tile(Np, (2048, 1024, 512, 256))
    a2, a3v = attn_stats(ql, kl, k, v, tile_np)

    # Global Moore-Penrose init scale (torch.max over ALL dims of col/row sums).
    abs2 = jnp.abs(a2)
    denom = (jnp.max(jnp.sum(abs2, axis=-1)) *
             jnp.max(jnp.sum(abs2, axis=-2))).reshape(1, 1).astype(jnp.float32)

    # Pre-padded v for the depthwise conv halos (zeros top/bottom).
    v_pad = jnp.pad(v, ((0, 0), (HALF, HALF), (0, 0)))
    out = pinv_combine(q, kl, a2, a3v, v_pad, denom, p["res_conv_w"], tile_np)

    out = out.reshape(B, HEADS, Np, DIM_HEAD).transpose(0, 2, 1, 3)
    return out[:, -N:, :].reshape(B * N, DIM)


def translayer(x2d, B, N, p):
    scale = DIM_HEAD ** -0.5
    # Fold the q scale into the q columns of W_qkv (to_qkv has no bias).
    qkv_w = jnp.concatenate([p["qkv_w"][:, :DIM] * scale, p["qkv_w"][:, DIM:]],
                            axis=1)
    # LayerNorm fused into the qkv projection.
    qkv = fused_linear(x2d, qkv_w, ln_g=p["ln_g"], ln_b=p["ln_b"])
    attn = nystrom_attention_core(qkv, B, N, p)
    # to_out (dropout = identity) with the TransLayer residual fused in.
    return fused_linear(attn, p["out_w"], p["out_b"], residual=x2d)


def additive_transmil_forward(features, params):
    B, N, D = features.shape
    x = features.reshape(B * N, D)

    h = fused_linear(x, params["fc1_w"], params["fc1_b"], relu=True)
    h = translayer(h, B, N, params["layer1"])
    h = translayer(h, B, N, params["layer2"])

    # Final LayerNorm is fused into the first MLP linear; MLP output widths are
    # padded to 128 lanes (sliced back at the end) for dense stores.
    n_classes = params["mlp"][-1][0].shape[1]
    y = h
    phys_in = DIM
    for idx, (wm, bv, relu) in enumerate(params["mlp"]):
        din, dout = wm.shape
        dout_p = _round_up(dout, 128)
        wp = jnp.zeros((phys_in, dout_p), jnp.float32).at[:din, :dout].set(wm)
        bp = jnp.zeros((dout_p,), jnp.float32).at[:dout].set(bv)
        if idx == 0:
            y = fused_linear(y, wp, bp, ln_g=params["norm_g"],
                             ln_b=params["norm_b"], relu=relu)
        else:
            y = fused_linear(y, wp, bp, relu=relu)
        phys_in = dout_p

    patch_logits_padded = y.reshape(B, N, phys_in)
    logits_padded = pallas_sumpool(patch_logits_padded)

    patch_logits = patch_logits_padded[:, :, :n_classes]
    logits = logits_padded[:, :n_classes]
    # TODO(synk): self.pos_layer (PPEG) is built in __init__ but never used in
    # the reference forward(), so it is intentionally not implemented.
    return {"logits": logits, "patch_logits": patch_logits}


# --------------------------------------------------------------------------
# Deterministic parameter init (synthetic weights; no checkpoint loading).
# --------------------------------------------------------------------------
def init_params(key, n_classes, hidden_dims):
    keys = iter(jax.random.split(key, 32))

    def w(shape, scale=0.02):
        return scale * jax.random.normal(next(keys), shape, jnp.float32)

    def layer_params():
        return {
            "ln_g": jnp.ones((DIM,), jnp.float32),
            "ln_b": jnp.zeros((DIM,), jnp.float32),
            "qkv_w": w((DIM, 3 * DIM)),
            "out_w": w((DIM, DIM)),
            "out_b": jnp.zeros((DIM,), jnp.float32),
            "res_conv_w": w((HEADS, CONV_K)),  # Conv2d(H,H,(33,1),groups=H) squeezed
        }

    mlp = []
    dims = [DIM] + list(hidden_dims) + [n_classes]
    for idx, (din, dout) in enumerate(zip(dims[:-1], dims[1:])):
        relu = idx < len(hidden_dims)
        mlp.append((w((din, dout)), jnp.zeros((dout,), jnp.float32), relu))

    return {
        "fc1_w": w((DIM, DIM)),
        "fc1_b": jnp.zeros((DIM,), jnp.float32),
        "layer1": layer_params(),
        "layer2": layer_params(),
        "norm_g": jnp.ones((DIM,), jnp.float32),
        "norm_b": jnp.zeros((DIM,), jnp.float32),
        "mlp": mlp,
    }


if __name__ == "__main__":
    B, N = 2, 8                 # small bag: 2 slides, 8 patches each
    n_classes = 3
    hidden_dims = (32,)

    key = jax.random.PRNGKey(0)
    kf, kp = jax.random.split(key)
    features = jax.random.normal(kf, (B, N, DIM), jnp.float32)
    params = init_params(kp, n_classes, hidden_dims)

    out = additive_transmil_forward(features, params)
    jax.block_until_ready(out["logits"])
    jax.block_until_ready(out["patch_logits"])

    assert out["patch_logits"].shape == (B, N, n_classes)
    assert out["logits"].shape == (B, n_classes)
    print("KERNEL_OK")
</pallas_src>

<mosaic_0001>
module attributes {stable_mosaic.version = 11 : i64} {
  func.func @kernel(%arg0: i32, %arg1: memref<512x512xf32, #tpu.memory_space<vmem>>, %arg2: memref<512x512xf32, #tpu.memory_space<vmem>>, %arg3: memref<1x512xf32, #tpu.memory_space<vmem>>, %arg4: memref<512x512xf32, #tpu.memory_space<vmem>>) attributes {dimension_semantics = [#tpu.dimension_semantics<parallel>], iteration_bounds = array<i64: 1>, scalar_prefetch = 0 : i64, scratch_operands = 0 : i64, tpu.core_type = #tpu.core_type<tc>, window_params = [{transform_indices = @transform_0, window_bounds = array<i64: 512, 512>}, {pipeline_mode = #tpu.pipeline_mode<synchronous>, transform_indices = @transform_1, window_bounds = array<i64: 512, 512>}, {pipeline_mode = #tpu.pipeline_mode<synchronous>, transform_indices = @transform_2, window_bounds = array<i64: 1, 512>}, {transform_indices = @transform_3, window_bounds = array<i64: 512, 512>}]} {
    %c0 = arith.constant 0 : index
    %c0_0 = arith.constant 0 : index
    %0 = vector.load %arg1[%c0, %c0_0] : memref<512x512xf32, #tpu.memory_space<vmem>>, vector<512x512xf32>
    %1 = arith.truncf %0 : vector<512x512xf32> to vector<512x512xbf16>
    %c0_1 = arith.constant 0 : index
    %c0_2 = arith.constant 0 : index
    %2 = vector.load %arg2[%c0_1, %c0_2] : memref<512x512xf32, #tpu.memory_space<vmem>>, vector<512x512xf32>
    %3 = arith.truncf %2 : vector<512x512xf32> to vector<512x512xbf16>
    %cst = arith.constant dense<0.000000e+00> : vector<512x512xf32>
    %4 = tpu.matmul %1, %3, %cst {dimension_numbers = #tpu.dot_dimension_numbers<[1], [0], [0], [1], [0, 0, 1, 1], [], []>} : vector<512x512xbf16>, vector<512x512xbf16>, vector<512x512xf32> -> vector<512x512xf32>
    %c0_3 = arith.constant 0 : index
    %c0_4 = arith.constant 0 : index
    %5 = vector.load %arg3[%c0_3, %c0_4] : memref<1x512xf32, #tpu.memory_space<vmem>>, vector<1x512xf32>
    %6 = vector.broadcast %5 : vector<1x512xf32> to vector<512x512xf32>
    %7 = arith.addf %4, %6 : vector<512x512xf32>
    %cst_5 = arith.constant 0.000000e+00 : f32
    %8 = vector.broadcast %cst_5 : f32 to vector<512x512xf32>
    %9 = arith.maximumf %7, %8 : vector<512x512xf32>
    %c0_6 = arith.constant 0 : index
    %c0_7 = arith.constant 0 : index
    %10 = vector.load %arg4[%c0_6, %c0_7] : memref<512x512xf32, #tpu.memory_space<vmem>>, vector<512x512xf32>
    tpu.vector_store %arg4[%c0_6, %c0_7], %9 {strides = array<i32>} : memref<512x512xf32, #tpu.memory_space<vmem>>, vector<512x512xf32>,
    return
  }
  func.func @transform_0(%arg0: i32) -> (i32, i32) {
    %c0_i32 = arith.constant 0 : i32
    %c0_i32_0 = arith.constant 0 : i32
    return %arg0, %c0_i32 : i32, i32
  }
  func.func @transform_1(%arg0: i32) -> (i32, i32) {
    %c0_i32 = arith.constant 0 : i32
    %c0_i32_0 = arith.constant 0 : i32
    %c0_i32_1 = arith.constant 0 : i32
    return %c0_i32, %c0_i32_0 : i32, i32
  }
  func.func @transform_2(%arg0: i32) -> (i32, i32) {
    %c0_i32 = arith.constant 0 : i32
    %c0_i32_0 = arith.constant 0 : i32
    %c0_i32_1 = arith.constant 0 : i32
    return %c0_i32, %c0_i32_0 : i32, i32
  }
  func.func @transform_3(%arg0: i32) -> (i32, i32) {
    %c0_i32 = arith.constant 0 : i32
    %c0_i32_0 = arith.constant 0 : i32
    return %arg0, %c0_i32 : i32, i32
  }
}

</mosaic_0001>

<llo_original>
// kernel: tpu_custom_call.1
$region0: #{tpu_custom_call.1}
  #allocation0 [shape = 'u32[]', space=smem, size = 0x4, offset = 0x4, fixed_abs, tag = 'smem constant byte address 0x4 - core index']
  #allocation1 [shape = 'u32[144,128]{1,0:T(1,128)}', space=vmem, size = 0x12000, scoped, tag = 'internal scratch']
  %s0 = inlined_call_operand.hbm [shape: f32[512,512], index: 0, kind: input, shape index: {}]
  %s1 = inlined_call_operand.hbm [shape: f32[512,512], index: 1, kind: input, shape index: {}]
  %s2 = inlined_call_operand.hbm [shape: f32[1,512], index: 2, kind: input, shape index: {}]
  %s3 = inlined_call_operand.hbm [shape: f32[512,512], index: 3, kind: output, shape index: {}]
  %s4 = sld [smem:[#allocation0]]
  $region34: #{tpu_custom_call.1} parent=0
    _
  %s6 = ssub.s32 1, %s4
  %s7 = scalar_select 0, %s6, %s4
  $region1: #{tpu_custom_call.1} parent=0
    #allocation2 [shape = 'u8[1048576]{0}', space=vmem, size = 0x100000, scoped, tag = 'input window, operand 0, single buffered']
    #allocation3 [shape = 's32[1]{0}', space=sflag, size = 0x4, scoped, tag = 'scoped memory for tpu_custom_call.1']
    #allocation4 [shape = 's32[1]{0}', space=sflag, size = 0x4, scoped, tag = 'scoped memory for tpu_custom_call.1']
    #allocation5 [shape = 'u8[1048576]{0}', space=vmem, size = 0x100000, scoped, tag = 'input window, operand 1, single buffered']
    #allocation6 [shape = 's32[1]{0}', space=sflag, size = 0x4, scoped, tag = 'scoped memory for tpu_custom_call.1']
    #allocation7 [shape = 'u8[2048]{0}', space=vmem, size = 0x800, scoped, tag = 'input window, operand 2, single buffered']
    #allocation8 [shape = 'u8[1048576]{0}', space=vmem, size = 0x100000, scoped, tag = 'output window, operand 0, single buffered']
    %8 = vsyncpa [#allocation3], 0
    %9 = vsyncpa [#allocation6], 0
    %10 = vsyncpa [#allocation4], 0
    // Predicated region
    $region2: #{tpu_custom_call.1} parent=1 // pred_check
      _
    $region3: #{tpu_custom_call.1} parent=1 // pred_check_branch
      %12 = sbr.rel (0) target = $region5
    $region4: #{tpu_custom_call.1} parent=1 // pred_region
      %s14 = ssub.s32 32768, 32768
      %15 = vsyncadd [#allocation3], %s14
      %s16 = sshll.u32 [#allocation2], 4
      %s17 = int_to_ptr.vmem [resolvable:$true] %s16
      %22 = dma.hbm_to_vmem [thread:$0]  %s0, 32768, %s17, [#allocation3], 512, 512, 32
    $region5: #{tpu_custom_call.1} parent=1 // pred_fallthru
      _
    // Predicated region
    $region6: #{tpu_custom_call.1} parent=1 // pred_check
      _
    $region7: #{tpu_custom_call.1} parent=1 // pred_check_branch
      %24 = sbr.rel (0) target = $region9
    $region8: #{tpu_custom_call.1} parent=1 // pred_region
      %s26 = ssub.s32 32768, 32768
      %27 = vsyncadd [#allocation6], %s26
      %s28 = sshll.u32 [#allocation5], 4
      %s29 = int_to_ptr.vmem [resolvable:$true] %s28
      %34 = dma.hbm_to_vmem [thread:$0]  %s1, 32768, %s29, [#allocation6], 512, 512, 32
    $region9: #{tpu_custom_call.1} parent=1 // pred_fallthru
      _
    // Predicated region
    $region10: #{tpu_custom_call.1} parent=1 // pred_check
      _
    $region11: #{tpu_custom_call.1} parent=1 // pred_check_branch
      %36 = sbr.rel (0) target = $region13
    $region12: #{tpu_custom_call.1} parent=1 // pred_region
      %s38 = ssub.s32 64, 64
      %39 = vsyncadd [#allocation6], %s38
      %s41 = sshll.u32 [#allocation7], 4
      %s42 = int_to_ptr.vmem [resolvable:$true] %s41
      %44 = dma.hbm_to_vmem [thread:$0]  %s2, 64, %s42, [#allocation6]
    $region13: #{tpu_custom_call.1} parent=1 // pred_fallthru
      _
    // Predicated region
    $region14: #{tpu_custom_call.1} parent=1 // pred_check
      _
    $region15: #{tpu_custom_call.1} parent=1 // pred_check_branch
      %46 = sbr.rel (0) target = $region17
    $region16: #{tpu_custom_call.1} parent=1 // pred_region
      %47 = dma.done [#allocation3], 32768
    $region17: #{tpu_custom_call.1} parent=1 // pred_fallthru
      _
    // Predicated region
    $region18: #{tpu_custom_call.1} parent=1 // pred_check
      _
    $region19: #{tpu_custom_call.1} parent=1 // pred_check_branch
      %49 = sbr.rel (0) target = $region21
    $region20: #{tpu_custom_call.1} parent=1 // pred_region
      %50 = dma.done [#allocation6], 32768
    $region21: #{tpu_custom_call.1} parent=1 // pred_fallthru
      _
    // Predicated region
    $region22: #{tpu_custom_call.1} parent=1 // pred_check
      _
    $region23: #{tpu_custom_call.1} parent=1 // pred_check_branch
      %52 = sbr.rel (0) target = $region25
    $region24: #{tpu_custom_call.1} parent=1 // pred_region
      %53 = dma.done [#allocation6], 64
    $region25: #{tpu_custom_call.1} parent=1 // pred_fallthru
      _
    %v54 = vld [vmem:[#allocation2] sm:$0xff]
    %v55 = vld [vmem:[#allocation2 + $0x8] sm:$0xff]
    %v56 = vld [vmem:[#allocation2 + $0x10] sm:$0xff]
    %v57 = vld [vmem:[#allocation2 + $0x18] sm:$0xff]
    %v58 = vld [vmem:[#allocation2 + $0x20] sm:$0xff]
    %v59 = vld [vmem:[#allocation2 + $0x28] sm:$0xff]
    %v60 = vld [vmem:[#allocation2 + $0x30] sm:$0xff]
    %v61 = vld [vmem:[#allocation2 + $0x38] sm:$0xff]
    %v62 = vld [vmem:[#allocation2 + $0x40] sm:$0xff]
    %v63 = vld [vmem:[#allocation2 + $0x48] sm:$0xff]
    %v64 = vld [vmem:[#allocation2 + $0x50] sm:$0xff]
    %v65 = vld [vmem:[#allocation2 + $0x58] sm:$0xff]
    %v66 = vld [vmem:[#allocation2 + $0x60] sm:$0xff]
    %v67 = vld [vmem:[#allocation2 + $0x68] sm:$0xff]
    %v68 = vld [vmem:[#allocation2 + $0x70] sm:$0xff]
    %v69 = vld [vmem:[#allocation2 + $0x78] sm:$0xff]
    %v70 = vld [vmem:[#allocation2 + $0x80] sm:$0xff]
    %v71 = vld [vmem:[#allocation2 + $0x88] sm:$0xff]
    %v72 = vld [vmem:[#allocation2 + $0x90] sm:$0xff]
    %v73 = vld [vmem:[#allocation2 + $0x98] sm:$0xff]
    %v74 = vld [vmem:[#allocation2 + $0xa0] sm:$0xff]
    %v75 = vld [vmem:[#allocation2 + $0xa8] sm:$0xff]
    %v76 = vld [vmem:[#allocation2 + $0xb0] sm:$0xff]
    %v77 = vld [vmem:[#allocation2 + $0xb8] sm:$0xff]
    %v78 = vld [vmem:[#allocation2 + $0xc0] sm:$0xff]
    %v79 = vld [vmem:[#allocation2 + $0xc8] sm:$0xff]
    %v80 = vld [vmem:[#allocation2 + $0xd0] sm:$0xff]
    %v81 = vld [vmem:[#allocation2 + $0xd8] sm:$0xff]
    %v82 = vld [vmem:[#allocation2 + $0xe0] sm:$0xff]
    %v83 = vld [vmem:[#allocation2 + $0xe8] sm:$0xff]
    %v84 = vld [vmem:[#allocation2 + $0xf0] sm:$0xff]
    %v85 = vld [vmem:[#allocation2 + $0xf8] sm:$0xff]
    %v86 = vld [vmem:[#allocation2 + $0x100] sm:$0xff]
    %v87 = vld [vmem:[#allocation2 + $0x108] sm:$0xff]
    %v88 = vld [vmem:[#allocation2 + $0x110] sm:$0xff]
    %v89 = vld [vmem:[#allocation2 + $0x118] sm:$0xff]
    %v90 = vld [vmem:[#allocation2 + $0x120] sm:$0xff]
    %v91 = vld [vmem:[#allocation2 + $0x128] sm:$0xff]
    %v92 = vld [vmem:[#allocation2 + $0x130] sm:$0xff]
    %v93 = vld [vmem:[#allocation2 + $0x138] sm:$0xff]
    %v94 = vld [vmem:[#allocation2 + $0x140] sm:$0xff]
    %v95 = vld [vmem:[#allocation2 + $0x148] sm:$0xff]
    %v96 = vld [vmem:[#allocation2 + $0x150] sm:$0xff]
    %v97 = vld [vmem:[#allocation2 + $0x158] sm:$0xff]
    %v98 = vld [vmem:[#allocation2 + $0x160] sm:$0xff]
    %v99 = vld [vmem:[#allocation2 + $0x168] sm:$0xff]
    %v100 = vld [vmem:[#allocation2 + $0x170] sm:$0xff]
    %v101 = vld [vmem:[#allocation2 + $0x178] sm:$0xff]
    %v102 = vld [vmem:[#allocation2 + $0x180] sm:$0xff]
    %v103 = vld [vmem:[#allocation2 + $0x188] sm:$0xff]
    %v104 = vld [vmem:[#allocation2 + $0x190] sm:$0xff]
    %v105 = vld [vmem:[#allocation2 + $0x198] sm:$0xff]
    %v106 = vld [vmem:[#allocation2 + $0x1a0] sm:$0xff]
    %v107 = vld [vmem:[#allocation2 + $0x1a8] sm:$0xff]
    %v108 = vld [vmem:[#allocation2 + $0x1b0] sm:$0xff]
    %v109 = vld [vmem:[#allocation2 + $0x1b8] sm:$0xff]
    %v110 = vld [vmem:[#allocation2 + $0x1c0] sm:$0xff]
    %v111 = vld [vmem:[#allocation2 + $0x1c8] sm:$0xff]
    %v112 = vld [vmem:[#allocation2 + $0x1d0] sm:$0xff]
    %v113 = vld [vmem:[#allocation2 + $0x1d8] sm:$0xff]
    %v114 = vld [vmem:[#allocation2 + $0x1e0] sm:$0xff]
    %v115 = vld [vmem:[#allocation2 + $0x1e8] sm:$0xff]
    %v116 = vld [vmem:[#allocation2 + $0x1f0] sm:$0xff]
    %v117 = vld [vmem:[#allocation2 + $0x1f8] sm:$0xff]
    %v118 = vld [vmem:[#allocation2 + $0x200] sm:$0xff]
    %v119 = vld [vmem:[#allocation2 + $0x208] sm:$0xff]
    %v120 = vld [vmem:[#allocation2 + $0x210] sm:$0xff]
    %v121 = vld [vmem:[#allocation2 + $0x218] sm:$0xff]
    %v122 = vld [vmem:[#allocation2 + $0x220] sm:$0xff]
    %v123 = vld [vmem:[#allocation2 + $0x228] sm:$0xff]
    %v124 = vld [vmem:[#allocation2 + $0x230] sm:$0xff]
    %v125 = vld [vmem:[#allocation2 + $0x238] sm:$0xff]
    %v126 = vld [vmem:[#allocation2 + $0x240] sm:$0xff]
    %v127 = vld [vmem:[#allocation2 + $0x248] sm:$0xff]
    %v128 = vld [vmem:[#allocation2 + $0x250] sm:$0xff]
    %v129 = vld [vmem:[#allocation2 + $0x258] sm:$0xff]
    %v130 = vld [vmem:[#allocation2 + $0x260] sm:$0xff]
    %v131 = vld [vmem:[#allocation2 + $0x268] sm:$0xff]
    %v132 = vld [vmem:[#allocation2 + $0x270] sm:$0xff]
    %v133 = vld [vmem:[#allocation2 + $0x278] sm:$0xff]
    %v134 = vld [vmem:[#allocation2 + $0x280] sm:$0xff]
    %v135 = vld [vmem:[#allocation2 + $0x288] sm:$0xff]
    %v136 = vld [vmem:[#allocation2 + $0x290] sm:$0xff]
    %v137 = vld [vmem:[#allocation2 + $0x298] sm:$0xff]
    %v138 = vld [vmem:[#allocation2 + $0x2a0] sm:$0xff]
    %v139 = vld [vmem:[#allocation2 + $0x2a8] sm:$0xff]
    %v140 = vld [vmem:[#allocation2 + $0x2b0] sm:$0xff]
    %v141 = vld [vmem:[#allocation2 + $0x2b8] sm:$0xff]
    %v142 = vld [vmem:[#allocation2 + $0x2c0] sm:$0xff]
    %v143 = vld [vmem:[#allocation2 + $0x2c8] sm:$0xff]
    %v144 = vld [vmem:[#allocation2 + $0x2d0] sm:$0xff]
    %v145 = vld [vmem:[#allocation2 + $0x2d8] sm:$0xff]
    %v146 = vld [vmem:[#allocation2 + $0x2e0] sm:$0xff]
    %v147 = vld [vmem:[#allocation2 + $0x2e8] sm:$0xff]
    %v148 = vld [vmem:[#allocation2 + $0x2f0] sm:$0xff]
    %v149 = vld [vmem:[#allocation2 + $0x2f8] sm:$0xff]
    %v150 = vld [vmem:[#allocation2 + $0x300] sm:$0xff]
    %v151 = vld [vmem:[#allocation2 + $0x308] sm:$0xff]
    %v152 = vld [vmem:[#allocation2 + $0x310] sm:$0xff]
    %v153 = vld [vmem:[#allocation2 + $0x318] sm:$0xff]
    %v154 = vld [vmem:[#allocation2 + $0x320] sm:$0xff]
    %v155 = vld [vmem:[#allocation2 + $0x328] sm:$0xff]
    %v156 = vld [vmem:[#allocation2 + $0x330] sm:$0xff]
    %v157 = vld [vmem:[#allocation2 + $0x338] sm:$0xff]
    %v158 = vld [vmem:[#allocation2 + $0x340] sm:$0xff]
    %v159 = vld [vmem:[#allocation2 + $0x348] sm:$0xff]
    %v160 = vld [vmem:[#allocation2 + $0x350] sm:$0xff]
    %v161 = vld [vmem:[#allocation2 + $0x358] sm:$0xff]
    %v162 = vld [vmem:[#allocation2 + $0x360] sm:$0xff]
    %v163 = vld [vmem:[#allocation2 + $0x368] sm:$0xff]
    %v164 = vld [vmem:[#allocation2 + $0x370] sm:$0xff]
    %v165 = vld [vmem:[#allocation2 + $0x378] sm:$0xff]
    %v166 = vld [vmem:[#allocation2 + $0x380] sm:$0xff]
    %v167 = vld [vmem:[#allocation2 + $0x388] sm:$0xff]
    %v168 = vld [vmem:[#allocation2 + $0x390] sm:$0xff]
    %v169 = vld [vmem:[#allocation2 + $0x398] sm:$0xff]
    %v170 = vld [vmem:[#allocation2 + $0x3a0] sm:$0xff]
    %v171 = vld [vmem:[#allocation2 + $0x3a8] sm:$0xff]
    %v172 = vld [vmem:[#allocation2 + $0x3b0] sm:$0xff]
    %v173 = vld [vmem:[#allocation2 + $0x3b8] sm:$0xff]
    %v174 = vld [vmem:[#allocation2 + $0x3c0] sm:$0xff]
    %v175 = vld [vmem:[#allocation2 + $0x3c8] sm:$0xff]
    %v176 = vld [vmem:[#allocation2 + $0x3d0] sm:$0xff]
    %v177 = vld [vmem:[#allocation2 + $0x3d8] sm:$0xff]
    %v178 = vld [vmem:[#allocation2 + $0x3e0] sm:$0xff]
    %v179 = vld [vmem:[#allocation2 + $0x3e8] sm:$0xff]
    %v180 = vld [vmem:[#allocation2 + $0x3f0] sm:$0xff]
    %v181 = vld [vmem:[#allocation2 + $0x3f8] sm:$0xff]
    %v182 = vld [vmem:[#allocation2 + $0x400] sm:$0xff]
    %v183 = vld [vmem:[#allocation2 + $0x408] sm:$0xff]
    %v184 = vld [vmem:[#allocation2 + $0x410] sm:$0xff]
    %v185 = vld [vmem:[#allocation2 + $0x418] sm:$0xff]
    %v186 = vld [vmem:[#allocation2 + $0x420] sm:$0xff]
    %v187 = vld [vmem:[#allocation2 + $0x428] sm:$0xff]
    %v188 = vld [vmem:[#allocation2 + $0x430] sm:$0xff]
    %v189 = vld [vmem:[#allocation2 + $0x438] sm:$0xff]
    %v190 = vld [vmem:[#allocation2 + $0x440] sm:$0xff]
    %v191 = vld [vmem:[#allocation2 + $0x448] sm:$0xff]
    %v192 = vld [vmem:[#allocation2 + $0x450] sm:$0xff]
    %v193 = vld [vmem:[#allocation2 + $0x458] sm:$0xff]
    %v194 = vld [vmem:[#allocation2 + $0x460] sm:$0xff]
    %v195 = vld [vmem:[#allocation2 + $0x468] sm:$0xff]
    %v196 = vld [vmem:[#allocation2 + $0x470] sm:$0xff]
    %v197 = vld [vmem:[#allocation2 + $0x478] sm:$0xff]
    %v198 = vld [vmem:[#allocation2 + $0x480] sm:$0xff]
    %v199 = vld [vmem:[#allocation2 + $0x488] sm:$0xff]
    %v200 = vld [vmem:[#allocation2 + $0x490] sm:$0xff]
    %v201 = vld [vmem:[#allocation2 + $0x498] sm:$0xff]
    %v202 = vld [vmem:[#allocation2 + $0x4a0] sm:$0xff]
    %v203 = vld [vmem:[#allocation2 + $0x4a8] sm:$0xff]
    %v204 = vld [vmem:[#allocation2 + $0x4b0] sm:$0xff]
    %v205 = vld [vmem:[#allocation2 + $0x4b8] sm:$0xff]
    %v206 = vld [vmem:[#allocation2 + $0x4c0] sm:$0xff]
    %v207 = vld [vmem:[#allocation2 + $0x4c8] sm:$0xff]
    %v208 = vld [vmem:[#allocation2 + $0x4d0] sm:$0xff]
    %v209 = vld [vmem:[#allocation2 + $0x4d8] sm:$0xff]
    %v210 = vld [vmem:[#allocation2 + $0x4e0] sm:$0xff]
    %v211 = vld [vmem:[#allocation2 + $0x4e8] sm:$0xff]
    %v212 = vld [vmem:[#allocation2 + $0x4f0] sm:$0xff]
    %v213 = vld [vmem:[#allocation2 + $0x4f8] sm:$0xff]
    %v214 = vld [vmem:[#allocation2 + $0x500] sm:$0xff]
    %v215 = vld [vmem:[#allocation2 + $0x508] sm:$0xff]
    %v216 = vld [vmem:[#allocation2 + $0x510] sm:$0xff]
    %v217 = vld [vmem:[#allocation2 + $0x518] sm:$0xff]
    %v218 = vld [vmem:[#allocation2 + $0x520] sm:$0xff]
    %v219 = vld [vmem:[#allocation2 + $0x528] sm:$0xff]
    %v220 = vld [vmem:[#allocation2 + $0x530] sm:$0xff]
    %v221 = vld [vmem:[#allocation2 + $0x538] sm:$0xff]
    %v222 = vld [vmem:[#allocation2 + $0x540] sm:$0xff]
    %v223 = vld [vmem:[#allocation2 + $0x548] sm:$0xff]
    %v224 = vld [vmem:[#allocation2 + $0x550] sm:$0xff]
    %v225 = vld [vmem:[#allocation2 + $0x558] sm:$0xff]
    %v226 = vld [vmem:[#allocation2 + $0x560] sm:$0xff]
    %v227 = vld [vmem:[#allocation2 + $0x568] sm:$0xff]
    %v228 = vld [vmem:[#allocation2 + $0x570] sm:$0xff]
    %v229 = vld [vmem:[#allocation2 + $0x578] sm:$0xff]
    %v230 = vld [vmem:[#allocation2 + $0x580] sm:$0xff]
    %v231 = vld [vmem:[#allocation2 + $0x588] sm:$0xff]
    %v232 = vld [vmem:[#allocation2 + $0x590] sm:$0xff]
    %v233 = vld [vmem:[#allocation2 + $0x598] sm:$0xff]
    %v234 = vld [vmem:[#allocation2 + $0x5a0] sm:$0xff]
    %v235 = vld [vmem:[#allocation2 + $0x5a8] sm:$0xff]
    %v236 = vld [vmem:[#allocation2 + $0x5b0] sm:$0xff]
    %v237 = vld [vmem:[#allocation2 + $0x5b8] sm:$0xff]
    %v238 = vld [vmem:[#allocation2 + $0x5c0] sm:$0xff]
    %v239 = vld [vmem:[#allocation2 + $0x5c8] sm:$0xff]
    %v240 = vld [vmem:[#allocation2 + $0x5d0] sm:$0xff]
    %v241 = vld [vmem:[#allocation2 + $0x5d8] sm:$0xff]
    %v242 = vld [vmem:[#allocation2 + $0x5e0] sm:$0xff]
    %v243 = vld [vmem:[#allocation2 + $0x5e8] sm:$0xff]
    %v244 = vld [vmem:[#allocation2 + $0x5f0] sm:$0xff]
    %v245 = vld [vmem:[#allocation2 + $0x5f8] sm:$0xff]
    %v246 = vld [vmem:[#allocation2 + $0x600] sm:$0xff]
    %v247 = vld [vmem:[#allocation2 + $0x608] sm:$0xff]
    %v248 = vld [vmem:[#allocation2 + $0x610] sm:$0xff]
    %v249 = vld [vmem:[#allocation2 + $0x618] sm:$0xff]
    %v250 = vld [vmem:[#allocation2 + $0x620] sm:$0xff]
    %v251 = vld [vmem:[#allocation2 + $0x628] sm:$0xff]
    %v252 = vld [vmem:[#allocation2 + $0x630] sm:$0xff]
    %v253 = vld [vmem:[#allocation2 + $0x638] sm:$0xff]
    %v254 = vld [vmem:[#allocation2 + $0x640] sm:$0xff]
    %v255 = vld [vmem:[#allocation2 + $0x648] sm:$0xff]
    %v256 = vld [vmem:[#allocation2 + $0x650] sm:$0xff]
    %v257 = vld [vmem:[#allocation2 + $0x658] sm:$0xff]
    %v258 = vld [vmem:[#allocation2 + $0x660] sm:$0xff]
    %v259 = vld [vmem:[#allocation2 + $0x668] sm:$0xff]
    %v260 = vld [vmem:[#allocation2 + $0x670] sm:$0xff]
    %v261 = vld [vmem:[#allocation2 + $0x678] sm:$0xff]
    %v262 = vld [vmem:[#allocation2 + $0x680] sm:$0xff]
    %v263 = vld [vmem:[#allocation2 + $0x688] sm:$0xff]
    %v264 = vld [vmem:[#allocation2 + $0x690] sm:$0xff]
    %v265 = vld [vmem:[#allocation2 + $0x698] sm:$0xff]
    %v266 = vld [vmem:[#allocation2 + $0x6a0] sm:$0xff]
    %v267 = vld [vmem:[#allocation2 + $0x6a8] sm:$0xff]
    %v268 = vld [vmem:[#allocation2 + $0x6b0] sm:$0xff]
    %v269 = vld [vmem:[#allocation2 + $0x6b8] sm:$0xff]
    %v270 = vld [vmem:[#allocation2 + $0x6c0] sm:$0xff]
    %v271 = vld [vmem:[#allocation2 + $0x6c8] sm:$0xff]
    %v272 = vld [vmem:[#allocation2 + $0x6d0] sm:$0xff]
    %v273 = vld [vmem:[#allocation2 + $0x6d8] sm:$0xff]
    %v274 = vld [vmem:[#allocation2 + $0x6e0] sm:$0xff]
    %v275 = vld [vmem:[#allocation2 + $0x6e8] sm:$0xff]
    %v276 = vld [vmem:[#allocation2 + $0x6f0] sm:$0xff]
    %v277 = vld [vmem:[#allocation2 + $0x6f8] sm:$0xff]
    %v278 = vld [vmem:[#allocation2 + $0x700] sm:$0xff]
    %v279 = vld [vmem:[#allocation2 + $0x708] sm:$0xff]
    %v280 = vld [vmem:[#allocation2 + $0x710] sm:$0xff]
    %v281 = vld [vmem:[#allocation2 + $0x718] sm:$0xff]
    %v282 = vld [vmem:[#allocation2 + $0x720] sm:$0xff]
    %v283 = vld [vmem:[#allocation2 + $0x728] sm:$0xff]
    %v284 = vld [vmem:[#allocation2 + $0x730] sm:$0xff]
    %v285 = vld [vmem:[#allocation2 + $0x738] sm:$0xff]
    %v286 = vld [vmem:[#allocation2 + $0x740] sm:$0xff]
    %v287 = vld [vmem:[#allocation2 + $0x748] sm:$0xff]
    %v288 = vld [vmem:[#allocation2 + $0x750] sm:$0xff]
    %v289 = vld [vmem:[#allocation2 + $0x758] sm:$0xff]
    %v290 = vld [vmem:[#allocation2 + $0x760] sm:$0xff]
    %v291 = vld [vmem:[#allocation2 + $0x768] sm:$0xff]
    %v292 = vld [vmem:[#allocation2 + $0x770] sm:$0xff]
    %v293 = vld [vmem:[#allocation2 + $0x778] sm:$0xff]
    %v294 = vld [vmem:[#allocation2 + $0x780] sm:$0xff]
    %v295 = vld [vmem:[#allocation2 + $0x788] sm:$0xff]
    %v296 = vld [vmem:[#allocation2 + $0x790] sm:$0xff]
    %v297 = vld [vmem:[#allocation2 + $0x798] sm:$0xff]
    %v298 = vld [vmem:[#allocation2 + $0x7a0] sm:$0xff]
    %v299 = vld [vmem:[#allocation2 + $0x7a8] sm:$0xff]
    %v300 = vld [vmem:[#allocation2 + $0x7b0] sm:$0xff]
    %v301 = vld [vmem:[#allocation2 + $0x7b8] sm:$0xff]
    %v302 = vld [vmem:[#allocation2 + $0x7c0] sm:$0xff]
    %v303 = vld [vmem:[#allocation2 + $0x7c8] sm:$0xff]
    %v304 = vld [vmem:[#allocation2 + $0x7d0] sm:$0xff]
    %v305 = vld [vmem:[#allocation2 + $0x7d8] sm:$0xff]
    %v306 = vld [vmem:[#allocation2 + $0x7e0] sm:$0xff]
    %v307 = vld [vmem:[#allocation2 + $0x7e8] sm:$0xff]
    %v308 = vld [vmem:[#allocation2 + $0x7f0] sm:$0xff]
    %v309 = vld [vmem:[#allocation2 + $0x7f8] sm:$0xff]
    %v310 = vpack.c.bf16 %v58, %v54
    %v311 = vpack.c.bf16 %v59, %v55
    %v312 = vpack.c.bf16 %v60, %v56
    %v313 = vpack.c.bf16 %v61, %v57
    %v314 = vpack.c.bf16 %v66, %v62
    %v315 = vpack.c.bf16 %v67, %v63
    %v316 = vpack.c.bf16 %v68, %v64
    %v317 = vpack.c.bf16 %v69, %v65
    %v318 = vpack.c.bf16 %v74, %v70
    %v319 = vpack.c.bf16 %v75, %v71
    %v320 = vpack.c.bf16 %v76, %v72
    %v321 = vpack.c.bf16 %v77, %v73
    %v322 = vpack.c.bf16 %v82, %v78
    %v323 = vpack.c.bf16 %v83, %v79
    %v324 = vpack.c.bf16 %v84, %v80
    %v325 = vpack.c.bf16 %v85, %v81
    %v326 = vpack.c.bf16 %v90, %v86
    %v327 = vpack.c.bf16 %v91, %v87
    %v328 = vpack.c.bf16 %v92, %v88
    %v329 = vpack.c.bf16 %v93, %v89
    %v330 = vpack.c.bf16 %v98, %v94
    %v331 = vpack.c.bf16 %v99, %v95
    %v332 = vpack.c.bf16 %v100, %v96
    %v333 = vpack.c.bf16 %v101, %v97
    %v334 = vpack.c.bf16 %v106, %v102
    %v335 = vpack.c.bf16 %v107, %v103
    %v336 = vpack.c.bf16 %v108, %v104
    %v337 = vpack.c.bf16 %v109, %v105
    %v338 = vpack.c.bf16 %v114, %v110
    %v339 = vpack.c.bf16 %v115, %v111
    %v340 = vpack.c.bf16 %v116, %v112
    %v341 = vpack.c.bf16 %v117, %v113
    %v342 = vpack.c.bf16 %v122, %v118
    %v343 = vpack.c.bf16 %v123, %v119
    %v344 = vpack.c.bf16 %v124, %v120
    %v345 = vpack.c.bf16 %v125, %v121
    %v346 = vpack.c.bf16 %v130, %v126
    %v347 = vpack.c.bf16 %v131, %v127
    %v348 = vpack.c.bf16 %v132, %v128
    %v349 = vpack.c.bf16 %v133, %v129
    %v350 = vpack.c.bf16 %v138, %v134
    %v351 = vpack.c.bf16 %v139, %v135
    %v352 = vpack.c.bf16 %v140, %v136
    %v353 = vpack.c.bf16 %v141, %v137
    %v354 = vpack.c.bf16 %v146, %v142
    %v355 = vpack.c.bf16 %v147, %v143
    %v356 = vpack.c.bf16 %v148, %v144
    %v357 = vpack.c.bf16 %v149, %v145
    %v358 = vpack.c.bf16 %v154, %v150
    %v359 = vpack.c.bf16 %v155, %v151
    %v360 = vpack.c.bf16 %v156, %v152
    %v361 = vpack.c.bf16 %v157, %v153
    %v362 = vpack.c.bf16 %v162, %v158
    %v363 = vpack.c.bf16 %v163, %v159
    %v364 = vpack.c.bf16 %v164, %v160
    %v365 = vpack.c.bf16 %v165, %v161
    %v366 = vpack.c.bf16 %v170, %v166
    %v367 = vpack.c.bf16 %v171, %v167
    %v368 = vpack.c.bf16 %v172, %v168
    %v369 = vpack.c.bf16 %v173, %v169
    %v370 = vpack.c.bf16 %v178, %v174
    %v371 = vpack.c.bf16 %v179, %v175
    %v372 = vpack.c.bf16 %v180, %v176
    %v373 = vpack.c.bf16 %v181, %v177
    %v374 = vpack.c.bf16 %v186, %v182
    %v375 = vpack.c.bf16 %v187, %v183
    %v376 = vpack.c.bf16 %v188, %v184
    %v377 = vpack.c.bf16 %v189, %v185
    %v378 = vpack.c.bf16 %v194, %v190
    %v379 = vpack.c.bf16 %v195, %v191
    %v380 = vpack.c.bf16 %v196, %v192
    %v381 = vpack.c.bf16 %v197, %v193
    %v382 = vpack.c.bf16 %v202, %v198
    %v383 = vpack.c.bf16 %v203, %v199
    %v384 = vpack.c.bf16 %v204, %v200
    %v385 = vpack.c.bf16 %v205, %v201
    %v386 = vpack.c.bf16 %v210, %v206
    %v387 = vpack.c.bf16 %v211, %v207
    %v388 = vpack.c.bf16 %v212, %v208
    %v389 = vpack.c.bf16 %v213, %v209
    %v390 = vpack.c.bf16 %v218, %v214
    %v391 = vpack.c.bf16 %v219, %v215
    %v392 = vpack.c.bf16 %v220, %v216
    %v393 = vpack.c.bf16 %v221, %v217
    %v394 = vpack.c.bf16 %v226, %v222
    %v395 = vpack.c.bf16 %v227, %v223
    %v396 = vpack.c.bf16 %v228, %v224
    %v397 = vpack.c.bf16 %v229, %v225
    %v398 = vpack.c.bf16 %v234, %v230
    %v399 = vpack.c.bf16 %v235, %v231
    %v400 = vpack.c.bf16 %v236, %v232
    %v401 = vpack.c.bf16 %v237, %v233
    %v402 = vpack.c.bf16 %v242, %v238
    %v403 = vpack.c.bf16 %v243, %v239
    %v404 = vpack.c.bf16 %v244, %v240
    %v405 = vpack.c.bf16 %v245, %v241
    %v406 = vpack.c.bf16 %v250, %v246
    %v407 = vpack.c.bf16 %v251, %v247
    %v408 = vpack.c.bf16 %v252, %v248
    %v409 = vpack.c.bf16 %v253, %v249
    %v410 = vpack.c.bf16 %v258, %v254
    %v411 = vpack.c.bf16 %v259, %v255
    %v412 = vpack.c.bf16 %v260, %v256
    %v413 = vpack.c.bf16 %v261, %v257
    %v414 = vpack.c.bf16 %v266, %v262
    %v415 = vpack.c.bf16 %v267, %v263
    %v416 = vpack.c.bf16 %v268, %v264
    %v417 = vpack.c.bf16 %v269, %v265
    %v418 = vpack.c.bf16 %v274, %v270
    %v419 = vpack.c.bf16 %v275, %v271
    %v420 = vpack.c.bf16 %v276, %v272
    %v421 = vpack.c.bf16 %v277, %v273
    %v422 = vpack.c.bf16 %v282, %v278
    %v423 = vpack.c.bf16 %v283, %v279
    %v424 = vpack.c.bf16 %v284, %v280
    %v425 = vpack.c.bf16 %v285, %v281
    %v426 = vpack.c.bf16 %v290, %v286
    %v427 = vpack.c.bf16 %v291, %v287
    %v428 = vpack.c.bf16 %v292, %v288
    %v429 = vpack.c.bf16 %v293, %v289
    %v430 = vpack.c.bf16 %v298, %v294
    %v431 = vpack.c.bf16 %v299, %v295
    %v432 = vpack.c.bf16 %v300, %v296
    %v433 = vpack.c.bf16 %v301, %v297
    %v434 = vpack.c.bf16 %v306, %v302
    %v435 = vpack.c.bf16 %v307, %v303
    %v436 = vpack.c.bf16 %v308, %v304
    %v437 = vpack.c.bf16 %v309, %v305
    %v438 = vld [vmem:[#allocation5] sm:$0xff]
    %v439 = vld [vmem:[#allocation5 + $0x8] sm:$0xff]
    %v440 = vld [vmem:[#allocation5 + $0x10] sm:$0xff]
    %v441 = vld [vmem:[#allocation5 + $0x18] sm:$0xff]
    %v442 = vld [vmem:[#allocation5 + $0x20] sm:$0xff]
    %v443 = vld [vmem:[#allocation5 + $0x28] sm:$0xff]
    %v444 = vld [vmem:[#allocation5 + $0x30] sm:$0xff]
    %v445 = vld [vmem:[#allocation5 + $0x38] sm:$0xff]
    %v446 = vld [vmem:[#allocation5 + $0x40] sm:$0xff]
    %v447 = vld [vmem:[#allocation5 + $0x48] sm:$0xff]
    %v448 = vld [vmem:[#allocation5 + $0x50] sm:$0xff]
    %v449 = vld [vmem:[#allocation5 + $0x58] sm:$0xff]
    %v450 = vld [vmem:[#allocation5 + $0x60] sm:$0xff]
    %v451 = vld [vmem:[#allocation5 + $0x68] sm:$0xff]
    %v452 = vld [vmem:[#allocation5 + $0x70] sm:$0xff]
    %v453 = vld [vmem:[#allocation5 + $0x78] sm:$0xff]
    %v454 = vld [vmem:[#allocation5 + $0x80] sm:$0xff]
    %v455 = vld [vmem:[#allocation5 + $0x88] sm:$0xff]
    %v456 = vld [vmem:[#allocation5 + $0x90] sm:$0xff]
    %v457 = vld [vmem:[#allocation5 + $0x98] sm:$0xff]
    %v458 = vld [vmem:[#allocation5 + $0xa0] sm:$0xff]
    %v459 = vld [vmem:[#allocation5 + $0xa8] sm:$0xff]
    %v460 = vld [vmem:[#allocation5 + $0xb0] sm:$0xff]
    %v461 = vld [vmem:[#allocation5 + $0xb8] sm:$0xff]
    %v462 = vld [vmem:[#allocation5 + $0xc0] sm:$0xff]
    %v463 = vld [vmem:[#allocation5 + $0xc8] sm:$0xff]
    %v464 = vld [vmem:[#allocation5 + $0xd0] sm:$0xff]
    %v465 = vld [vmem:[#allocation5 + $0xd8] sm:$0xff]
    %v466 = vld [vmem:[#allocation5 + $0xe0] sm:$0xff]
    %v467 = vld [vmem:[#allocation5 + $0xe8] sm:$0xff]
    %v468 = vld [vmem:[#allocation5 + $0xf0] sm:$0xff]
    %v469 = vld [vmem:[#allocation5 + $0xf8] sm:$0xff]
    %v470 = vld [vmem:[#allocation5 + $0x100] sm:$0xff]
    %v471 = vld [vmem:[#allocation5 + $0x108] sm:$0xff]
    %v472 = vld [vmem:[#allocation5 + $0x110] sm:$0xff]
    %v473 = vld [vmem:[#allocation5 + $0x118] sm:$0xff]
    %v474 = vld [vmem:[#allocation5 + $0x120] sm:$0xff]
    %v475 = vld [vmem:[#allocation5 + $0x128] sm:$0xff]
    %v476 = vld [vmem:[#allocation5 + $0x130] sm:$0xff]
    %v477 = vld [vmem:[#allocation5 + $0x138] sm:$0xff]
    %v478 = vld [vmem:[#allocation5 + $0x140] sm:$0xff]
    %v479 = vld [vmem:[#allocation5 + $0x148] sm:$0xff]
    %v480 = vld [vmem:[#allocation5 + $0x150] sm:$0xff]
    %v481 = vld [vmem:[#allocation5 + $0x158] sm:$0xff]
    %v482 = vld [vmem:[#allocation5 + $0x160] sm:$0xff]
    %v483 = vld [vmem:[#allocation5 + $0x168] sm:$0xff]
    %v484 = vld [vmem:[#allocation5 + $0x170] sm:$0xff]
    %v485 = vld [vmem:[#allocation5 + $0x178] sm:$0xff]
    %v486 = vld [vmem:[#allocation5 + $0x180] sm:$0xff]
    %v487 = vld [vmem:[#allocation5 + $0x188] sm:$0xff]
    %v488 = vld [vmem:[#allocation5 + $0x190] sm:$0xff]
    %v489 = vld [vmem:[#allocation5 + $0x198] sm:$0xff]
    %v490 = vld [vmem:[#allocation5 + $0x1a0] sm:$0xff]
    %v491 = vld [vmem:[#allocation5 + $0x1a8] sm:$0xff]
    %v492 = vld [vmem:[#allocation5 + $0x1b0] sm:$0xff]
    %v493 = vld [vmem:[#allocation5 + $0x1b8] sm:$0xff]
    %v494 = vld [vmem:[#allocation5 + $0x1c0] sm:$0xff]
    %v495 = vld [vmem:[#allocation5 + $0x1c8] sm:$0xff]
    %v496 = vld [vmem:[#allocation5 + $0x1d0] sm:$0xff]
    %v497 = vld [vmem:[#allocation5 + $0x1d8] sm:$0xff]
    %v498 = vld [vmem:[#allocation5 + $0x1e0] sm:$0xff]
    %v499 = vld [vmem:[#allocation5 + $0x1e8] sm:$0xff]
    %v500 = vld [vmem:[#allocation5 + $0x1f0] sm:$0xff]
    %v501 = vld [vmem:[#allocation5 + $0x1f8] sm:$0xff]
    %v502 = vld [vmem:[#allocation5 + $0x200] sm:$0xff]
    %v503 = vld [vmem:[#allocation5 + $0x208] sm:$0xff]
    %v504 = vld [vmem:[#allocation5 + $0x210] sm:$0xff]
    %v505 = vld [vmem:[#allocation5 + $0x218] sm:$0xff]
    %v506 = vld [vmem:[#allocation5 + $0x220] sm:$0xff]
    %v507 = vld [vmem:[#allocation5 + $0x228] sm:$0xff]
    %v508 = vld [vmem:[#allocation5 + $0x230] sm:$0xff]
    %v509 = vld [vmem:[#allocation5 + $0x238] sm:$0xff]
    %v510 = vld [vmem:[#allocation5 + $0x240] sm:$0xff]
    %v511 = vld [vmem:[#allocation5 + $0x248] sm:$0xff]
    %v512 = vld [vmem:[#allocation5 + $0x250] sm:$0xff]
    %v513 = vld [vmem:[#allocation5 + $0x258] sm:$0xff]
    %v514 = vld [vmem:[#allocation5 + $0x260] sm:$0xff]
    %v515 = vld [vmem:[#allocation5 + $0x268] sm:$0xff]
    %v516 = vld [vmem:[#allocation5 + $0x270] sm:$0xff]
    %v517 = vld [vmem:[#allocation5 + $0x278] sm:$0xff]
    %v518 = vld [vmem:[#allocation5 + $0x280] sm:$0xff]
    %v519 = vld [vmem:[#allocation5 + $0x288] sm:$0xff]
    %v520 = vld [vmem:[#allocation5 + $0x290] sm:$0xff]
    %v521 = vld [vmem:[#allocation5 + $0x298] sm:$0xff]
    %v522 = vld [vmem:[#allocation5 + $0x2a0] sm:$0xff]
    %v523 = vld [vmem:[#allocation5 + $0x2a8] sm:$0xff]
    %v524 = vld [vmem:[#allocation5 + $0x2b0] sm:$0xff]
    %v525 = vld [vmem:[#allocation5 + $0x2b8] sm:$0xff]
    %v526 = vld [vmem:[#allocation5 + $0x2c0] sm:$0xff]
    %v527 = vld [vmem:[#allocation5 + $0x2c8] sm:$0xff]
    %v528 = vld [vmem:[#allocation5 + $0x2d0] sm:$0xff]
    %v529 = vld [vmem:[#allocation5 + $0x2d8] sm:$0xff]
    %v530 = vld [vmem:[#allocation5 + $0x2e0] sm:$0xff]
    %v531 = vld [vmem:[#allocation5 + $0x2e8] sm:$0xff]
    %v532 = vld [vmem:[#allocation5 + $0x2f0] sm:$0xff]
    %v533 = vld [vmem:[#allocation5 + $0x2f8] sm:$0xff]
    %v534 = vld [vmem:[#allocation5 + $0x300] sm:$0xff]
    %v535 = vld [vmem:[#allocation5 + $0x308] sm:$0xff]
    %v536 = vld [vmem:[#allocation5 + $0x310] sm:$0xff]
    %v537 = vld [vmem:[#allocation5 + $0x318] sm:$0xff]
    %v538 = vld [vmem:[#allocation5 + $0x320] sm:$0xff]
    %v539 = vld [vmem:[#allocation5 + $0x328] sm:$0xff]
    %v540 = vld [vmem:[#allocation5 + $0x330] sm:$0xff]
    %v541 = vld [vmem:[#allocation5 + $0x338] sm:$0xff]
    %v542 = vld [vmem:[#allocation5 + $0x340] sm:$0xff]
    %v543 = vld [vmem:[#allocation5 + $0x348] sm:$0xff]
    %v544 = vld [vmem:[#allocation5 + $0x350] sm:$0xff]
    %v545 = vld [vmem:[#allocation5 + $0x358] sm:$0xff]
    %v546 = vld [vmem:[#allocation5 + $0x360] sm:$0xff]
    %v547 = vld [vmem:[#allocation5 + $0x368] sm:$0xff]
    %v548 = vld [vmem:[#allocation5 + $0x370] sm:$0xff]
    %v549 = vld [vmem:[#allocation5 + $0x378] sm:$0xff]
    %v550 = vld [vmem:[#allocation5 + $0x380] sm:$0xff]
    %v551 = vld [vmem:[#allocation5 + $0x388] sm:$0xff]
    %v552 = vld [vmem:[#allocation5 + $0x390] sm:$0xff]
    %v553 = vld [vmem:[#allocation5 + $0x398] sm:$0xff]
    %v554 = vld [vmem:[#allocation5 + $0x3a0] sm:$0xff]
    %v555 = vld [vmem:[#allocation5 + $0x3a8] sm:$0xff]
    %v556 = vld [vmem:[#allocation5 + $0x3b0] sm:$0xff]
    %v557 = vld [vmem:[#allocation5 + $0x3b8] sm:$0xff]
    %v558 = vld [vmem:[#allocation5 + $0x3c0] sm:$0xff]
    %v559 = vld [vmem:[#allocation5 + $0x3c8] sm:$0xff]
    %v560 = vld [vmem:[#allocation5 + $0x3d0] sm:$0xff]
    %v561 = vld [vmem:[#allocation5 + $0x3d8] sm:$0xff]
    %v562 = vld [vmem:[#allocation5 + $0x3e0] sm:$0xff]
    %v563 = vld [vmem:[#allocation5 + $0x3e8] sm:$0xff]
    %v564 = vld [vmem:[#allocation5 + $0x3f0] sm:$0xff]
    %v565 = vld [vmem:[#allocation5 + $0x3f8] sm:$0xff]
    %v566 = vld [vmem:[#allocation5 + $0x400] sm:$0xff]
    %v567 = vld [vmem:[#allocation5 + $0x408] sm:$0xff]
    %v568 = vld [vmem:[#allocation5 + $0x410] sm:$0xff]
    %v569 = vld [vmem:[#allocation5 + $0x418] sm:$0xff]
    %v570 = vld [vmem:[#allocation5 + $0x420] sm:$0xff]
    %v571 = vld [vmem:[#allocation5 + $0x428] sm:$0xff]
    %v572 = vld [vmem:[#allocation5 + $0x430] sm:$0xff]
    %v573 = vld [vmem:[#allocation5 + $0x438] sm:$0xff]
    %v574 = vld [vmem:[#allocation5 + $0x440] sm:$0xff]
    %v575 = vld [vmem:[#allocation5 + $0x448] sm:$0xff]
    %v576 = vld [vmem:[#allocation5 + $0x450] sm:$0xff]
    %v577 = vld [vmem:[#allocation5 + $0x458] sm:$0xff]
    %v578 = vld [vmem:[#allocation5 + $0x460] sm:$0xff]
    %v579 = vld [vmem:[#allocation5 + $0x468] sm:$0xff]
    %v580 = vld [vmem:[#allocation5 + $0x470] sm:$0xff]
    %v581 = vld [vmem:[#allocation5 + $0x478] sm:$0xff]
    %v582 = vld [vmem:[#allocation5 + $0x480] sm:$0xff]
    %v583 = vld [vmem:[#allocation5 + $0x488] sm:$0xff]
    %v584 = vld [vmem:[#allocation5 + $0x490] sm:$0xff]
    %v585 = vld [vmem:[#allocation5 + $0x498] sm:$0xff]
    %v586 = vld [vmem:[#allocation5 + $0x4a0] sm:$0xff]
    %v587 = vld [vmem:[#allocation5 + $0x4a8] sm:$0xff]
    %v588 = vld [vmem:[#allocation5 + $0x4b0] sm:$0xff]
    %v589 = vld [vmem:[#allocation5 + $0x4b8] sm:$0xff]
    %v590 = vld [vmem:[#allocation5 + $0x4c0] sm:$0xff]
    %v591 = vld [vmem:[#allocation5 + $0x4c8] sm:$0xff]
    %v592 = vld [vmem:[#allocation5 + $0x4d0] sm:$0xff]
    %v593 = vld [vmem:[#allocation5 + $0x4d8] sm:$0xff]
    %v594 = vld [vmem:[#allocation5 + $0x4e0] sm:$0xff]
    %v595 = vld [vmem:[#allocation5 + $0x4e8] sm:$0xff]
    %v596 = vld [vmem:[#allocation5 + $0x4f0] sm:$0xff]
    %v597 = vld [vmem:[#allocation5 + $0x4f8] sm:$0xff]
    %v598 = vld [vmem:[#allocation5 + $0x500] sm:$0xff]
    %v599 = vld [vmem:[#allocation5 + $0x508] sm:$0xff]
    %v600 = vld [vmem:[#allocation5 + $0x510] sm:$0xff]
    %v601 = vld [vmem:[#allocation5 + $0x518] sm:$0xff]
    %v602 = vld [vmem:[#allocation5 + $0x520] sm:$0xff]
    %v603 = vld [vmem:[#allocation5 + $0x528] sm:$0xff]
    %v604 = vld [vmem:[#allocation5 + $0x530] sm:$0xff]
    %v605 = vld [vmem:[#allocation5 + $0x538] sm:$0xff]
    %v606 = vld [vmem:[#allocation5 + $0x540] sm:$0xff]
    %v607 = vld [vmem:[#allocation5 + $0x548] sm:$0xff]
    %v608 = vld [vmem:[#allocation5 + $0x550] sm:$0xff]
    %v609 = vld [vmem:[#allocation5 + $0x558] sm:$0xff]
    %v610 = vld [vmem:[#allocation5 + $0x560] sm:$0xff]
    %v611 = vld [vmem:[#allocation5 + $0x568] sm:$0xff]
    %v612 = vld [vmem:[#allocation5 + $0x570] sm:$0xff]
    %v613 = vld [vmem:[#allocation5 + $0x578] sm:$0xff]
    %v614 = vld [vmem:[#allocation5 + $0x580] sm:$0xff]
    %v615 = vld [vmem:[#allocation5 + $0x588] sm:$0xff]
    %v616 = vld [vmem:[#allocation5 + $0x590] sm:$0xff]
    %v617 = vld [vmem:[#allocation5 + $0x598] sm:$0xff]
    %v618 = vld [vmem:[#allocation5 + $0x5a0] sm:$0xff]
    %v619 = vld [vmem:[#allocation5 + $0x5a8] sm:$0xff]
    %v620 = vld [vmem:[#allocation5 + $0x5b0] sm:$0xff]
    %v621 = vld [vmem:[#allocation5 + $0x5b8] sm:$0xff]
    %v622 = vld [vmem:[#allocation5 + $0x5c0] sm:$0xff]
    %v623 = vld [vmem:[#allocation5 + $0x5c8] sm:$0xff]
    %v624 = vld [vmem:[#allocation5 + $0x5d0] sm:$0xff]
    %v625 = vld [vmem:[#allocation5 + $0x5d8] sm:$0xff]
    %v626 = vld [vmem:[#allocation5 + $0x5e0] sm:$0xff]
    %v627 = vld [vmem:[#allocation5 + $0x5e8] sm:$0xff]
    %v628 = vld [vmem:[#allocation5 + $0x5f0] sm:$0xff]
    %v629 = vld [vmem:[#allocation5 + $0x5f8] sm:$0xff]
    %v630 = vld [vmem:[#allocation5 + $0x600] sm:$0xff]
    %v631 = vld [vmem:[#allocation5 + $0x608] sm:$0xff]
    %v632 = vld [vmem:[#allocation5 + $0x610] sm:$0xff]
    %v633 = vld [vmem:[#allocation5 + $0x618] sm:$0xff]
    %v634 = vld [vmem:[#allocation5 + $0x620] sm:$0xff]
    %v635 = vld [vmem:[#allocation5 + $0x628] sm:$0xff]
    %v636 = vld [vmem:[#allocation5 + $0x630] sm:$0xff]
    %v637 = vld [vmem:[#allocation5 + $0x638] sm:$0xff]
    %v638 = vld [vmem:[#allocation5 + $0x640] sm:$0xff]
    %v639 = vld [vmem:[#allocation5 + $0x648] sm:$0xff]
    %v640 = vld [vmem:[#allocation5 + $0x650] sm:$0xff]
    %v641 = vld [vmem:[#allocation5 + $0x658] sm:$0xff]
    %v642 = vld [vmem:[#allocation5 + $0x660] sm:$0xff]
    %v643 = vld [vmem:[#allocation5 + $0x668] sm:$0xff]
    %v644 = vld [vmem:[#allocation5 + $0x670] sm:$0xff]
    %v645 = vld [vmem:[#allocation5 + $0x678] sm:$0xff]
    %v646 = vld [vmem:[#allocation5 + $0x680] sm:$0xff]
    %v647 = vld [vmem:[#allocation5 + $0x688] sm:$0xff]
    %v648 = vld [vmem:[#allocation5 + $0x690] sm:$0xff]
    %v649 = vld [vmem:[#allocation5 + $0x698] sm:$0xff]
    %v650 = vld [vmem:[#allocation5 + $0x6a0] sm:$0xff]
    %v651 = vld [vmem:[#allocation5 + $0x6a8] sm:$0xff]
    %v652 = vld [vmem:[#allocation5 + $0x6b0] sm:$0xff]
    %v653 = vld [vmem:[#allocation5 + $0x6b8] sm:$0xff]
    %v654 = vld [vmem:[#allocation5 + $0x6c0] sm:$0xff]
    %v655 = vld [vmem:[#allocation5 + $0x6c8] sm:$0xff]
    %v656 = vld [vmem:[#allocation5 + $0x6d0] sm:$0xff]
    %v657 = vld [vmem:[#allocation5 + $0x6d8] sm:$0xff]
    %v658 = vld [vmem:[#allocation5 + $0x6e0] sm:$0xff]
    %v659 = vld [vmem:[#allocation5 + $0x6e8] sm:$0xff]
    %v660 = vld [vmem:[#allocation5 + $0x6f0] sm:$0xff]
    %v661 = vld [vmem:[#allocation5 + $0x6f8] sm:$0xff]
    %v662 = vld [vmem:[#allocation5 + $0x700] sm:$0xff]
    %v663 = vld [vmem:[#allocation5 + $0x708] sm:$0xff]
    %v664 = vld [vmem:[#allocation5 + $0x710] sm:$0xff]
    %v665 = vld [vmem:[#allocation5 + $0x718] sm:$0xff]
    %v666 = vld [vmem:[#allocation5 + $0x720] sm:$0xff]
    %v667 = vld [vmem:[#allocation5 + $0x728] sm:$0xff]
    %v668 = vld [vmem:[#allocation5 + $0x730] sm:$0xff]
    %v669 = vld [vmem:[#allocation5 + $0x738] sm:$0xff]
    %v670 = vld [vmem:[#allocation5 + $0x740] sm:$0xff]
    %v671 = vld [vmem:[#allocation5 + $0x748] sm:$0xff]
    %v672 = vld [vmem:[#allocation5 + $0x750] sm:$0xff]
    %v673 = vld [vmem:[#allocation5 + $0x758] sm:$0xff]
    %v674 = vld [vmem:[#allocation5 + $0x760] sm:$0xff]
    %v675 = vld [vmem:[#allocation5 + $0x768] sm:$0xff]
    %v676 = vld [vmem:[#allocation5 + $0x770] sm:$0xff]
    %v677 = vld [vmem:[#allocation5 + $0x778] sm:$0xff]
    %v678 = vld [vmem:[#allocation5 + $0x780] sm:$0xff]
    %v679 = vld [vmem:[#allocation5 + $0x788] sm:$0xff]
    %v680 = vld [vmem:[#allocation5 + $0x790] sm:$0xff]
    %v681 = vld [vmem:[#allocation5 + $0x798] sm:$0xff]
    %v682 = vld [vmem:[#allocation5 + $0x7a0] sm:$0xff]
    %v683 = vld [vmem:[#allocation5 + $0x7a8] sm:$0xff]
    %v684 = vld [vmem:[#allocation5 + $0x7b0] sm:$0xff]
    %v685 = vld [vmem:[#allocation5 + $0x7b8] sm:$0xff]
    %v686 = vld [vmem:[#allocation5 + $0x7c0] sm:$0xff]
    %v687 = vld [vmem:[#allocation5 + $0x7c8] sm:$0xff]
    %v688 = vld [vmem:[#allocation5 + $0x7d0] sm:$0xff]
    %v689 = vld [vmem:[#allocation5 + $0x7d8] sm:$0xff]
    %v690 = vld [vmem:[#allocation5 + $0x7e0] sm:$0xff]
    %v691 = vld [vmem:[#allocation5 + $0x7e8] sm:$0xff]
    %v692 = vld [vmem:[#allocation5 + $0x7f0] sm:$0xff]
    %v693 = vld [vmem:[#allocation5 + $0x7f8] sm:$0xff]
    %v694 = vpack.c.bf16 %v442, %v438
    %v695 = vpack.c.bf16 %v443, %v439
    %v696 = vpack.c.bf16 %v444, %v440
    %v697 = vpack.c.bf16 %v445, %v441
    %v698 = vpack.c.bf16 %v450, %v446
    %v699 = vpack.c.bf16 %v451, %v447
    %v700 = vpack.c.bf16 %v452, %v448
    %v701 = vpack.c.bf16 %v453, %v449
    %v702 = vpack.c.bf16 %v458, %v454
    %v703 = vpack.c.bf16 %v459, %v455
    %v704 = vpack.c.bf16 %v460, %v456
    %v705 = vpack.c.bf16 %v461, %v457
    %v706 = vpack.c.bf16 %v466, %v462
    %v707 = vpack.c.bf16 %v467, %v463
    %v708 = vpack.c.bf16 %v468, %v464
    %v709 = vpack.c.bf16 %v469, %v465
    %v710 = vpack.c.bf16 %v474, %v470
    %v711 = vpack.c.bf16 %v475, %v471
    %v712 = vpack.c.bf16 %v476, %v472
    %v713 = vpack.c.bf16 %v477, %v473
    %v714 = vpack.c.bf16 %v482, %v478
    %v715 = vpack.c.bf16 %v483, %v479
    %v716 = vpack.c.bf16 %v484, %v480
    %v717 = vpack.c.bf16 %v485, %v481
    %v718 = vpack.c.bf16 %v490, %v486
    %v719 = vpack.c.bf16 %v491, %v487
    %v720 = vpack.c.bf16 %v492, %v488
    %v721 = vpack.c.bf16 %v493, %v489
    %v722 = vpack.c.bf16 %v498, %v494
    %v723 = vpack.c.bf16 %v499, %v495
    %v724 = vpack.c.bf16 %v500, %v496
    %v725 = vpack.c.bf16 %v501, %v497
    %v726 = vpack.c.bf16 %v506, %v502
    %v727 = vpack.c.bf16 %v507, %v503
    %v728 = vpack.c.bf16 %v508, %v504
    %v729 = vpack.c.bf16 %v509, %v505
    %v730 = vpack.c.bf16 %v514, %v510
    %v731 = vpack.c.bf16 %v515, %v511
    %v732 = vpack.c.bf16 %v516, %v512
    %v733 = vpack.c.bf16 %v517, %v513
    %v734 = vpack.c.bf16 %v522, %v518
    %v735 = vpack.c.bf16 %v523, %v519
    %v736 = vpack.c.bf16 %v524, %v520
    %v737 = vpack.c.bf16 %v525, %v521
    %v738 = vpack.c.bf16 %v530, %v526
    %v739 = vpack.c.bf16 %v531, %v527
    %v740 = vpack.c.bf16 %v532, %v528
    %v741 = vpack.c.bf16 %v533, %v529
    %v742 = vpack.c.bf16 %v538, %v534
    %v743 = vpack.c.bf16 %v539, %v535
    %v744 = vpack.c.bf16 %v540, %v536
    %v745 = vpack.c.bf16 %v541, %v537
    %v746 = vpack.c.bf16 %v546, %v542
    %v747 = vpack.c.bf16 %v547, %v543
    %v748 = vpack.c.bf16 %v548, %v544
    %v749 = vpack.c.bf16 %v549, %v545
    %v750 = vpack.c.bf16 %v554, %v550
    %v751 = vpack.c.bf16 %v555, %v551
    %v752 = vpack.c.bf16 %v556, %v552
    %v753 = vpack.c.bf16 %v557, %v553
    %v754 = vpack.c.bf16 %v562, %v558
    %v755 = vpack.c.bf16 %v563, %v559
    %v756 = vpack.c.bf16 %v564, %v560
    %v757 = vpack.c.bf16 %v565, %v561
    %v758 = vpack.c.bf16 %v570, %v566
    %v759 = vpack.c.bf16 %v571, %v567
    %v760 = vpack.c.bf16 %v572, %v568
    %v761 = vpack.c.bf16 %v573, %v569
    %v762 = vpack.c.bf16 %v578, %v574
    %v763 = vpack.c.bf16 %v579, %v575
    %v764 = vpack.c.bf16 %v580, %v576
    %v765 = vpack.c.bf16 %v581, %v577
    %v766 = vpack.c.bf16 %v586, %v582
    %v767 = vpack.c.bf16 %v587, %v583
    %v768 = vpack.c.bf16 %v588, %v584
    %v769 = vpack.c.bf16 %v589, %v585
    %v770 = vpack.c.bf16 %v594, %v590
    %v771 = vpack.c.bf16 %v595, %v591
    %v772 = vpack.c.bf16 %v596, %v592
    %v773 = vpack.c.bf16 %v597, %v593
    %v774 = vpack.c.bf16 %v602, %v598
    %v775 = vpack.c.bf16 %v603, %v599
    %v776 = vpack.c.bf16 %v604, %v600
    %v777 = vpack.c.bf16 %v605, %v601
    %v778 = vpack.c.bf16 %v610, %v606
    %v779 = vpack.c.bf16 %v611, %v607
    %v780 = vpack.c.bf16 %v612, %v608
    %v781 = vpack.c.bf16 %v613, %v609
    %v782 = vpack.c.bf16 %v618, %v614
    %v783 = vpack.c.bf16 %v619, %v615
    %v784 = vpack.c.bf16 %v620, %v616
    %v785 = vpack.c.bf16 %v621, %v617
    %v786 = vpack.c.bf16 %v626, %v622
    %v787 = vpack.c.bf16 %v627, %v623
    %v788 = vpack.c.bf16 %v628, %v624
    %v789 = vpack.c.bf16 %v629, %v625
    %v790 = vpack.c.bf16 %v634, %v630
    %v791 = vpack.c.bf16 %v635, %v631
    %v792 = vpack.c.bf16 %v636, %v632
    %v793 = vpack.c.bf16 %v637, %v633
    %v794 = vpack.c.bf16 %v642, %v638
    %v795 = vpack.c.bf16 %v643, %v639
    %v796 = vpack.c.bf16 %v644, %v640
    %v797 = vpack.c.bf16 %v645, %v641
    %v798 = vpack.c.bf16 %v650, %v646
    %v799 = vpack.c.bf16 %v651, %v647
    %v800 = vpack.c.bf16 %v652, %v648
    %v801 = vpack.c.bf16 %v653, %v649
    %v802 = vpack.c.bf16 %v658, %v654
    %v803 = vpack.c.bf16 %v659, %v655
    %v804 = vpack.c.bf16 %v660, %v656
    %v805 = vpack.c.bf16 %v661, %v657
    %v806 = vpack.c.bf16 %v666, %v662
    %v807 = vpack.c.bf16 %v667, %v663
    %v808 = vpack.c.bf16 %v668, %v664
    %v809 = vpack.c.bf16 %v669, %v665
    %v810 = vpack.c.bf16 %v674, %v670
    %v811 = vpack.c.bf16 %v675, %v671
    %v812 = vpack.c.bf16 %v676, %v672
    %v813 = vpack.c.bf16 %v677, %v673
    %v814 = vpack.c.bf16 %v682, %v678
    %v815 = vpack.c.bf16 %v683, %v679
    %v816 = vpack.c.bf16 %v684, %v680
    %v817 = vpack.c.bf16 %v685, %v681
    %v818 = vpack.c.bf16 %v690, %v686
    %v819 = vpack.c.bf16 %v691, %v687
    %v820 = vpack.c.bf16 %v692, %v688
    %v821 = vpack.c.bf16 %v693, %v689
    %v822 = vld [vmem:[#allocation7] sm:$0xf]
    %v824 = vlaneseq
    %v825 = vshrl.u32 %v824, 7
    %v826 = vsub.s32 0, %v825
    %v827 = vrot.slane %v822, %v826
    %v828 = vlaneseq
    %v829 = vshrl.u32 %v828, 7
    %v830 = vsub.s32 1, %v829
    %v831 = vrot.slane %v822, %v830
    %v832 = vlaneseq
    %v833 = vshrl.u32 %v832, 7
    %v834 = vsub.s32 2, %v833
    %v835 = vrot.slane %v822, %v834
    %v836 = vlaneseq
    %v837 = vshrl.u32 %v836, 7
    %v838 = vsub.s32 3, %v837
    %v839 = vrot.slane %v822, %v838
    %844 = vmatprep.subr.bf16.mxu0 %v723
    %845 = vmatpush1.bf16.msra.mxu0 %v722
    %846 = vmatprep.subr.bf16.mxu0 %v719
    %847 = vmatpush1.bf16.msra.mxu0 %v718
    %848 = vmatprep.subr.bf16.mxu0 %v715
    %849 = vmatpush1.bf16.msra.mxu0 %v714
    %850 = vmatprep.subr.bf16.mxu0 %v711
    %851 = vmatpush1.bf16.msra.mxu0 %v710
    %852 = vmatprep.subr.bf16.mxu0 %v707
    %853 = vmatpush1.bf16.msra.mxu0 %v706
    %854 = vmatprep.subr.bf16.mxu0 %v703
    %855 = vmatpush1.bf16.msra.mxu0 %v702
    %856 = vmatprep.subr.bf16.mxu0 %v699
    %857 = vmatpush1.bf16.msra.mxu0 %v698
    %858 = vmatprep.subr.bf16.mxu0 %v695
    %859 = vmatpush1.bf16.msra.mxu0 %v694
    %860 = vmatprep.subr.bf16.mxu0 %v755
    %861 = vmatpush2.bf16.msra.mxu0 %v754
    %862 = vmatprep.subr.bf16.mxu0 %v751
    %863 = vmatpush2.bf16.msra.mxu0 %v750
    %864 = vmatprep.subr.bf16.mxu0 %v747
    %865 = vmatpush2.bf16.msra.mxu0 %v746
    %866 = vmatprep.subr.bf16.mxu0 %v743
    %867 = vmatpush2.bf16.msra.mxu0 %v742
    %868 = vmatprep.subr.bf16.mxu0 %v739
    %869 = vmatpush2.bf16.msra.mxu0 %v738
    %870 = vmatprep.subr.bf16.mxu0 %v735
    %871 = vmatpush2.bf16.msra.mxu0 %v734
    %872 = vmatprep.subr.bf16.mxu0 %v731
    %873 = vmatpush2.bf16.msra.mxu0 %v730
    %874 = vmatprep.subr.bf16.mxu0 %v727
    %875 = vmatpush2.bf16.msra.mxu0 %v726
    %876 = vmatprep.mubr.bf16.mxu0 %v311
    %877 = vmatmul.mubr.bf16.gmra.mxu0 %v310
    %v878 = vpop.f32.mrf.mxu0
    %v879 = vadd.f32 %v827, %v878
    %v880 = vpop.f32.mrf.mxu0
    %v881 = vadd.f32 %v831, %v880
    %v882 = vpop.f32.mrf.mxu0
    %v883 = vadd.f32 %v827, %v882
    %v884 = vpop.f32.mrf.mxu0
    %v885 = vadd.f32 %v831, %v884
    %886 = vmatprep.mubr.bf16.mxu0 %v315
    %887 = vmatmul.mubr.bf16.gmra.mxu0 %v314
    %v888 = vpop.f32.mrf.mxu0
    %v889 = vadd.f32 %v827, %v888
    %v890 = vpop.f32.mrf.mxu0
    %v891 = vadd.f32 %v831, %v890
    %v892 = vpop.f32.mrf.mxu0
    %v893 = vadd.f32 %v827, %v892
    %v894 = vpop.f32.mrf.mxu0
    %v895 = vadd.f32 %v831, %v894
    %896 = vmatprep.mubr.bf16.mxu0 %v319
    %897 = vmatmul.mubr.bf16.gmra.mxu0 %v318
    %v898 = vpop.f32.mrf.mxu0
    %v899 = vadd.f32 %v827, %v898
    %v900 = vpop.f32.mrf.mxu0
    %v901 = vadd.f32 %v831, %v900
    %v902 = vpop.f32.mrf.mxu0
    %v903 = vadd.f32 %v827, %v902
    %v904 = vpop.f32.mrf.mxu0
    %v905 = vadd.f32 %v831, %v904
    %906 = vmatprep.mubr.bf16.mxu0 %v323
    %907 = vmatmul.mubr.bf16.gmra.mxu0 %v322
    %v908 = vpop.f32.mrf.mxu0
    %v909 = vadd.f32 %v827, %v908
    %v910 = vpop.f32.mrf.mxu0
    %v911 = vadd.f32 %v831, %v910
    %v912 = vpop.f32.mrf.mxu0
    %v913 = vadd.f32 %v827, %v912
    %v914 = vpop.f32.mrf.mxu0
    %v915 = vadd.f32 %v831, %v914
    %916 = vmatprep.mubr.bf16.mxu0 %v327
    %917 = vmatmul.mubr.bf16.gmra.mxu0 %v326
    %v918 = vpop.f32.mrf.mxu0
    %v919 = vadd.f32 %v827, %v918
    %v920 = vpop.f32.mrf.mxu0
    %v921 = vadd.f32 %v831, %v920
    %v922 = vpop.f32.mrf.mxu0
    %v923 = vadd.f32 %v827, %v922
    %v924 = vpop.f32.mrf.mxu0
    %v925 = vadd.f32 %v831, %v924
    %926 = vmatprep.mubr.bf16.mxu0 %v331
    %927 = vmatmul.mubr.bf16.gmra.mxu0 %v330
    %v928 = vpop.f32.mrf.mxu0
    %v929 = vadd.f32 %v827, %v928
    %v930 = vpop.f32.mrf.mxu0
    %v931 = vadd.f32 %v831, %v930
    %v932 = vpop.f32.mrf.mxu0
    %v933 = vadd.f32 %v827, %v932
    %v934 = vpop.f32.mrf.mxu0
    %v935 = vadd.f32 %v831, %v934
    %936 = vmatprep.mubr.bf16.mxu0 %v335
    %937 = vmatmul.mubr.bf16.gmra.mxu0 %v334
    %v938 = vpop.f32.mrf.mxu0
    %v939 = vadd.f32 %v827, %v938
    %v940 = vpop.f32.mrf.mxu0
    %v941 = vadd.f32 %v831, %v940
    %v942 = vpop.f32.mrf.mxu0
    %v943 = vadd.f32 %v827, %v942
    %v944 = vpop.f32.mrf.mxu0
    %v945 = vadd.f32 %v831, %v944
    %946 = vmatprep.mubr.bf16.mxu0 %v339
    %947 = vmatmul.mubr.bf16.gmra.mxu0 %v338
    %v948 = vpop.f32.mrf.mxu0
    %v949 = vadd.f32 %v827, %v948
    %v950 = vpop.f32.mrf.mxu0
    %v951 = vadd.f32 %v831, %v950
    %v952 = vpop.f32.mrf.mxu0
    %v953 = vadd.f32 %v827, %v952
    %v954 = vpop.f32.mrf.mxu0
    %v955 = vadd.f32 %v831, %v954
    %956 = vmatprep.mubr.bf16.mxu0 %v343
    %957 = vmatmul.mubr.bf16.gmra.mxu0 %v342
    %v958 = vpop.f32.mrf.mxu0
    %v959 = vadd.f32 %v827, %v958
    %v960 = vpop.f32.mrf.mxu0
    %v961 = vadd.f32 %v831, %v960
    %v962 = vpop.f32.mrf.mxu0
    %v963 = vadd.f32 %v827, %v962
    %v964 = vpop.f32.mrf.mxu0
    %v965 = vadd.f32 %v831, %v964
    %966 = vmatprep.mubr.bf16.mxu0 %v347
    %967 = vmatmul.mubr.bf16.gmra.mxu0 %v346
    %v968 = vpop.f32.mrf.mxu0
    %v969 = vadd.f32 %v827, %v968
    %v970 = vpop.f32.mrf.mxu0
    %v971 = vadd.f32 %v831, %v970
    %v972 = vpop.f32.mrf.mxu0
    %v973 = vadd.f32 %v827, %v972
    %v974 = vpop.f32.mrf.mxu0
    %v975 = vadd.f32 %v831, %v974
    %976 = vmatprep.mubr.bf16.mxu0 %v351
    %977 = vmatmul.mubr.bf16.gmra.mxu0 %v350
    %v978 = vpop.f32.mrf.mxu0
    %v979 = vadd.f32 %v827, %v978
    %v980 = vpop.f32.mrf.mxu0
    %v981 = vadd.f32 %v831, %v980
    %v982 = vpop.f32.mrf.mxu0
    %v983 = vadd.f32 %v827, %v982
    %v984 = vpop.f32.mrf.mxu0
    %v985 = vadd.f32 %v831, %v984
    %986 = vmatprep.mubr.bf16.mxu0 %v355
    %987 = vmatmul.mubr.bf16.gmra.mxu0 %v354
    %v988 = vpop.f32.mrf.mxu0
    %v989 = vadd.f32 %v827, %v988
    %v990 = vpop.f32.mrf.mxu0
    %v991 = vadd.f32 %v831, %v990
    %v992 = vpop.f32.mrf.mxu0
    %v993 = vadd.f32 %v827, %v992
    %v994 = vpop.f32.mrf.mxu0
    %v995 = vadd.f32 %v831, %v994
    %996 = vmatprep.mubr.bf16.mxu0 %v359
    %997 = vmatmul.mubr.bf16.gmra.mxu0 %v358
    %v998 = vpop.f32.mrf.mxu0
    %v999 = vadd.f32 %v827, %v998
    %v1000 = vpop.f32.mrf.mxu0
    %v1001 = vadd.f32 %v831, %v1000
    %v1002 = vpop.f32.mrf.mxu0
    %v1003 = vadd.f32 %v827, %v1002
    %v1004 = vpop.f32.mrf.mxu0
    %v1005 = vadd.f32 %v831, %v1004
    %1006 = vmatprep.mubr.bf16.mxu0 %v363
    %1007 = vmatmul.mubr.bf16.gmra.mxu0 %v362
    %v1008 = vpop.f32.mrf.mxu0
    %v1009 = vadd.f32 %v827, %v1008
    %v1010 = vpop.f32.mrf.mxu0
    %v1011 = vadd.f32 %v831, %v1010
    %v1012 = vpop.f32.mrf.mxu0
    %v1013 = vadd.f32 %v827, %v1012
    %v1014 = vpop.f32.mrf.mxu0
    %v1015 = vadd.f32 %v831, %v1014
    %1016 = vmatprep.mubr.bf16.mxu0 %v367
    %1017 = vmatmul.mubr.bf16.gmra.mxu0 %v366
    %v1018 = vpop.f32.mrf.mxu0
    %v1019 = vadd.f32 %v827, %v1018
    %v1020 = vpop.f32.mrf.mxu0
    %v1021 = vadd.f32 %v831, %v1020
    %v1022 = vpop.f32.mrf.mxu0
    %v1023 = vadd.f32 %v827, %v1022
    %v1024 = vpop.f32.mrf.mxu0
    %v1025 = vadd.f32 %v831, %v1024
    %1026 = vmatprep.mubr.bf16.mxu0 %v371
    %1027 = vmatmul.mubr.bf16.gmra.mxu0 %v370
    %v1028 = vpop.f32.mrf.mxu0
    %v1029 = vadd.f32 %v827, %v1028
    %v1030 = vpop.f32.mrf.mxu0
    %v1031 = vadd.f32 %v831, %v1030
    %v1032 = vpop.f32.mrf.mxu0
    %v1033 = vadd.f32 %v827, %v1032
    %v1034 = vpop.f32.mrf.mxu0
    %v1035 = vadd.f32 %v831, %v1034
    %1036 = vmatprep.mubr.bf16.mxu0 %v375
    %1037 = vmatmul.mubr.bf16.gmra.mxu0 %v374
    %v1038 = vpop.f32.mrf.mxu0
    %v1039 = vadd.f32 %v827, %v1038
    %v1040 = vpop.f32.mrf.mxu0
    %v1041 = vadd.f32 %v831, %v1040
    %v1042 = vpop.f32.mrf.mxu0
    %v1043 = vadd.f32 %v827, %v1042
    %v1044 = vpop.f32.mrf.mxu0
    %v1045 = vadd.f32 %v831, %v1044
    %1046 = vmatprep.mubr.bf16.mxu0 %v379
    %1047 = vmatmul.mubr.bf16.gmra.mxu0 %v378
    %v1048 = vpop.f32.mrf.mxu0
    %v1049 = vadd.f32 %v827, %v1048
    %v1050 = vpop.f32.mrf.mxu0
    %v1051 = vadd.f32 %v831, %v1050
    %v1052 = vpop.f32.mrf.mxu0
    %v1053 = vadd.f32 %v827, %v1052
    %v1054 = vpop.f32.mrf.mxu0
    %v1055 = vadd.f32 %v831, %v1054
    %1056 = vmatprep.mubr.bf16.mxu0 %v383
    %1057 = vmatmul.mubr.bf16.gmra.mxu0 %v382
    %v1058 = vpop.f32.mrf.mxu0
    %v1059 = vadd.f32 %v827, %v1058
    %v1060 = vpop.f32.mrf.mxu0
    %v1061 = vadd.f32 %v831, %v1060
    %v1062 = vpop.f32.mrf.mxu0
    %v1063 = vadd.f32 %v827, %v1062
    %v1064 = vpop.f32.mrf.mxu0
    %v1065 = vadd.f32 %v831, %v1064
    %1066 = vmatprep.mubr.bf16.mxu0 %v387
    %1067 = vmatmul.mubr.bf16.gmra.mxu0 %v386
    %v1068 = vpop.f32.mrf.mxu0
    %v1069 = vadd.f32 %v827, %v1068
    %v1070 = vpop.f32.mrf.mxu0
    %v1071 = vadd.f32 %v831, %v1070
    %v1072 = vpop.f32.mrf.mxu0
    %v1073 = vadd.f32 %v827, %v1072
    %v1074 = vpop.f32.mrf.mxu0
    %v1075 = vadd.f32 %v831, %v1074
    %1076 = vmatprep.mubr.bf16.mxu0 %v391
    %1077 = vmatmul.mubr.bf16.gmra.mxu0 %v390
    %v1078 = vpop.f32.mrf.mxu0
    %v1079 = vadd.f32 %v827, %v1078
    %v1080 = vpop.f32.mrf.mxu0
    %v1081 = vadd.f32 %v831, %v1080
    %v1082 = vpop.f32.mrf.mxu0
    %v1083 = vadd.f32 %v827, %v1082
    %v1084 = vpop.f32.mrf.mxu0
    %v1085 = vadd.f32 %v831, %v1084
    %1086 = vmatprep.mubr.bf16.mxu0 %v395
    %1087 = vmatmul.mubr.bf16.gmra.mxu0 %v394
    %v1088 = vpop.f32.mrf.mxu0
    %v1089 = vadd.f32 %v827, %v1088
    %v1090 = vpop.f32.mrf.mxu0
    %v1091 = vadd.f32 %v831, %v1090
    %v1092 = vpop.f32.mrf.mxu0
    %v1093 = vadd.f32 %v827, %v1092
    %v1094 = vpop.f32.mrf.mxu0
    %v1095 = vadd.f32 %v831, %v1094
    %1096 = vmatprep.mubr.bf16.mxu0 %v399
    %1097 = vmatmul.mubr.bf16.gmra.mxu0 %v398
    %v1098 = vpop.f32.mrf.mxu0
    %v1099 = vadd.f32 %v827, %v1098
    %v1100 = vpop.f32.mrf.mxu0
    %v1101 = vadd.f32 %v831, %v1100
    %v1102 = vpop.f32.mrf.mxu0
    %v1103 = vadd.f32 %v827, %v1102
    %v1104 = vpop.f32.mrf.mxu0
    %v1105 = vadd.f32 %v831, %v1104
    %1106 = vmatprep.mubr.bf16.mxu0 %v403
    %1107 = vmatmul.mubr.bf16.gmra.mxu0 %v402
    %v1108 = vpop.f32.mrf.mxu0
    %v1109 = vadd.f32 %v827, %v1108
    %v1110 = vpop.f32.mrf.mxu0
    %v1111 = vadd.f32 %v831, %v1110
    %v1112 = vpop.f32.mrf.mxu0
    %v1113 = vadd.f32 %v827, %v1112
    %v1114 = vpop.f32.mrf.mxu0
    %v1115 = vadd.f32 %v831, %v1114
    %1116 = vmatprep.mubr.bf16.mxu0 %v407
    %1117 = vmatmul.mubr.bf16.gmra.mxu0 %v406
    %v1118 = vpop.f32.mrf.mxu0
    %v1119 = vadd.f32 %v827, %v1118
    %v1120 = vpop.f32.mrf.mxu0
    %v1121 = vadd.f32 %v831, %v1120
    %v1122 = vpop.f32.mrf.mxu0
    %v1123 = vadd.f32 %v827, %v1122
    %v1124 = vpop.f32.mrf.mxu0
    %v1125 = vadd.f32 %v831, %v1124
    %1126 = vmatprep.mubr.bf16.mxu0 %v411
    %1127 = vmatmul.mubr.bf16.gmra.mxu0 %v410
    %v1128 = vpop.f32.mrf.mxu0
    %v1129 = vadd.f32 %v827, %v1128
    %v1130 = vpop.f32.mrf.mxu0
    %v1131 = vadd.f32 %v831, %v1130
    %v1132 = vpop.f32.mrf.mxu0
    %v1133 = vadd.f32 %v827, %v1132
    %v1134 = vpop.f32.mrf.mxu0
    %v1135 = vadd.f32 %v831, %v1134
    %1136 = vmatprep.mubr.bf16.mxu0 %v415
    %1137 = vmatmul.mubr.bf16.gmra.mxu0 %v414
    %v1138 = vpop.f32.mrf.mxu0
    %v1139 = vadd.f32 %v827, %v1138
    %v1140 = vpop.f32.mrf.mxu0
    %v1141 = vadd.f32 %v831, %v1140
    %v1142 = vpop.f32.mrf.mxu0
    %v1143 = vadd.f32 %v827, %v1142
    %v1144 = vpop.f32.mrf.mxu0
    %v1145 = vadd.f32 %v831, %v1144
    %1146 = vmatprep.mubr.bf16.mxu0 %v419
    %1147 = vmatmul.mubr.bf16.gmra.mxu0 %v418
    %v1148 = vpop.f32.mrf.mxu0
    %v1149 = vadd.f32 %v827, %v1148
    %v1150 = vpop.f32.mrf.mxu0
    %v1151 = vadd.f32 %v831, %v1150
    %v1152 = vpop.f32.mrf.mxu0
    %v1153 = vadd.f32 %v827, %v1152
    %v1154 = vpop.f32.mrf.mxu0
    %v1155 = vadd.f32 %v831, %v1154
    %1156 = vmatprep.mubr.bf16.mxu0 %v423
    %1157 = vmatmul.mubr.bf16.gmra.mxu0 %v422
    %v1158 = vpop.f32.mrf.mxu0
    %v1159 = vadd.f32 %v827, %v1158
    %v1160 = vpop.f32.mrf.mxu0
    %v1161 = vadd.f32 %v831, %v1160
    %v1162 = vpop.f32.mrf.mxu0
    %v1163 = vadd.f32 %v827, %v1162
    %v1164 = vpop.f32.mrf.mxu0
    %v1165 = vadd.f32 %v831, %v1164
    %1166 = vmatprep.mubr.bf16.mxu0 %v427
    %1167 = vmatmul.mubr.bf16.gmra.mxu0 %v426
    %v1168 = vpop.f32.mrf.mxu0
    %v1169 = vadd.f32 %v827, %v1168
    %v1170 = vpop.f32.mrf.mxu0
    %v1171 = vadd.f32 %v831, %v1170
    %v1172 = vpop.f32.mrf.mxu0
    %v1173 = vadd.f32 %v827, %v1172
    %v1174 = vpop.f32.mrf.mxu0
    %v1175 = vadd.f32 %v831, %v1174
    %1176 = vmatprep.mubr.bf16.mxu0 %v431
    %1177 = vmatmul.mubr.bf16.gmra.mxu0 %v430
    %v1178 = vpop.f32.mrf.mxu0
    %v1179 = vadd.f32 %v827, %v1178
    %v1180 = vpop.f32.mrf.mxu0
    %v1181 = vadd.f32 %v831, %v1180
    %v1182 = vpop.f32.mrf.mxu0
    %v1183 = vadd.f32 %v827, %v1182
    %v1184 = vpop.f32.mrf.mxu0
    %v1185 = vadd.f32 %v831, %v1184
    %1186 = vmatprep.mubr.bf16.mxu0 %v435
    %1187 = vmatmul.mubr.bf16.gmra.mxu0 %v434
    %v1188 = vpop.f32.mrf.mxu0
    %v1189 = vadd.f32 %v827, %v1188
    %v1190 = vpop.f32.mrf.mxu0
    %v1191 = vadd.f32 %v831, %v1190
    %v1192 = vpop.f32.mrf.mxu0
    %v1193 = vadd.f32 %v827, %v1192
    %v1194 = vpop.f32.mrf.mxu0
    %v1195 = vadd.f32 %v831, %v1194
    %1196 = vdwg.mxu0
    %1197 = vmatprep.subr.bf16.mxu0 %v787
    %1198 = vmatpush1.bf16.msra.mxu0 %v786
    %1199 = vmatprep.subr.bf16.mxu0 %v783
    %1200 = vmatpush1.bf16.msra.mxu0 %v782
    %1201 = vmatprep.subr.bf16.mxu0 %v779
    %1202 = vmatpush1.bf16.msra.mxu0 %v778
    %1203 = vmatprep.subr.bf16.mxu0 %v775
    %1204 = vmatpush1.bf16.msra.mxu0 %v774
    %1205 = vmatprep.subr.bf16.mxu0 %v771
    %1206 = vmatpush1.bf16.msra.mxu0 %v770
    %1207 = vmatprep.subr.bf16.mxu0 %v767
    %1208 = vmatpush1.bf16.msra.mxu0 %v766
    %1209 = vmatprep.subr.bf16.mxu0 %v763
    %1210 = vmatpush1.bf16.msra.mxu0 %v762
    %1211 = vmatprep.subr.bf16.mxu0 %v759
    %1212 = vmatpush1.bf16.msra.mxu0 %v758
    %1213 = vmatprep.subr.bf16.mxu0 %v819
    %1214 = vmatpush2.bf16.msra.mxu0 %v818
    %1215 = vmatprep.subr.bf16.mxu0 %v815
    %1216 = vmatpush2.bf16.msra.mxu0 %v814
    %1217 = vmatprep.subr.bf16.mxu0 %v811
    %1218 = vmatpush2.bf16.msra.mxu0 %v810
    %1219 = vmatprep.subr.bf16.mxu0 %v807
    %1220 = vmatpush2.bf16.msra.mxu0 %v806
    %1221 = vmatprep.subr.bf16.mxu0 %v803
    %1222 = vmatpush2.bf16.msra.mxu0 %v802
    %1223 = vmatprep.subr.bf16.mxu0 %v799
    %1224 = vmatpush2.bf16.msra.mxu0 %v798
    %1225 = vmatprep.subr.bf16.mxu0 %v795
    %1226 = vmatpush2.bf16.msra.mxu0 %v794
    %1227 = vmatprep.subr.bf16.mxu0 %v791
    %1228 = vmatpush2.bf16.msra.mxu0 %v790
    %1229 = vmatprep.mubr.bf16.mxu0 %v313
    %1230 = vmatmul.mubr.bf16.gmra.mxu0 %v312
    %v1231 = vpop.f32.mrf.mxu0
    %v1232 = vadd.f32 %v879, %v1231
    %v1233 = vpop.f32.mrf.mxu0
    %v1234 = vadd.f32 %v881, %v1233
    %v1235 = vpop.f32.mrf.mxu0
    %v1236 = vadd.f32 %v883, %v1235
    %v1237 = vpop.f32.mrf.mxu0
    %v1238 = vadd.f32 %v885, %v1237
    %1239 = vmatprep.mubr.bf16.mxu0 %v317
    %1240 = vmatmul.mubr.bf16.gmra.mxu0 %v316
    %v1241 = vpop.f32.mrf.mxu0
    %v1242 = vadd.f32 %v889, %v1241
    %v1243 = vpop.f32.mrf.mxu0
    %v1244 = vadd.f32 %v891, %v1243
    %v1245 = vpop.f32.mrf.mxu0
    %v1246 = vadd.f32 %v893, %v1245
    %v1247 = vpop.f32.mrf.mxu0
    %v1248 = vadd.f32 %v895, %v1247
    %1249 = vmatprep.mubr.bf16.mxu0 %v321
    %1250 = vmatmul.mubr.bf16.gmra.mxu0 %v320
    %v1251 = vpop.f32.mrf.mxu0
    %v1252 = vadd.f32 %v899, %v1251
    %v1253 = vpop.f32.mrf.mxu0
    %v1254 = vadd.f32 %v901, %v1253
    %v1255 = vpop.f32.mrf.mxu0
    %v1256 = vadd.f32 %v903, %v1255
    %v1257 = vpop.f32.mrf.mxu0
    %v1258 = vadd.f32 %v905, %v1257
    %1259 = vmatprep.mubr.bf16.mxu0 %v325
    %1260 = vmatmul.mubr.bf16.gmra.mxu0 %v324
    %v1261 = vpop.f32.mrf.mxu0
    %v1262 = vadd.f32 %v909, %v1261
    %v1263 = vpop.f32.mrf.mxu0
    %v1264 = vadd.f32 %v911, %v1263
    %v1265 = vpop.f32.mrf.mxu0
    %v1266 = vadd.f32 %v913, %v1265
    %v1267 = vpop.f32.mrf.mxu0
    %v1268 = vadd.f32 %v915, %v1267
    %1269 = vmatprep.mubr.bf16.mxu0 %v329
    %1270 = vmatmul.mubr.bf16.gmra.mxu0 %v328
    %v1271 = vpop.f32.mrf.mxu0
    %v1272 = vadd.f32 %v919, %v1271
    %v1273 = vpop.f32.mrf.mxu0
    %v1274 = vadd.f32 %v921, %v1273
    %v1275 = vpop.f32.mrf.mxu0
    %v1276 = vadd.f32 %v923, %v1275
    %v1277 = vpop.f32.mrf.mxu0
    %v1278 = vadd.f32 %v925, %v1277
    %1279 = vmatprep.mubr.bf16.mxu0 %v333
    %1280 = vmatmul.mubr.bf16.gmra.mxu0 %v332
    %v1281 = vpop.f32.mrf.mxu0
    %v1282 = vadd.f32 %v929, %v1281
    %v1283 = vpop.f32.mrf.mxu0
    %v1284 = vadd.f32 %v931, %v1283
    %v1285 = vpop.f32.mrf.mxu0
    %v1286 = vadd.f32 %v933, %v1285
    %v1287 = vpop.f32.mrf.mxu0
    %v1288 = vadd.f32 %v935, %v1287
    %1289 = vmatprep.mubr.bf16.mxu0 %v337
    %1290 = vmatmul.mubr.bf16.gmra.mxu0 %v336
    %v1291 = vpop.f32.mrf.mxu0
    %v1292 = vadd.f32 %v939, %v1291
    %v1293 = vpop.f32.mrf.mxu0
    %v1294 = vadd.f32 %v941, %v1293
    %v1295 = vpop.f32.mrf.mxu0
    %v1296 = vadd.f32 %v943, %v1295
    %v1297 = vpop.f32.mrf.mxu0
    %v1298 = vadd.f32 %v945, %v1297
    %1299 = vmatprep.mubr.bf16.mxu0 %v341
    %1300 = vmatmul.mubr.bf16.gmra.mxu0 %v340
    %v1301 = vpop.f32.mrf.mxu0
    %v1302 = vadd.f32 %v949, %v1301
    %v1303 = vpop.f32.mrf.mxu0
    %v1304 = vadd.f32 %v951, %v1303
    %v1305 = vpop.f32.mrf.mxu0
    %v1306 = vadd.f32 %v953, %v1305
    %v1307 = vpop.f32.mrf.mxu0
    %v1308 = vadd.f32 %v955, %v1307
    %1309 = vmatprep.mubr.bf16.mxu0 %v345
    %1310 = vmatmul.mubr.bf16.gmra.mxu0 %v344
    %v1311 = vpop.f32.mrf.mxu0
    %v1312 = vadd.f32 %v959, %v1311
    %v1313 = vpop.f32.mrf.mxu0
    %v1314 = vadd.f32 %v961, %v1313
    %v1315 = vpop.f32.mrf.mxu0
    %v1316 = vadd.f32 %v963, %v1315
    %v1317 = vpop.f32.mrf.mxu0
    %v1318 = vadd.f32 %v965, %v1317
    %1319 = vmatprep.mubr.bf16.mxu0 %v349
    %1320 = vmatmul.mubr.bf16.gmra.mxu0 %v348
    %v1321 = vpop.f32.mrf.mxu0
    %v1322 = vadd.f32 %v969, %v1321
    %v1323 = vpop.f32.mrf.mxu0
    %v1324 = vadd.f32 %v971, %v1323
    %v1325 = vpop.f32.mrf.mxu0
    %v1326 = vadd.f32 %v973, %v1325
    %v1327 = vpop.f32.mrf.mxu0
    %v1328 = vadd.f32 %v975, %v1327
    %1329 = vmatprep.mubr.bf16.mxu0 %v353
    %1330 = vmatmul.mubr.bf16.gmra.mxu0 %v352
    %v1331 = vpop.f32.mrf.mxu0
    %v1332 = vadd.f32 %v979, %v1331
    %v1333 = vpop.f32.mrf.mxu0
    %v1334 = vadd.f32 %v981, %v1333
    %v1335 = vpop.f32.mrf.mxu0
    %v1336 = vadd.f32 %v983, %v1335
    %v1337 = vpop.f32.mrf.mxu0
    %v1338 = vadd.f32 %v985, %v1337
    %1339 = vmatprep.mubr.bf16.mxu0 %v357
    %1340 = vmatmul.mubr.bf16.gmra.mxu0 %v356
    %v1341 = vpop.f32.mrf.mxu0
    %v1342 = vadd.f32 %v989, %v1341
    %v1343 = vpop.f32.mrf.mxu0
    %v1344 = vadd.f32 %v991, %v1343
    %v1345 = vpop.f32.mrf.mxu0
    %v1346 = vadd.f32 %v993, %v1345
    %v1347 = vpop.f32.mrf.mxu0
    %v1348 = vadd.f32 %v995, %v1347
    %1349 = vmatprep.mubr.bf16.mxu0 %v361
    %1350 = vmatmul.mubr.bf16.gmra.mxu0 %v360
    %v1351 = vpop.f32.mrf.mxu0
    %v1352 = vadd.f32 %v999, %v1351
    %v1353 = vpop.f32.mrf.mxu0
    %v1354 = vadd.f32 %v1001, %v1353
    %v1355 = vpop.f32.mrf.mxu0
    %v1356 = vadd.f32 %v1003, %v1355
    %v1357 = vpop.f32.mrf.mxu0
    %v1358 = vadd.f32 %v1005, %v1357
    %1359 = vmatprep.mubr.bf16.mxu0 %v365
    %1360 = vmatmul.mubr.bf16.gmra.mxu0 %v364
    %v1361 = vpop.f32.mrf.mxu0
    %v1362 = vadd.f32 %v1009, %v1361
    %v1363 = vpop.f32.mrf.mxu0
    %v1364 = vadd.f32 %v1011, %v1363
    %v1365 = vpop.f32.mrf.mxu0
    %v1366 = vadd.f32 %v1013, %v1365
    %v1367 = vpop.f32.mrf.mxu0
    %v1368 = vadd.f32 %v1015, %v1367
    %1369 = vmatprep.mubr.bf16.mxu0 %v369
    %1370 = vmatmul.mubr.bf16.gmra.mxu0 %v368
    %v1371 = vpop.f32.mrf.mxu0
    %v1372 = vadd.f32 %v1019, %v1371
    %v1373 = vpop.f32.mrf.mxu0
    %v1374 = vadd.f32 %v1021, %v1373
    %v1375 = vpop.f32.mrf.mxu0
    %v1376 = vadd.f32 %v1023, %v1375
    %v1377 = vpop.f32.mrf.mxu0
    %v1378 = vadd.f32 %v1025, %v1377
    %1379 = vmatprep.mubr.bf16.mxu0 %v373
    %1380 = vmatmul.mubr.bf16.gmra.mxu0 %v372
    %v1381 = vpop.f32.mrf.mxu0
    %v1382 = vadd.f32 %v1029, %v1381
    %v1383 = vpop.f32.mrf.mxu0
    %v1384 = vadd.f32 %v1031, %v1383
    %v1385 = vpop.f32.mrf.mxu0
    %v1386 = vadd.f32 %v1033, %v1385
    %v1387 = vpop.f32.mrf.mxu0
    %v1388 = vadd.f32 %v1035, %v1387
    %1389 = vmatprep.mubr.bf16.mxu0 %v377
    %1390 = vmatmul.mubr.bf16.gmra.mxu0 %v376
    %v1391 = vpop.f32.mrf.mxu0
    %v1392 = vadd.f32 %v1039, %v1391
    %v1393 = vpop.f32.mrf.mxu0
    %v1394 = vadd.f32 %v1041, %v1393
    %v1395 = vpop.f32.mrf.mxu0
    %v1396 = vadd.f32 %v1043, %v1395
    %v1397 = vpop.f32.mrf.mxu0
    %v1398 = vadd.f32 %v1045, %v1397
    %1399 = vmatprep.mubr.bf16.mxu0 %v381
    %1400 = vmatmul.mubr.bf16.gmra.mxu0 %v380
    %v1401 = vpop.f32.mrf.mxu0
    %v1402 = vadd.f32 %v1049, %v1401
    %v1403 = vpop.f32.mrf.mxu0
    %v1404 = vadd.f32 %v1051, %v1403
    %v1405 = vpop.f32.mrf.mxu0
    %v1406 = vadd.f32 %v1053, %v1405
    %v1407 = vpop.f32.mrf.mxu0
    %v1408 = vadd.f32 %v1055, %v1407
    %1409 = vmatprep.mubr.bf16.mxu0 %v385
    %1410 = vmatmul.mubr.bf16.gmra.mxu0 %v384
    %v1411 = vpop.f32.mrf.mxu0
    %v1412 = vadd.f32 %v1059, %v1411
    %v1413 = vpop.f32.mrf.mxu0
    %v1414 = vadd.f32 %v1061, %v1413
    %v1415 = vpop.f32.mrf.mxu0
    %v1416 = vadd.f32 %v1063, %v1415
    %v1417 = vpop.f32.mrf.mxu0
    %v1418 = vadd.f32 %v1065, %v1417
    %1419 = vmatprep.mubr.bf16.mxu0 %v389
    %1420 = vmatmul.mubr.bf16.gmra.mxu0 %v388
    %v1421 = vpop.f32.mrf.mxu0
    %v1422 = vadd.f32 %v1069, %v1421
    %v1423 = vpop.f32.mrf.mxu0
    %v1424 = vadd.f32 %v1071, %v1423
    %v1425 = vpop.f32.mrf.mxu0
    %v1426 = vadd.f32 %v1073, %v1425
    %v1427 = vpop.f32.mrf.mxu0
    %v1428 = vadd.f32 %v1075, %v1427
    %1429 = vmatprep.mubr.bf16.mxu0 %v393
    %1430 = vmatmul.mubr.bf16.gmra.mxu0 %v392
    %v1431 = vpop.f32.mrf.mxu0
    %v1432 = vadd.f32 %v1079, %v1431
    %v1433 = vpop.f32.mrf.mxu0
    %v1434 = vadd.f32 %v1081, %v1433
    %v1435 = vpop.f32.mrf.mxu0
    %v1436 = vadd.f32 %v1083, %v1435
    %v1437 = vpop.f32.mrf.mxu0
    %v1438 = vadd.f32 %v1085, %v1437
    %1439 = vmatprep.mubr.bf16.mxu0 %v397
    %1440 = vmatmul.mubr.bf16.gmra.mxu0 %v396
    %v1441 = vpop.f32.mrf.mxu0
    %v1442 = vadd.f32 %v1089, %v1441
    %v1443 = vpop.f32.mrf.mxu0
    %v1444 = vadd.f32 %v1091, %v1443
    %v1445 = vpop.f32.mrf.mxu0
    %v1446 = vadd.f32 %v1093, %v1445
    %v1447 = vpop.f32.mrf.mxu0
    %v1448 = vadd.f32 %v1095, %v1447
    %1449 = vmatprep.mubr.bf16.mxu0 %v401
    %1450 = vmatmul.mubr.bf16.gmra.mxu0 %v400
    %v1451 = vpop.f32.mrf.mxu0
    %v1452 = vadd.f32 %v1099, %v1451
    %v1453 = vpop.f32.mrf.mxu0
    %v1454 = vadd.f32 %v1101, %v1453
    %v1455 = vpop.f32.mrf.mxu0
    %v1456 = vadd.f32 %v1103, %v1455
    %v1457 = vpop.f32.mrf.mxu0
    %v1458 = vadd.f32 %v1105, %v1457
    %1459 = vmatprep.mubr.bf16.mxu0 %v405
    %1460 = vmatmul.mubr.bf16.gmra.mxu0 %v404
    %v1461 = vpop.f32.mrf.mxu0
    %v1462 = vadd.f32 %v1109, %v1461
    %v1463 = vpop.f32.mrf.mxu0
    %v1464 = vadd.f32 %v1111, %v1463
    %v1465 = vpop.f32.mrf.mxu0
    %v1466 = vadd.f32 %v1113, %v1465
    %v1467 = vpop.f32.mrf.mxu0
    %v1468 = vadd.f32 %v1115, %v1467
    %1469 = vmatprep.mubr.bf16.mxu0 %v409
    %1470 = vmatmul.mubr.bf16.gmra.mxu0 %v408
    %v1471 = vpop.f32.mrf.mxu0
    %v1472 = vadd.f32 %v1119, %v1471
    %v1473 = vpop.f32.mrf.mxu0
    %v1474 = vadd.f32 %v1121, %v1473
    %v1475 = vpop.f32.mrf.mxu0
    %v1476 = vadd.f32 %v1123, %v1475
    %v1477 = vpop.f32.mrf.mxu0
    %v1478 = vadd.f32 %v1125, %v1477
    %1479 = vmatprep.mubr.bf16.mxu0 %v413
    %1480 = vmatmul.mubr.bf16.gmra.mxu0 %v412
    %v1481 = vpop.f32.mrf.mxu0
    %v1482 = vadd.f32 %v1129, %v1481
    %v1483 = vpop.f32.mrf.mxu0
    %v1484 = vadd.f32 %v1131, %v1483
    %v1485 = vpop.f32.mrf.mxu0
    %v1486 = vadd.f32 %v1133, %v1485
    %v1487 = vpop.f32.mrf.mxu0
    %v1488 = vadd.f32 %v1135, %v1487
    %1489 = vmatprep.mubr.bf16.mxu0 %v417
    %1490 = vmatmul.mubr.bf16.gmra.mxu0 %v416
    %v1491 = vpop.f32.mrf.mxu0
    %v1492 = vadd.f32 %v1139, %v1491
    %v1493 = vpop.f32.mrf.mxu0
    %v1494 = vadd.f32 %v1141, %v1493
    %v1495 = vpop.f32.mrf.mxu0
    %v1496 = vadd.f32 %v1143, %v1495
    %v1497 = vpop.f32.mrf.mxu0
    %v1498 = vadd.f32 %v1145, %v1497
    %1499 = vmatprep.mubr.bf16.mxu0 %v421
    %1500 = vmatmul.mubr.bf16.gmra.mxu0 %v420
    %v1501 = vpop.f32.mrf.mxu0
    %v1502 = vadd.f32 %v1149, %v1501
    %v1503 = vpop.f32.mrf.mxu0
    %v1504 = vadd.f32 %v1151, %v1503
    %v1505 = vpop.f32.mrf.mxu0
    %v1506 = vadd.f32 %v1153, %v1505
    %v1507 = vpop.f32.mrf.mxu0
    %v1508 = vadd.f32 %v1155, %v1507
    %1509 = vmatprep.mubr.bf16.mxu0 %v425
    %1510 = vmatmul.mubr.bf16.gmra.mxu0 %v424
    %v1511 = vpop.f32.mrf.mxu0
    %v1512 = vadd.f32 %v1159, %v1511
    %v1513 = vpop.f32.mrf.mxu0
    %v1514 = vadd.f32 %v1161, %v1513
    %v1515 = vpop.f32.mrf.mxu0
    %v1516 = vadd.f32 %v1163, %v1515
    %v1517 = vpop.f32.mrf.mxu0
    %v1518 = vadd.f32 %v1165, %v1517
    %1519 = vmatprep.mubr.bf16.mxu0 %v429
    %1520 = vmatmul.mubr.bf16.gmra.mxu0 %v428
    %v1521 = vpop.f32.mrf.mxu0
    %v1522 = vadd.f32 %v1169, %v1521
    %v1523 = vpop.f32.mrf.mxu0
    %v1524 = vadd.f32 %v1171, %v1523
    %v1525 = vpop.f32.mrf.mxu0
    %v1526 = vadd.f32 %v1173, %v1525
    %v1527 = vpop.f32.mrf.mxu0
    %v1528 = vadd.f32 %v1175, %v1527
    %1529 = vmatprep.mubr.bf16.mxu0 %v433
    %1530 = vmatmul.mubr.bf16.gmra.mxu0 %v432
    %v1531 = vpop.f32.mrf.mxu0
    %v1532 = vadd.f32 %v1179, %v1531
    %v1533 = vpop.f32.mrf.mxu0
    %v1534 = vadd.f32 %v1181, %v1533
    %v1535 = vpop.f32.mrf.mxu0
    %v1536 = vadd.f32 %v1183, %v1535
    %v1537 = vpop.f32.mrf.mxu0
    %v1538 = vadd.f32 %v1185, %v1537
    %1539 = vmatprep.mubr.bf16.mxu0 %v437
    %1540 = vmatmul.mubr.bf16.gmra.mxu0 %v436
    %v1541 = vpop.f32.mrf.mxu0
    %v1542 = vadd.f32 %v1189, %v1541
    %v1543 = vpop.f32.mrf.mxu0
    %v1544 = vadd.f32 %v1191, %v1543
    %v1545 = vpop.f32.mrf.mxu0
    %v1546 = vadd.f32 %v1193, %v1545
    %v1547 = vpop.f32.mrf.mxu0
    %v1548 = vadd.f32 %v1195, %v1547
    %1549 = vdwg.mxu0
    %1550 = vmatprep.subr.bf16.mxu0 %v725
    %1551 = vmatpush1.bf16.msra.mxu0 %v724
    %1552 = vmatprep.subr.bf16.mxu0 %v721
    %1553 = vmatpush1.bf16.msra.mxu0 %v720
    %1554 = vmatprep.subr.bf16.mxu0 %v717
    %1555 = vmatpush1.bf16.msra.mxu0 %v716
    %1556 = vmatprep.subr.bf16.mxu0 %v713
    %1557 = vmatpush1.bf16.msra.mxu0 %v712
    %1558 = vmatprep.subr.bf16.mxu0 %v709
    %1559 = vmatpush1.bf16.msra.mxu0 %v708
    %1560 = vmatprep.subr.bf16.mxu0 %v705
    %1561 = vmatpush1.bf16.msra.mxu0 %v704
    %1562 = vmatprep.subr.bf16.mxu0 %v701
    %1563 = vmatpush1.bf16.msra.mxu0 %v700
    %1564 = vmatprep.subr.bf16.mxu0 %v697
    %1565 = vmatpush1.bf16.msra.mxu0 %v696
    %1566 = vmatprep.subr.bf16.mxu0 %v757
    %1567 = vmatpush2.bf16.msra.mxu0 %v756
    %1568 = vmatprep.subr.bf16.mxu0 %v753
    %1569 = vmatpush2.bf16.msra.mxu0 %v752
    %1570 = vmatprep.subr.bf16.mxu0 %v749
    %1571 = vmatpush2.bf16.msra.mxu0 %v748
    %1572 = vmatprep.subr.bf16.mxu0 %v745
    %1573 = vmatpush2.bf16.msra.mxu0 %v744
    %1574 = vmatprep.subr.bf16.mxu0 %v741
    %1575 = vmatpush2.bf16.msra.mxu0 %v740
    %1576 = vmatprep.subr.bf16.mxu0 %v737
    %1577 = vmatpush2.bf16.msra.mxu0 %v736
    %1578 = vmatprep.subr.bf16.mxu0 %v733
    %1579 = vmatpush2.bf16.msra.mxu0 %v732
    %1580 = vmatprep.subr.bf16.mxu0 %v729
    %1581 = vmatpush2.bf16.msra.mxu0 %v728
    %1582 = vmatprep.mubr.bf16.mxu0 %v311
    %1583 = vmatmul.mubr.bf16.gmra.mxu0 %v310
    %v1584 = vpop.f32.mrf.mxu0
    %v1585 = vadd.f32 %v835, %v1584
    %v1586 = vpop.f32.mrf.mxu0
    %v1587 = vadd.f32 %v839, %v1586
    %v1588 = vpop.f32.mrf.mxu0
    %v1589 = vadd.f32 %v835, %v1588
    %v1590 = vpop.f32.mrf.mxu0
    %v1591 = vadd.f32 %v839, %v1590
    %1592 = vmatprep.mubr.bf16.mxu0 %v315
    %1593 = vmatmul.mubr.bf16.gmra.mxu0 %v314
    %v1594 = vpop.f32.mrf.mxu0
    %v1595 = vadd.f32 %v835, %v1594
    %v1596 = vpop.f32.mrf.mxu0
    %v1597 = vadd.f32 %v839, %v1596
    %v1598 = vpop.f32.mrf.mxu0
    %v1599 = vadd.f32 %v835, %v1598
    %v1600 = vpop.f32.mrf.mxu0
    %v1601 = vadd.f32 %v839, %v1600
    %1602 = vmatprep.mubr.bf16.mxu0 %v319
    %1603 = vmatmul.mubr.bf16.gmra.mxu0 %v318
    %v1604 = vpop.f32.mrf.mxu0
    %v1605 = vadd.f32 %v835, %v1604
    %v1606 = vpop.f32.mrf.mxu0
    %v1607 = vadd.f32 %v839, %v1606
    %v1608 = vpop.f32.mrf.mxu0
    %v1609 = vadd.f32 %v835, %v1608
    %v1610 = vpop.f32.mrf.mxu0
    %v1611 = vadd.f32 %v839, %v1610
    %1612 = vmatprep.mubr.bf16.mxu0 %v323
    %1613 = vmatmul.mubr.bf16.gmra.mxu0 %v322
    %v1614 = vpop.f32.mrf.mxu0
    %v1615 = vadd.f32 %v835, %v1614
    %v1616 = vpop.f32.mrf.mxu0
    %v1617 = vadd.f32 %v839, %v1616
    %v1618 = vpop.f32.mrf.mxu0
    %v1619 = vadd.f32 %v835, %v1618
    %v1620 = vpop.f32.mrf.mxu0
    %v1621 = vadd.f32 %v839, %v1620
    %1622 = vmatprep.mubr.bf16.mxu0 %v327
    %1623 = vmatmul.mubr.bf16.gmra.mxu0 %v326
    %v1624 = vpop.f32.mrf.mxu0
    %v1625 = vadd.f32 %v835, %v1624
    %v1626 = vpop.f32.mrf.mxu0
    %v1627 = vadd.f32 %v839, %v1626
    %v1628 = vpop.f32.mrf.mxu0
    %v1629 = vadd.f32 %v835, %v1628
    %v1630 = vpop.f32.mrf.mxu0
    %v1631 = vadd.f32 %v839, %v1630
    %1632 = vmatprep.mubr.bf16.mxu0 %v331
    %1633 = vmatmul.mubr.bf16.gmra.mxu0 %v330
    %v1634 = vpop.f32.mrf.mxu0
    %v1635 = vadd.f32 %v835, %v1634
    %v1636 = vpop.f32.mrf.mxu0
    %v1637 = vadd.f32 %v839, %v1636
    %v1638 = vpop.f32.mrf.mxu0
    %v1639 = vadd.f32 %v835, %v1638
    %v1640 = vpop.f32.mrf.mxu0
    %v1641 = vadd.f32 %v839, %v1640
    %1642 = vmatprep.mubr.bf16.mxu0 %v335
    %1643 = vmatmul.mubr.bf16.gmra.mxu0 %v334
    %v1644 = vpop.f32.mrf.mxu0
    %v1645 = vadd.f32 %v835, %v1644
    %v1646 = vpop.f32.mrf.mxu0
    %v1647 = vadd.f32 %v839, %v1646
    %v1648 = vpop.f32.mrf.mxu0
    %v1649 = vadd.f32 %v835, %v1648
    %v1650 = vpop.f32.mrf.mxu0
    %v1651 = vadd.f32 %v839, %v1650
    %1652 = vmatprep.mubr.bf16.mxu0 %v339
    %1653 = vmatmul.mubr.bf16.gmra.mxu0 %v338
    %v1654 = vpop.f32.mrf.mxu0
    %v1655 = vadd.f32 %v835, %v1654
    %v1656 = vpop.f32.mrf.mxu0
    %v1657 = vadd.f32 %v839, %v1656
    %v1658 = vpop.f32.mrf.mxu0
    %v1659 = vadd.f32 %v835, %v1658
    %v1660 = vpop.f32.mrf.mxu0
    %v1661 = vadd.f32 %v839, %v1660
    %1662 = vmatprep.mubr.bf16.mxu0 %v343
    %1663 = vmatmul.mubr.bf16.gmra.mxu0 %v342
    %v1664 = vpop.f32.mrf.mxu0
    %v1665 = vadd.f32 %v835, %v1664
    %v1666 = vpop.f32.mrf.mxu0
    %v1667 = vadd.f32 %v839, %v1666
    %v1668 = vpop.f32.mrf.mxu0
    %v1669 = vadd.f32 %v835, %v1668
    %v1670 = vpop.f32.mrf.mxu0
    %v1671 = vadd.f32 %v839, %v1670
    %1672 = vmatprep.mubr.bf16.mxu0 %v347
    %1673 = vmatmul.mubr.bf16.gmra.mxu0 %v346
    %v1674 = vpop.f32.mrf.mxu0
    %v1675 = vadd.f32 %v835, %v1674
    %v1676 = vpop.f32.mrf.mxu0
    %v1677 = vadd.f32 %v839, %v1676
    %v1678 = vpop.f32.mrf.mxu0
    %v1679 = vadd.f32 %v835, %v1678
    %v1680 = vpop.f32.mrf.mxu0
    %v1681 = vadd.f32 %v839, %v1680
    %1682 = vmatprep.mubr.bf16.mxu0 %v351
    %1683 = vmatmul.mubr.bf16.gmra.mxu0 %v350
    %v1684 = vpop.f32.mrf.mxu0
    %v1685 = vadd.f32 %v835, %v1684
    %v1686 = vpop.f32.mrf.mxu0
    %v1687 = vadd.f32 %v839, %v1686
    %v1688 = vpop.f32.mrf.mxu0
    %v1689 = vadd.f32 %v835, %v1688
    %v1690 = vpop.f32.mrf.mxu0
    %v1691 = vadd.f32 %v839, %v1690
    %1692 = vmatprep.mubr.bf16.mxu0 %v355
    %1693 = vmatmul.mubr.bf16.gmra.mxu0 %v354
    %v1694 = vpop.f32.mrf.mxu0
    %v1695 = vadd.f32 %v835, %v1694
    %v1696 = vpop.f32.mrf.mxu0
    %v1697 = vadd.f32 %v839, %v1696
    %v1698 = vpop.f32.mrf.mxu0
    %v1699 = vadd.f32 %v835, %v1698
    %v1700 = vpop.f32.mrf.mxu0
    %v1701 = vadd.f32 %v839, %v1700
    %1702 = vmatprep.mubr.bf16.mxu0 %v359
    %1703 = vmatmul.mubr.bf16.gmra.mxu0 %v358
    %v1704 = vpop.f32.mrf.mxu0
    %v1705 = vadd.f32 %v835, %v1704
    %v1706 = vpop.f32.mrf.mxu0
    %v1707 = vadd.f32 %v839, %v1706
    %v1708 = vpop.f32.mrf.mxu0
    %v1709 = vadd.f32 %v835, %v1708
    %v1710 = vpop.f32.mrf.mxu0
    %v1711 = vadd.f32 %v839, %v1710
    %1712 = vmatprep.mubr.bf16.mxu0 %v363
    %1713 = vmatmul.mubr.bf16.gmra.mxu0 %v362
    %v1714 = vpop.f32.mrf.mxu0
    %v1715 = vadd.f32 %v835, %v1714
    %v1716 = vpop.f32.mrf.mxu0
    %v1717 = vadd.f32 %v839, %v1716
    %v1718 = vpop.f32.mrf.mxu0
    %v1719 = vadd.f32 %v835, %v1718
    %v1720 = vpop.f32.mrf.mxu0
    %v1721 = vadd.f32 %v839, %v1720
    %1722 = vmatprep.mubr.bf16.mxu0 %v367
    %1723 = vmatmul.mubr.bf16.gmra.mxu0 %v366
    %v1724 = vpop.f32.mrf.mxu0
    %v1725 = vadd.f32 %v835, %v1724
    %v1726 = vpop.f32.mrf.mxu0
    %v1727 = vadd.f32 %v839, %v1726
    %v1728 = vpop.f32.mrf.mxu0
    %v1729 = vadd.f32 %v835, %v1728
    %v1730 = vpop.f32.mrf.mxu0
    %v1731 = vadd.f32 %v839, %v1730
    %1732 = vmatprep.mubr.bf16.mxu0 %v371
    %1733 = vmatmul.mubr.bf16.gmra.mxu0 %v370
    %v1734 = vpop.f32.mrf.mxu0
    %v1735 = vadd.f32 %v835, %v1734
    %v1736 = vpop.f32.mrf.mxu0
    %v1737 = vadd.f32 %v839, %v1736
    %v1738 = vpop.f32.mrf.mxu0
    %v1739 = vadd.f32 %v835, %v1738
    %v1740 = vpop.f32.mrf.mxu0
    %v1741 = vadd.f32 %v839, %v1740
    %1742 = vmatprep.mubr.bf16.mxu0 %v375
    %1743 = vmatmul.mubr.bf16.gmra.mxu0 %v374
    %v1744 = vpop.f32.mrf.mxu0
    %v1745 = vadd.f32 %v835, %v1744
    %v1746 = vpop.f32.mrf.mxu0
    %v1747 = vadd.f32 %v839, %v1746
    %v1748 = vpop.f32.mrf.mxu0
    %v1749 = vadd.f32 %v835, %v1748
    %v1750 = vpop.f32.mrf.mxu0
    %v1751 = vadd.f32 %v839, %v1750
    %1752 = vmatprep.mubr.bf16.mxu0 %v379
    %1753 = vmatmul.mubr.bf16.gmra.mxu0 %v378
    %v1754 = vpop.f32.mrf.mxu0
    %v1755 = vadd.f32 %v835, %v1754
    %v1756 = vpop.f32.mrf.mxu0
    %v1757 = vadd.f32 %v839, %v1756
    %v1758 = vpop.f32.mrf.mxu0
    %v1759 = vadd.f32 %v835, %v1758
    %v1760 = vpop.f32.mrf.mxu0
    %v1761 = vadd.f32 %v839, %v1760
    %1762 = vmatprep.mubr.bf16.mxu0 %v383
    %1763 = vmatmul.mubr.bf16.gmra.mxu0 %v382
    %v1764 = vpop.f32.mrf.mxu0
    %v1765 = vadd.f32 %v835, %v1764
    %v1766 = vpop.f32.mrf.mxu0
    %v1767 = vadd.f32 %v839, %v1766
    %v1768 = vpop.f32.mrf.mxu0
    %v1769 = vadd.f32 %v835, %v1768
    %v1770 = vpop.f32.mrf.mxu0
    %v1771 = vadd.f32 %v839, %v1770
    %1772 = vmatprep.mubr.bf16.mxu0 %v387
    %1773 = vmatmul.mubr.bf16.gmra.mxu0 %v386
    %v1774 = vpop.f32.mrf.mxu0
    %v1775 = vadd.f32 %v835, %v1774
    %v1776 = vpop.f32.mrf.mxu0
    %v1777 = vadd.f32 %v839, %v1776
    %v1778 = vpop.f32.mrf.mxu0
    %v1779 = vadd.f32 %v835, %v1778
    %v1780 = vpop.f32.mrf.mxu0
    %v1781 = vadd.f32 %v839, %v1780
    %1782 = vmatprep.mubr.bf16.mxu0 %v391
    %1783 = vmatmul.mubr.bf16.gmra.mxu0 %v390
    %v1784 = vpop.f32.mrf.mxu0
    %v1785 = vadd.f32 %v835, %v1784
    %v1786 = vpop.f32.mrf.mxu0
    %v1787 = vadd.f32 %v839, %v1786
    %v1788 = vpop.f32.mrf.mxu0
    %v1789 = vadd.f32 %v835, %v1788
    %v1790 = vpop.f32.mrf.mxu0
    %v1791 = vadd.f32 %v839, %v1790
    %1792 = vmatprep.mubr.bf16.mxu0 %v395
    %1793 = vmatmul.mubr.bf16.gmra.mxu0 %v394
    %v1794 = vpop.f32.mrf.mxu0
    %v1795 = vadd.f32 %v835, %v1794
    %v1796 = vpop.f32.mrf.mxu0
    %v1797 = vadd.f32 %v839, %v1796
    %v1798 = vpop.f32.mrf.mxu0
    %v1799 = vadd.f32 %v835, %v1798
    %v1800 = vpop.f32.mrf.mxu0
    %v1801 = vadd.f32 %v839, %v1800
    %1802 = vmatprep.mubr.bf16.mxu0 %v399
    %1803 = vmatmul.mubr.bf16.gmra.mxu0 %v398
    %v1804 = vpop.f32.mrf.mxu0
    %v1805 = vadd.f32 %v835, %v1804
    %v1806 = vpop.f32.mrf.mxu0
    %v1807 = vadd.f32 %v839, %v1806
    %v1808 = vpop.f32.mrf.mxu0
    %v1809 = vadd.f32 %v835, %v1808
    %v1810 = vpop.f32.mrf.mxu0
    %v1811 = vadd.f32 %v839, %v1810
    %1812 = vmatprep.mubr.bf16.mxu0 %v403
    %1813 = vmatmul.mubr.bf16.gmra.mxu0 %v402
    %v1814 = vpop.f32.mrf.mxu0
    %v1815 = vadd.f32 %v835, %v1814
    %v1816 = vpop.f32.mrf.mxu0
    %v1817 = vadd.f32 %v839, %v1816
    %v1818 = vpop.f32.mrf.mxu0
    %v1819 = vadd.f32 %v835, %v1818
    %v1820 = vpop.f32.mrf.mxu0
    %v1821 = vadd.f32 %v839, %v1820
    %1822 = vmatprep.mubr.bf16.mxu0 %v407
    %1823 = vmatmul.mubr.bf16.gmra.mxu0 %v406
    %v1824 = vpop.f32.mrf.mxu0
    %v1825 = vadd.f32 %v835, %v1824
    %v1826 = vpop.f32.mrf.mxu0
    %v1827 = vadd.f32 %v839, %v1826
    %v1828 = vpop.f32.mrf.mxu0
    %v1829 = vadd.f32 %v835, %v1828
    %v1830 = vpop.f32.mrf.mxu0
    %v1831 = vadd.f32 %v839, %v1830
    %1832 = vmatprep.mubr.bf16.mxu0 %v411
    %1833 = vmatmul.mubr.bf16.gmra.mxu0 %v410
    %v1834 = vpop.f32.mrf.mxu0
    %v1835 = vadd.f32 %v835, %v1834
    %v1836 = vpop.f32.mrf.mxu0
    %v1837 = vadd.f32 %v839, %v1836
    %v1838 = vpop.f32.mrf.mxu0
    %v1839 = vadd.f32 %v835, %v1838
    %v1840 = vpop.f32.mrf.mxu0
    %v1841 = vadd.f32 %v839, %v1840
    %1842 = vmatprep.mubr.bf16.mxu0 %v415
    %1843 = vmatmul.mubr.bf16.gmra.mxu0 %v414
    %v1844 = vpop.f32.mrf.mxu0
    %v1845 = vadd.f32 %v835, %v1844
    %v1846 = vpop.f32.mrf.mxu0
    %v1847 = vadd.f32 %v839, %v1846
    %v1848 = vpop.f32.mrf.mxu0
    %v1849 = vadd.f32 %v835, %v1848
    %v1850 = vpop.f32.mrf.mxu0
    %v1851 = vadd.f32 %v839, %v1850
    %1852 = vmatprep.mubr.bf16.mxu0 %v419
    %1853 = vmatmul.mubr.bf16.gmra.mxu0 %v418
    %v1854 = vpop.f32.mrf.mxu0
    %v1855 = vadd.f32 %v835, %v1854
    %v1856 = vpop.f32.mrf.mxu0
    %v1857 = vadd.f32 %v839, %v1856
    %v1858 = vpop.f32.mrf.mxu0
    %v1859 = vadd.f32 %v835, %v1858
    %v1860 = vpop.f32.mrf.mxu0
    %v1861 = vadd.f32 %v839, %v1860
    %1862 = vmatprep.mubr.bf16.mxu0 %v423
    %1863 = vmatmul.mubr.bf16.gmra.mxu0 %v422
    %v1864 = vpop.f32.mrf.mxu0
    %v1865 = vadd.f32 %v835, %v1864
    %v1866 = vpop.f32.mrf.mxu0
    %v1867 = vadd.f32 %v839, %v1866
    %v1868 = vpop.f32.mrf.mxu0
    %v1869 = vadd.f32 %v835, %v1868
    %v1870 = vpop.f32.mrf.mxu0
    %v1871 = vadd.f32 %v839, %v1870
    %1872 = vmatprep.mubr.bf16.mxu0 %v427
    %1873 = vmatmul.mubr.bf16.gmra.mxu0 %v426
    %v1874 = vpop.f32.mrf.mxu0
    %v1875 = vadd.f32 %v835, %v1874
    %v1876 = vpop.f32.mrf.mxu0
    %v1877 = vadd.f32 %v839, %v1876
    %v1878 = vpop.f32.mrf.mxu0
    %v1879 = vadd.f32 %v835, %v1878
    %v1880 = vpop.f32.mrf.mxu0
    %v1881 = vadd.f32 %v839, %v1880
    %1882 = vmatprep.mubr.bf16.mxu0 %v431
    %1883 = vmatmul.mubr.bf16.gmra.mxu0 %v430
    %v1884 = vpop.f32.mrf.mxu0
    %v1885 = vadd.f32 %v835, %v1884
    %v1886 = vpop.f32.mrf.mxu0
    %v1887 = vadd.f32 %v839, %v1886
    %v1888 = vpop.f32.mrf.mxu0
    %v1889 = vadd.f32 %v835, %v1888
    %v1890 = vpop.f32.mrf.mxu0
    %v1891 = vadd.f32 %v839, %v1890
    %1892 = vmatprep.mubr.bf16.mxu0 %v435
    %1893 = vmatmul.mubr.bf16.gmra.mxu0 %v434
    %v1894 = vpop.f32.mrf.mxu0
    %v1895 = vadd.f32 %v835, %v1894
    %v1896 = vpop.f32.mrf.mxu0
    %v1897 = vadd.f32 %v839, %v1896
    %v1898 = vpop.f32.mrf.mxu0
    %v1899 = vadd.f32 %v835, %v1898
    %v1900 = vpop.f32.mrf.mxu0
    %v1901 = vadd.f32 %v839, %v1900
    %1902 = vdwg.mxu0
    %1903 = vmatprep.subr.bf16.mxu0 %v789
    %1904 = vmatpush1.bf16.msra.mxu0 %v788
    %1905 = vmatprep.subr.bf16.mxu0 %v785
    %1906 = vmatpush1.bf16.msra.mxu0 %v784
    %1907 = vmatprep.subr.bf16.mxu0 %v781
    %1908 = vmatpush1.bf16.msra.mxu0 %v780
    %1909 = vmatprep.subr.bf16.mxu0 %v777
    %1910 = vmatpush1.bf16.msra.mxu0 %v776
    %1911 = vmatprep.subr.bf16.mxu0 %v773
    %1912 = vmatpush1.bf16.msra.mxu0 %v772
    %1913 = vmatprep.subr.bf16.mxu0 %v769
    %1914 = vmatpush1.bf16.msra.mxu0 %v768
    %1915 = vmatprep.subr.bf16.mxu0 %v765
    %1916 = vmatpush1.bf16.msra.mxu0 %v764
    %1917 = vmatprep.subr.bf16.mxu0 %v761
    %1918 = vmatpush1.bf16.msra.mxu0 %v760
    %1919 = vmatprep.subr.bf16.mxu0 %v821
    %1920 = vmatpush2.bf16.msra.mxu0 %v820
    %1921 = vmatprep.subr.bf16.mxu0 %v817
    %1922 = vmatpush2.bf16.msra.mxu0 %v816
    %1923 = vmatprep.subr.bf16.mxu0 %v813
    %1924 = vmatpush2.bf16.msra.mxu0 %v812
    %1925 = vmatprep.subr.bf16.mxu0 %v809
    %1926 = vmatpush2.bf16.msra.mxu0 %v808
    %1927 = vmatprep.subr.bf16.mxu0 %v805
    %1928 = vmatpush2.bf16.msra.mxu0 %v804
    %1929 = vmatprep.subr.bf16.mxu0 %v801
    %1930 = vmatpush2.bf16.msra.mxu0 %v800
    %1931 = vmatprep.subr.bf16.mxu0 %v797
    %1932 = vmatpush2.bf16.msra.mxu0 %v796
    %1933 = vmatprep.subr.bf16.mxu0 %v793
    %1934 = vmatpush2.bf16.msra.mxu0 %v792
    %1935 = vmatprep.mubr.bf16.mxu0 %v313
    %1936 = vmatmul.mubr.bf16.gmra.mxu0 %v312
    %v1937 = vpop.f32.mrf.mxu0
    %v1938 = vadd.f32 %v1585, %v1937
    %v1939 = vpop.f32.mrf.mxu0
    %v1940 = vadd.f32 %v1587, %v1939
    %v1941 = vpop.f32.mrf.mxu0
    %v1942 = vadd.f32 %v1589, %v1941
    %v1943 = vpop.f32.mrf.mxu0
    %v1944 = vadd.f32 %v1591, %v1943
    %1945 = vmatprep.mubr.bf16.mxu0 %v317
    %1946 = vmatmul.mubr.bf16.gmra.mxu0 %v316
    %v1947 = vpop.f32.mrf.mxu0
    %v1948 = vadd.f32 %v1595, %v1947
    %v1949 = vpop.f32.mrf.mxu0
    %v1950 = vadd.f32 %v1597, %v1949
    %v1951 = vpop.f32.mrf.mxu0
    %v1952 = vadd.f32 %v1599, %v1951
    %v1953 = vpop.f32.mrf.mxu0
    %v1954 = vadd.f32 %v1601, %v1953
    %1955 = vmatprep.mubr.bf16.mxu0 %v321
    %1956 = vmatmul.mubr.bf16.gmra.mxu0 %v320
    %v1957 = vpop.f32.mrf.mxu0
    %v1958 = vadd.f32 %v1605, %v1957
    %v1959 = vpop.f32.mrf.mxu0
    %v1960 = vadd.f32 %v1607, %v1959
    %v1961 = vpop.f32.mrf.mxu0
    %v1962 = vadd.f32 %v1609, %v1961
    %v1963 = vpop.f32.mrf.mxu0
    %v1964 = vadd.f32 %v1611, %v1963
    %1965 = vmatprep.mubr.bf16.mxu0 %v325
    %1966 = vmatmul.mubr.bf16.gmra.mxu0 %v324
    %v1967 = vpop.f32.mrf.mxu0
    %v1968 = vadd.f32 %v1615, %v1967
    %v1969 = vpop.f32.mrf.mxu0
    %v1970 = vadd.f32 %v1617, %v1969
    %v1971 = vpop.f32.mrf.mxu0
    %v1972 = vadd.f32 %v1619, %v1971
    %v1973 = vpop.f32.mrf.mxu0
    %v1974 = vadd.f32 %v1621, %v1973
    %1975 = vmatprep.mubr.bf16.mxu0 %v329
    %1976 = vmatmul.mubr.bf16.gmra.mxu0 %v328
    %v1977 = vpop.f32.mrf.mxu0
    %v1978 = vadd.f32 %v1625, %v1977
    %v1979 = vpop.f32.mrf.mxu0
    %v1980 = vadd.f32 %v1627, %v1979
    %v1981 = vpop.f32.mrf.mxu0
    %v1982 = vadd.f32 %v1629, %v1981
    %v1983 = vpop.f32.mrf.mxu0
    %v1984 = vadd.f32 %v1631, %v1983
    %1985 = vmatprep.mubr.bf16.mxu0 %v333
    %1986 = vmatmul.mubr.bf16.gmra.mxu0 %v332
    %v1987 = vpop.f32.mrf.mxu0
    %v1988 = vadd.f32 %v1635, %v1987
    %v1989 = vpop.f32.mrf.mxu0
    %v1990 = vadd.f32 %v1637, %v1989
    %v1991 = vpop.f32.mrf.mxu0
    %v1992 = vadd.f32 %v1639, %v1991
    %v1993 = vpop.f32.mrf.mxu0
    %v1994 = vadd.f32 %v1641, %v1993
    %1995 = vmatprep.mubr.bf16.mxu0 %v337
    %1996 = vmatmul.mubr.bf16.gmra.mxu0 %v336
    %v1997 = vpop.f32.mrf.mxu0
    %v1998 = vadd.f32 %v1645, %v1997
    %v1999 = vpop.f32.mrf.mxu0
    %v2000 = vadd.f32 %v1647, %v1999
    %v2001 = vpop.f32.mrf.mxu0
    %v2002 = vadd.f32 %v1649, %v2001
    %v2003 = vpop.f32.mrf.mxu0
    %v2004 = vadd.f32 %v1651, %v2003
    %2005 = vmatprep.mubr.bf16.mxu0 %v341
    %2006 = vmatmul.mubr.bf16.gmra.mxu0 %v340
    %v2007 = vpop.f32.mrf.mxu0
    %v2008 = vadd.f32 %v1655, %v2007
    %v2009 = vpop.f32.mrf.mxu0
    %v2010 = vadd.f32 %v1657, %v2009
    %v2011 = vpop.f32.mrf.mxu0
    %v2012 = vadd.f32 %v1659, %v2011
    %v2013 = vpop.f32.mrf.mxu0
    %v2014 = vadd.f32 %v1661, %v2013
    %2015 = vmatprep.mubr.bf16.mxu0 %v345
    %2016 = vmatmul.mubr.bf16.gmra.mxu0 %v344
    %v2017 = vpop.f32.mrf.mxu0
    %v2018 = vadd.f32 %v1665, %v2017
    %v2019 = vpop.f32.mrf.mxu0
    %v2020 = vadd.f32 %v1667, %v2019
    %v2021 = vpop.f32.mrf.mxu0
    %v2022 = vadd.f32 %v1669, %v2021
    %v2023 = vpop.f32.mrf.mxu0
    %v2024 = vadd.f32 %v1671, %v2023
    %2025 = vmatprep.mubr.bf16.mxu0 %v349
    %2026 = vmatmul.mubr.bf16.gmra.mxu0 %v348
    %v2027 = vpop.f32.mrf.mxu0
    %v2028 = vadd.f32 %v1675, %v2027
    %v2029 = vpop.f32.mrf.mxu0
    %v2030 = vadd.f32 %v1677, %v2029
    %v2031 = vpop.f32.mrf.mxu0
    %v2032 = vadd.f32 %v1679, %v2031
    %v2033 = vpop.f32.mrf.mxu0
    %v2034 = vadd.f32 %v1681, %v2033
    %2035 = vmatprep.mubr.bf16.mxu0 %v353
    %2036 = vmatmul.mubr.bf16.gmra.mxu0 %v352
    %v2037 = vpop.f32.mrf.mxu0
    %v2038 = vadd.f32 %v1685, %v2037
    %v2039 = vpop.f32.mrf.mxu0
    %v2040 = vadd.f32 %v1687, %v2039
    %v2041 = vpop.f32.mrf.mxu0
    %v2042 = vadd.f32 %v1689, %v2041
    %v2043 = vpop.f32.mrf.mxu0
    %v2044 = vadd.f32 %v1691, %v2043
    %2045 = vmatprep.mubr.bf16.mxu0 %v357
    %2046 = vmatmul.mubr.bf16.gmra.mxu0 %v356
    %v2047 = vpop.f32.mrf.mxu0
    %v2048 = vadd.f32 %v1695, %v2047
    %v2049 = vpop.f32.mrf.mxu0
    %v2050 = vadd.f32 %v1697, %v2049
    %v2051 = vpop.f32.mrf.mxu0
    %v2052 = vadd.f32 %v1699, %v2051
    %v2053 = vpop.f32.mrf.mxu0
    %v2054 = vadd.f32 %v1701, %v2053
    %2055 = vmatprep.mubr.bf16.mxu0 %v361
    %2056 = vmatmul.mubr.bf16.gmra.mxu0 %v360
    %v2057 = vpop.f32.mrf.mxu0
    %v2058 = vadd.f32 %v1705, %v2057
    %v2059 = vpop.f32.mrf.mxu0
    %v2060 = vadd.f32 %v1707, %v2059
    %v2061 = vpop.f32.mrf.mxu0
    %v2062 = vadd.f32 %v1709, %v2061
    %v2063 = vpop.f32.mrf.mxu0
    %v2064 = vadd.f32 %v1711, %v2063
    %2065 = vmatprep.mubr.bf16.mxu0 %v365
    %2066 = vmatmul.mubr.bf16.gmra.mxu0 %v364
    %v2067 = vpop.f32.mrf.mxu0
    %v2068 = vadd.f32 %v1715, %v2067
    %v2069 = vpop.f32.mrf.mxu0
    %v2070 = vadd.f32 %v1717, %v2069
    %v2071 = vpop.f32.mrf.mxu0
    %v2072 = vadd.f32 %v1719, %v2071
    %v2073 = vpop.f32.mrf.mxu0
    %v2074 = vadd.f32 %v1721, %v2073
    %2075 = vmatprep.mubr.bf16.mxu0 %v369
    %2076 = vmatmul.mubr.bf16.gmra.mxu0 %v368
    %v2077 = vpop.f32.mrf.mxu0
    %v2078 = vadd.f32 %v1725, %v2077
    %v2079 = vpop.f32.mrf.mxu0
    %v2080 = vadd.f32 %v1727, %v2079
    %v2081 = vpop.f32.mrf.mxu0
    %v2082 = vadd.f32 %v1729, %v2081
    %v2083 = vpop.f32.mrf.mxu0
    %v2084 = vadd.f32 %v1731, %v2083
    %2085 = vmatprep.mubr.bf16.mxu0 %v373
    %2086 = vmatmul.mubr.bf16.gmra.mxu0 %v372
    %v2087 = vpop.f32.mrf.mxu0
    %v2088 = vadd.f32 %v1735, %v2087
    %v2089 = vpop.f32.mrf.mxu0
    %v2090 = vadd.f32 %v1737, %v2089
    %v2091 = vpop.f32.mrf.mxu0
    %v2092 = vadd.f32 %v1739, %v2091
    %v2093 = vpop.f32.mrf.mxu0
    %v2094 = vadd.f32 %v1741, %v2093
    %2095 = vmatprep.mubr.bf16.mxu0 %v377
    %2096 = vmatmul.mubr.bf16.gmra.mxu0 %v376
    %v2097 = vpop.f32.mrf.mxu0
    %v2098 = vadd.f32 %v1745, %v2097
    %v2099 = vpop.f32.mrf.mxu0
    %v2100 = vadd.f32 %v1747, %v2099
    %v2101 = vpop.f32.mrf.mxu0
    %v2102 = vadd.f32 %v1749, %v2101
    %v2103 = vpop.f32.mrf.mxu0
    %v2104 = vadd.f32 %v1751, %v2103
    %2105 = vmatprep.mubr.bf16.mxu0 %v381
    %2106 = vmatmul.mubr.bf16.gmra.mxu0 %v380
    %v2107 = vpop.f32.mrf.mxu0
    %v2108 = vadd.f32 %v1755, %v2107
    %v2109 = vpop.f32.mrf.mxu0
    %v2110 = vadd.f32 %v1757, %v2109
    %v2111 = vpop.f32.mrf.mxu0
    %v2112 = vadd.f32 %v1759, %v2111
    %v2113 = vpop.f32.mrf.mxu0
    %v2114 = vadd.f32 %v1761, %v2113
    %2115 = vmatprep.mubr.bf16.mxu0 %v385
    %2116 = vmatmul.mubr.bf16.gmra.mxu0 %v384
    %v2117 = vpop.f32.mrf.mxu0
    %v2118 = vadd.f32 %v1765, %v2117
    %v2119 = vpop.f32.mrf.mxu0
    %v2120 = vadd.f32 %v1767, %v2119
    %v2121 = vpop.f32.mrf.mxu0
    %v2122 = vadd.f32 %v1769, %v2121
    %v2123 = vpop.f32.mrf.mxu0
    %v2124 = vadd.f32 %v1771, %v2123
    %2125 = vmatprep.mubr.bf16.mxu0 %v389
    %2126 = vmatmul.mubr.bf16.gmra.mxu0 %v388
    %v2127 = vpop.f32.mrf.mxu0
    %v2128 = vadd.f32 %v1775, %v2127
    %v2129 = vpop.f32.mrf.mxu0
    %v2130 = vadd.f32 %v1777, %v2129
    %v2131 = vpop.f32.mrf.mxu0
    %v2132 = vadd.f32 %v1779, %v2131
    %v2133 = vpop.f32.mrf.mxu0
    %v2134 = vadd.f32 %v1781, %v2133
    %2135 = vmatprep.mubr.bf16.mxu0 %v393
    %2136 = vmatmul.mubr.bf16.gmra.mxu0 %v392
    %v2137 = vpop.f32.mrf.mxu0
    %v2138 = vadd.f32 %v1785, %v2137
    %v2139 = vpop.f32.mrf.mxu0
    %v2140 = vadd.f32 %v1787, %v2139
    %v2141 = vpop.f32.mrf.mxu0
    %v2142 = vadd.f32 %v1789, %v2141
    %v2143 = vpop.f32.mrf.mxu0
    %v2144 = vadd.f32 %v1791, %v2143
    %2145 = vmatprep.mubr.bf16.mxu0 %v397
    %2146 = vmatmul.mubr.bf16.gmra.mxu0 %v396
    %v2147 = vpop.f32.mrf.mxu0
    %v2148 = vadd.f32 %v1795, %v2147
    %v2149 = vpop.f32.mrf.mxu0
    %v2150 = vadd.f32 %v1797, %v2149
    %v2151 = vpop.f32.mrf.mxu0
    %v2152 = vadd.f32 %v1799, %v2151
    %v2153 = vpop.f32.mrf.mxu0
    %v2154 = vadd.f32 %v1801, %v2153
    %2155 = vmatprep.mubr.bf16.mxu0 %v401
    %2156 = vmatmul.mubr.bf16.gmra.mxu0 %v400
    %v2157 = vpop.f32.mrf.mxu0
    %v2158 = vadd.f32 %v1805, %v2157
    %v2159 = vpop.f32.mrf.mxu0
    %v2160 = vadd.f32 %v1807, %v2159
    %v2161 = vpop.f32.mrf.mxu0
    %v2162 = vadd.f32 %v1809, %v2161
    %v2163 = vpop.f32.mrf.mxu0
    %v2164 = vadd.f32 %v1811, %v2163
    %2165 = vmatprep.mubr.bf16.mxu0 %v405
    %2166 = vmatmul.mubr.bf16.gmra.mxu0 %v404
    %v2167 = vpop.f32.mrf.mxu0
    %v2168 = vadd.f32 %v1815, %v2167
    %v2169 = vpop.f32.mrf.mxu0
    %v2170 = vadd.f32 %v1817, %v2169
    %v2171 = vpop.f32.mrf.mxu0
    %v2172 = vadd.f32 %v1819, %v2171
    %v2173 = vpop.f32.mrf.mxu0
    %v2174 = vadd.f32 %v1821, %v2173
    %2175 = vmatprep.mubr.bf16.mxu0 %v409
    %2176 = vmatmul.mubr.bf16.gmra.mxu0 %v408
    %v2177 = vpop.f32.mrf.mxu0
    %v2178 = vadd.f32 %v1825, %v2177
    %v2179 = vpop.f32.mrf.mxu0
    %v2180 = vadd.f32 %v1827, %v2179
    %v2181 = vpop.f32.mrf.mxu0
    %v2182 = vadd.f32 %v1829, %v2181
    %v2183 = vpop.f32.mrf.mxu0
    %v2184 = vadd.f32 %v1831, %v2183
    %2185 = vmatprep.mubr.bf16.mxu0 %v413
    %2186 = vmatmul.mubr.bf16.gmra.mxu0 %v412
    %v2187 = vpop.f32.mrf.mxu0
    %v2188 = vadd.f32 %v1835, %v2187
    %v2189 = vpop.f32.mrf.mxu0
    %v2190 = vadd.f32 %v1837, %v2189
    %v2191 = vpop.f32.mrf.mxu0
    %v2192 = vadd.f32 %v1839, %v2191
    %v2193 = vpop.f32.mrf.mxu0
    %v2194 = vadd.f32 %v1841, %v2193
    %2195 = vmatprep.mubr.bf16.mxu0 %v417
    %2196 = vmatmul.mubr.bf16.gmra.mxu0 %v416
    %v2197 = vpop.f32.mrf.mxu0
    %v2198 = vadd.f32 %v1845, %v2197
    %v2199 = vpop.f32.mrf.mxu0
    %v2200 = vadd.f32 %v1847, %v2199
    %v2201 = vpop.f32.mrf.mxu0
    %v2202 = vadd.f32 %v1849, %v2201
    %v2203 = vpop.f32.mrf.mxu0
    %v2204 = vadd.f32 %v1851, %v2203
    %2205 = vmatprep.mubr.bf16.mxu0 %v421
    %2206 = vmatmul.mubr.bf16.gmra.mxu0 %v420
    %v2207 = vpop.f32.mrf.mxu0
    %v2208 = vadd.f32 %v1855, %v2207
    %v2209 = vpop.f32.mrf.mxu0
    %v2210 = vadd.f32 %v1857, %v2209
    %v2211 = vpop.f32.mrf.mxu0
    %v2212 = vadd.f32 %v1859, %v2211
    %v2213 = vpop.f32.mrf.mxu0
    %v2214 = vadd.f32 %v1861, %v2213
    %2215 = vmatprep.mubr.bf16.mxu0 %v425
    %2216 = vmatmul.mubr.bf16.gmra.mxu0 %v424
    %v2217 = vpop.f32.mrf.mxu0
    %v2218 = vadd.f32 %v1865, %v2217
    %v2219 = vpop.f32.mrf.mxu0
    %v2220 = vadd.f32 %v1867, %v2219
    %v2221 = vpop.f32.mrf.mxu0
    %v2222 = vadd.f32 %v1869, %v2221
    %v2223 = vpop.f32.mrf.mxu0
    %v2224 = vadd.f32 %v1871, %v2223
    %2225 = vmatprep.mubr.bf16.mxu0 %v429
    %2226 = vmatmul.mubr.bf16.gmra.mxu0 %v428
    %v2227 = vpop.f32.mrf.mxu0
    %v2228 = vadd.f32 %v1875, %v2227
    %v2229 = vpop.f32.mrf.mxu0
    %v2230 = vadd.f32 %v1877, %v2229
    %v2231 = vpop.f32.mrf.mxu0
    %v2232 = vadd.f32 %v1879, %v2231
    %v2233 = vpop.f32.mrf.mxu0
    %v2234 = vadd.f32 %v1881, %v2233
    %2235 = vmatprep.mubr.bf16.mxu0 %v433
    %2236 = vmatmul.mubr.bf16.gmra.mxu0 %v432
    %v2237 = vpop.f32.mrf.mxu0
    %v2238 = vadd.f32 %v1885, %v2237
    %v2239 = vpop.f32.mrf.mxu0
    %v2240 = vadd.f32 %v1887, %v2239
    %v2241 = vpop.f32.mrf.mxu0
    %v2242 = vadd.f32 %v1889, %v2241
    %v2243 = vpop.f32.mrf.mxu0
    %v2244 = vadd.f32 %v1891, %v2243
    %2245 = vmatprep.mubr.bf16.mxu0 %v437
    %2246 = vmatmul.mubr.bf16.gmra.mxu0 %v436
    %v2247 = vpop.f32.mrf.mxu0
    %v2248 = vadd.f32 %v1895, %v2247
    %v2249 = vpop.f32.mrf.mxu0
    %v2250 = vadd.f32 %v1897, %v2249
    %v2251 = vpop.f32.mrf.mxu0
    %v2252 = vadd.f32 %v1899, %v2251
    %v2253 = vpop.f32.mrf.mxu0
    %v2254 = vadd.f32 %v1901, %v2253
    %2255 = vdwg.mxu0
    %v2256 = vmax.f32 %v1232, 0.0
    %v2257 = vmax.f32 %v1234, 0.0
    %v2258 = vmax.f32 %v1938, 0.0
    %v2259 = vmax.f32 %v1940, 0.0
    %v2260 = vmax.f32 %v1236, 0.0
    %v2261 = vmax.f32 %v1238, 0.0
    %v2262 = vmax.f32 %v1942, 0.0
    %v2263 = vmax.f32 %v1944, 0.0
    %v2264 = vmax.f32 %v1242, 0.0
    %v2265 = vmax.f32 %v1244, 0.0
    %v2266 = vmax.f32 %v1948, 0.0
    %v2267 = vmax.f32 %v1950, 0.0
    %v2268 = vmax.f32 %v1246, 0.0
    %v2269 = vmax.f32 %v1248, 0.0
    %v2270 = vmax.f32 %v1952, 0.0
    %v2271 = vmax.f32 %v1954, 0.0
    %v2272 = vmax.f32 %v1252, 0.0
    %v2273 = vmax.f32 %v1254, 0.0
    %v2274 = vmax.f32 %v1958, 0.0
    %v2275 = vmax.f32 %v1960, 0.0
    %v2276 = vmax.f32 %v1256, 0.0
    %v2277 = vmax.f32 %v1258, 0.0
    %v2278 = vmax.f32 %v1962, 0.0
    %v2279 = vmax.f32 %v1964, 0.0
    %v2280 = vmax.f32 %v1262, 0.0
    %v2281 = vmax.f32 %v1264, 0.0
    %v2282 = vmax.f32 %v1968, 0.0
    %v2283 = vmax.f32 %v1970, 0.0
    %v2284 = vmax.f32 %v1266, 0.0
    %v2285 = vmax.f32 %v1268, 0.0
    %v2286 = vmax.f32 %v1972, 0.0
    %v2287 = vmax.f32 %v1974, 0.0
    %v2288 = vmax.f32 %v1272, 0.0
    %v2289 = vmax.f32 %v1274, 0.0
    %v2290 = vmax.f32 %v1978, 0.0
    %v2291 = vmax.f32 %v1980, 0.0
    %v2292 = vmax.f32 %v1276, 0.0
    %v2293 = vmax.f32 %v1278, 0.0
    %v2294 = vmax.f32 %v1982, 0.0
    %v2295 = vmax.f32 %v1984, 0.0
    %v2296 = vmax.f32 %v1282, 0.0
    %v2297 = vmax.f32 %v1284, 0.0
    %v2298 = vmax.f32 %v1988, 0.0
    %v2299 = vmax.f32 %v1990, 0.0
    %v2300 = vmax.f32 %v1286, 0.0
    %v2301 = vmax.f32 %v1288, 0.0
    %v2302 = vmax.f32 %v1992, 0.0
    %v2303 = vmax.f32 %v1994, 0.0
    %v2304 = vmax.f32 %v1292, 0.0
    %v2305 = vmax.f32 %v1294, 0.0
    %v2306 = vmax.f32 %v1998, 0.0
    %v2307 = vmax.f32 %v2000, 0.0
    %v2308 = vmax.f32 %v1296, 0.0
    %v2309 = vmax.f32 %v1298, 0.0
    %v2310 = vmax.f32 %v2002, 0.0
    %v2311 = vmax.f32 %v2004, 0.0
    %v2312 = vmax.f32 %v1302, 0.0
    %v2313 = vmax.f32 %v1304, 0.0
    %v2314 = vmax.f32 %v2008, 0.0
    %v2315 = vmax.f32 %v2010, 0.0
    %v2316 = vmax.f32 %v1306, 0.0
    %v2317 = vmax.f32 %v1308, 0.0
    %v2318 = vmax.f32 %v2012, 0.0
    %v2319 = vmax.f32 %v2014, 0.0
    %v2320 = vmax.f32 %v1312, 0.0
    %v2321 = vmax.f32 %v1314, 0.0
    %v2322 = vmax.f32 %v2018, 0.0
    %v2323 = vmax.f32 %v2020, 0.0
    %v2324 = vmax.f32 %v1316, 0.0
    %v2325 = vmax.f32 %v1318, 0.0
    %v2326 = vmax.f32 %v2022, 0.0
    %v2327 = vmax.f32 %v2024, 0.0
    %v2328 = vmax.f32 %v1322, 0.0
    %v2329 = vmax.f32 %v1324, 0.0
    %v2330 = vmax.f32 %v2028, 0.0
    %v2331 = vmax.f32 %v2030, 0.0
    %v2332 = vmax.f32 %v1326, 0.0
    %v2333 = vmax.f32 %v1328, 0.0
    %v2334 = vmax.f32 %v2032, 0.0
    %v2335 = vmax.f32 %v2034, 0.0
    %v2336 = vmax.f32 %v1332, 0.0
    %v2337 = vmax.f32 %v1334, 0.0
    %v2338 = vmax.f32 %v2038, 0.0
    %v2339 = vmax.f32 %v2040, 0.0
    %v2340 = vmax.f32 %v1336, 0.0
    %v2341 = vmax.f32 %v1338, 0.0
    %v2342 = vmax.f32 %v2042, 0.0
    %v2343 = vmax.f32 %v2044, 0.0
    %v2344 = vmax.f32 %v1342, 0.0
    %v2345 = vmax.f32 %v1344, 0.0
    %v2346 = vmax.f32 %v2048, 0.0
    %v2347 = vmax.f32 %v2050, 0.0
    %v2348 = vmax.f32 %v1346, 0.0
    %v2349 = vmax.f32 %v1348, 0.0
    %v2350 = vmax.f32 %v2052, 0.0
    %v2351 = vmax.f32 %v2054, 0.0
    %v2352 = vmax.f32 %v1352, 0.0
    %v2353 = vmax.f32 %v1354, 0.0
    %v2354 = vmax.f32 %v2058, 0.0
    %v2355 = vmax.f32 %v2060, 0.0
    %v2356 = vmax.f32 %v1356, 0.0
    %v2357 = vmax.f32 %v1358, 0.0
    %v2358 = vmax.f32 %v2062, 0.0
    %v2359 = vmax.f32 %v2064, 0.0
    %v2360 = vmax.f32 %v1362, 0.0
    %v2361 = vmax.f32 %v1364, 0.0
    %v2362 = vmax.f32 %v2068, 0.0
    %v2363 = vmax.f32 %v2070, 0.0
    %v2364 = vmax.f32 %v1366, 0.0
    %v2365 = vmax.f32 %v1368, 0.0
    %v2366 = vmax.f32 %v2072, 0.0
    %v2367 = vmax.f32 %v2074, 0.0
    %v2368 = vmax.f32 %v1372, 0.0
    %v2369 = vmax.f32 %v1374, 0.0
    %v2370 = vmax.f32 %v2078, 0.0
    %v2371 = vmax.f32 %v2080, 0.0
    %v2372 = vmax.f32 %v1376, 0.0
    %v2373 = vmax.f32 %v1378, 0.0
    %v2374 = vmax.f32 %v2082, 0.0
    %v2375 = vmax.f32 %v2084, 0.0
    %v2376 = vmax.f32 %v1382, 0.0
    %v2377 = vmax.f32 %v1384, 0.0
    %v2378 = vmax.f32 %v2088, 0.0
    %v2379 = vmax.f32 %v2090, 0.0
    %v2380 = vmax.f32 %v1386, 0.0
    %v2381 = vmax.f32 %v1388, 0.0
    %v2382 = vmax.f32 %v2092, 0.0
    %v2383 = vmax.f32 %v2094, 0.0
    %v2384 = vmax.f32 %v1392, 0.0
    %v2385 = vmax.f32 %v1394, 0.0
    %v2386 = vmax.f32 %v2098, 0.0
    %v2387 = vmax.f32 %v2100, 0.0
    %v2388 = vmax.f32 %v1396, 0.0
    %v2389 = vmax.f32 %v1398, 0.0
    %v2390 = vmax.f32 %v2102, 0.0
    %v2391 = vmax.f32 %v2104, 0.0
    %v2392 = vmax.f32 %v1402, 0.0
    %v2393 = vmax.f32 %v1404, 0.0
    %v2394 = vmax.f32 %v2108, 0.0
    %v2395 = vmax.f32 %v2110, 0.0
    %v2396 = vmax.f32 %v1406, 0.0
    %v2397 = vmax.f32 %v1408, 0.0
    %v2398 = vmax.f32 %v2112, 0.0
    %v2399 = vmax.f32 %v2114, 0.0
    %v2400 = vmax.f32 %v1412, 0.0
    %v2401 = vmax.f32 %v1414, 0.0
    %v2402 = vmax.f32 %v2118, 0.0
    %v2403 = vmax.f32 %v2120, 0.0
    %v2404 = vmax.f32 %v1416, 0.0
    %v2405 = vmax.f32 %v1418, 0.0
    %v2406 = vmax.f32 %v2122, 0.0
    %v2407 = vmax.f32 %v2124, 0.0
    %v2408 = vmax.f32 %v1422, 0.0
    %v2409 = vmax.f32 %v1424, 0.0
    %v2410 = vmax.f32 %v2128, 0.0
    %v2411 = vmax.f32 %v2130, 0.0
    %v2412 = vmax.f32 %v1426, 0.0
    %v2413 = vmax.f32 %v1428, 0.0
    %v2414 = vmax.f32 %v2132, 0.0
    %v2415 = vmax.f32 %v2134, 0.0
    %v2416 = vmax.f32 %v1432, 0.0
    %v2417 = vmax.f32 %v1434, 0.0
    %v2418 = vmax.f32 %v2138, 0.0
    %v2419 = vmax.f32 %v2140, 0.0
    %v2420 = vmax.f32 %v1436, 0.0
    %v2421 = vmax.f32 %v1438, 0.0
    %v2422 = vmax.f32 %v2142, 0.0
    %v2423 = vmax.f32 %v2144, 0.0
    %v2424 = vmax.f32 %v1442, 0.0
    %v2425 = vmax.f32 %v1444, 0.0
    %v2426 = vmax.f32 %v2148, 0.0
    %v2427 = vmax.f32 %v2150, 0.0
    %v2428 = vmax.f32 %v1446, 0.0
    %v2429 = vmax.f32 %v1448, 0.0
    %v2430 = vmax.f32 %v2152, 0.0
    %v2431 = vmax.f32 %v2154, 0.0
    %v2432 = vmax.f32 %v1452, 0.0
    %v2433 = vmax.f32 %v1454, 0.0
    %v2434 = vmax.f32 %v2158, 0.0
    %v2435 = vmax.f32 %v2160, 0.0
    %v2436 = vmax.f32 %v1456, 0.0
    %v2437 = vmax.f32 %v1458, 0.0
    %v2438 = vmax.f32 %v2162, 0.0
    %v2439 = vmax.f32 %v2164, 0.0
    %v2440 = vmax.f32 %v1462, 0.0
    %v2441 = vmax.f32 %v1464, 0.0
    %v2442 = vmax.f32 %v2168, 0.0
    %v2443 = vmax.f32 %v2170, 0.0
    %v2444 = vmax.f32 %v1466, 0.0
    %v2445 = vmax.f32 %v1468, 0.0
    %v2446 = vmax.f32 %v2172, 0.0
    %v2447 = vmax.f32 %v2174, 0.0
    %v2448 = vmax.f32 %v1472, 0.0
    %v2449 = vmax.f32 %v1474, 0.0
    %v2450 = vmax.f32 %v2178, 0.0
    %v2451 = vmax.f32 %v2180, 0.0
    %v2452 = vmax.f32 %v1476, 0.0
    %v2453 = vmax.f32 %v1478, 0.0
    %v2454 = vmax.f32 %v2182, 0.0
    %v2455 = vmax.f32 %v2184, 0.0
    %v2456 = vmax.f32 %v1482, 0.0
    %v2457 = vmax.f32 %v1484, 0.0
    %v2458 = vmax.f32 %v2188, 0.0
    %v2459 = vmax.f32 %v2190, 0.0
    %v2460 = vmax.f32 %v1486, 0.0
    %v2461 = vmax.f32 %v1488, 0.0
    %v2462 = vmax.f32 %v2192, 0.0
    %v2463 = vmax.f32 %v2194, 0.0
    %v2464 = vmax.f32 %v1492, 0.0
    %v2465 = vmax.f32 %v1494, 0.0
    %v2466 = vmax.f32 %v2198, 0.0
    %v2467 = vmax.f32 %v2200, 0.0
    %v2468 = vmax.f32 %v1496, 0.0
    %v2469 = vmax.f32 %v1498, 0.0
    %v2470 = vmax.f32 %v2202, 0.0
    %v2471 = vmax.f32 %v2204, 0.0
    %v2472 = vmax.f32 %v1502, 0.0
    %v2473 = vmax.f32 %v1504, 0.0
    %v2474 = vmax.f32 %v2208, 0.0
    %v2475 = vmax.f32 %v2210, 0.0
    %v2476 = vmax.f32 %v1506, 0.0
    %v2477 = vmax.f32 %v1508, 0.0
    %v2478 = vmax.f32 %v2212, 0.0
    %v2479 = vmax.f32 %v2214, 0.0
    %v2480 = vmax.f32 %v1512, 0.0
    %v2481 = vmax.f32 %v1514, 0.0
    %v2482 = vmax.f32 %v2218, 0.0
    %v2483 = vmax.f32 %v2220, 0.0
    %v2484 = vmax.f32 %v1516, 0.0
    %v2485 = vmax.f32 %v1518, 0.0
    %v2486 = vmax.f32 %v2222, 0.0
    %v2487 = vmax.f32 %v2224, 0.0
    %v2488 = vmax.f32 %v1522, 0.0
    %v2489 = vmax.f32 %v1524, 0.0
    %v2490 = vmax.f32 %v2228, 0.0
    %v2491 = vmax.f32 %v2230, 0.0
    %v2492 = vmax.f32 %v1526, 0.0
    %v2493 = vmax.f32 %v1528, 0.0
    %v2494 = vmax.f32 %v2232, 0.0
    %v2495 = vmax.f32 %v2234, 0.0
    %v2496 = vmax.f32 %v1532, 0.0
    %v2497 = vmax.f32 %v1534, 0.0
    %v2498 = vmax.f32 %v2238, 0.0
    %v2499 = vmax.f32 %v2240, 0.0
    %v2500 = vmax.f32 %v1536, 0.0
    %v2501 = vmax.f32 %v1538, 0.0
    %v2502 = vmax.f32 %v2242, 0.0
    %v2503 = vmax.f32 %v2244, 0.0
    %v2504 = vmax.f32 %v1542, 0.0
    %v2505 = vmax.f32 %v1544, 0.0
    %v2506 = vmax.f32 %v2248, 0.0
    %v2507 = vmax.f32 %v2250, 0.0
    %v2508 = vmax.f32 %v1546, 0.0
    %v2509 = vmax.f32 %v1548, 0.0
    %v2510 = vmax.f32 %v2252, 0.0
    %v2511 = vmax.f32 %v2254, 0.0
    %2512 = vst [vmem:[#allocation8] sm:$0xff] %v2256
    %2513 = vst [vmem:[#allocation8 + $0x8] sm:$0xff] %v2257
    %2514 = vst [vmem:[#allocation8 + $0x10] sm:$0xff] %v2258
    %2515 = vst [vmem:[#allocation8 + $0x18] sm:$0xff] %v2259
    %2516 = vst [vmem:[#allocation8 + $0x20] sm:$0xff] %v2260
    %2517 = vst [vmem:[#allocation8 + $0x28] sm:$0xff] %v2261
    %2518 = vst [vmem:[#allocation8 + $0x30] sm:$0xff] %v2262
    %2519 = vst [vmem:[#allocation8 + $0x38] sm:$0xff] %v2263
    %2520 = vst [vmem:[#allocation8 + $0x40] sm:$0xff] %v2264
    %2521 = vst [vmem:[#allocation8 + $0x48] sm:$0xff] %v2265
    %2522 = vst [vmem:[#allocation8 + $0x50] sm:$0xff] %v2266
    %2523 = vst [vmem:[#allocation8 + $0x58] sm:$0xff] %v2267
    %2524 = vst [vmem:[#allocation8 + $0x60] sm:$0xff] %v2268
    %2525 = vst [vmem:[#allocation8 + $0x68] sm:$0xff] %v2269
    %2526 = vst [vmem:[#allocation8 + $0x70] sm:$0xff] %v2270
    %2527 = vst [vmem:[#allocation8 + $0x78] sm:$0xff] %v2271
    %2528 = vst [vmem:[#allocation8 + $0x80] sm:$0xff] %v2272
    %2529 = vst [vmem:[#allocation8 + $0x88] sm:$0xff] %v2273
    %2530 = vst [vmem:[#allocation8 + $0x90] sm:$0xff] %v2274
    %2531 = vst [vmem:[#allocation8 + $0x98] sm:$0xff] %v2275
    %2532 = vst [vmem:[#allocation8 + $0xa0] sm:$0xff] %v2276
    %2533 = vst [vmem:[#allocation8 + $0xa8] sm:$0xff] %v2277
    %2534 = vst [vmem:[#allocation8 + $0xb0] sm:$0xff] %v2278
    %2535 = vst [vmem:[#allocation8 + $0xb8] sm:$0xff] %v2279
    %2536 = vst [vmem:[#allocation8 + $0xc0] sm:$0xff] %v2280
    %2537 = vst [vmem:[#allocation8 + $0xc8] sm:$0xff] %v2281
    %2538 = vst [vmem:[#allocation8 + $0xd0] sm:$0xff] %v2282
    %2539 = vst [vmem:[#allocation8 + $0xd8] sm:$0xff] %v2283
    %2540 = vst [vmem:[#allocation8 + $0xe0] sm:$0xff] %v2284
    %2541 = vst [vmem:[#allocation8 + $0xe8] sm:$0xff] %v2285
    %2542 = vst [vmem:[#allocation8 + $0xf0] sm:$0xff] %v2286
    %2543 = vst [vmem:[#allocation8 + $0xf8] sm:$0xff] %v2287
    %2544 = vst [vmem:[#allocation8 + $0x100] sm:$0xff] %v2288
    %2545 = vst [vmem:[#allocation8 + $0x108] sm:$0xff] %v2289
    %2546 = vst [vmem:[#allocation8 + $0x110] sm:$0xff] %v2290
    %2547 = vst [vmem:[#allocation8 + $0x118] sm:$0xff] %v2291
    %2548 = vst [vmem:[#allocation8 + $0x120] sm:$0xff] %v2292
    %2549 = vst [vmem:[#allocation8 + $0x128] sm:$0xff] %v2293
    %2550 = vst [vmem:[#allocation8 + $0x130] sm:$0xff] %v2294
    %2551 = vst [vmem:[#allocation8 + $0x138] sm:$0xff] %v2295
    %2552 = vst [vmem:[#allocation8 + $0x140] sm:$0xff] %v2296
    %2553 = vst [vmem:[#allocation8 + $0x148] sm:$0xff] %v2297
    %2554 = vst [vmem:[#allocation8 + $0x150] sm:$0xff] %v2298
    %2555 = vst [vmem:[#allocation8 + $0x158] sm:$0xff] %v2299
    %2556 = vst [vmem:[#allocation8 + $0x160] sm:$0xff] %v2300
    %2557 = vst [vmem:[#allocation8 + $0x168] sm:$0xff] %v2301
    %2558 = vst [vmem:[#allocation8 + $0x170] sm:$0xff] %v2302
    %2559 = vst [vmem:[#allocation8 + $0x178] sm:$0xff] %v2303
    %2560 = vst [vmem:[#allocation8 + $0x180] sm:$0xff] %v2304
    %2561 = vst [vmem:[#allocation8 + $0x188] sm:$0xff] %v2305
    %2562 = vst [vmem:[#allocation8 + $0x190] sm:$0xff] %v2306
    %2563 = vst [vmem:[#allocation8 + $0x198] sm:$0xff] %v2307
    %2564 = vst [vmem:[#allocation8 + $0x1a0] sm:$0xff] %v2308
    %2565 = vst [vmem:[#allocation8 + $0x1a8] sm:$0xff] %v2309
    %2566 = vst [vmem:[#allocation8 + $0x1b0] sm:$0xff] %v2310
    %2567 = vst [vmem:[#allocation8 + $0x1b8] sm:$0xff] %v2311
    %2568 = vst [vmem:[#allocation8 + $0x1c0] sm:$0xff] %v2312
    %2569 = vst [vmem:[#allocation8 + $0x1c8] sm:$0xff] %v2313
    %2570 = vst [vmem:[#allocation8 + $0x1d0] sm:$0xff] %v2314
    %2571 = vst [vmem:[#allocation8 + $0x1d8] sm:$0xff] %v2315
    %2572 = vst [vmem:[#allocation8 + $0x1e0] sm:$0xff] %v2316
    %2573 = vst [vmem:[#allocation8 + $0x1e8] sm:$0xff] %v2317
    %2574 = vst [vmem:[#allocation8 + $0x1f0] sm:$0xff] %v2318
    %2575 = vst [vmem:[#allocation8 + $0x1f8] sm:$0xff] %v2319
    %2576 = vst [vmem:[#allocation8 + $0x200] sm:$0xff] %v2320
    %2577 = vst [vmem:[#allocation8 + $0x208] sm:$0xff] %v2321
    %2578 = vst [vmem:[#allocation8 + $0x210] sm:$0xff] %v2322
    %2579 = vst [vmem:[#allocation8 + $0x218] sm:$0xff] %v2323
    %2580 = vst [vmem:[#allocation8 + $0x220] sm:$0xff] %v2324
    %2581 = vst [vmem:[#allocation8 + $0x228] sm:$0xff] %v2325
    %2582 = vst [vmem:[#allocation8 + $0x230] sm:$0xff] %v2326
    %2583 = vst [vmem:[#allocation8 + $0x238] sm:$0xff] %v2327
    %2584 = vst [vmem:[#allocation8 + $0x240] sm:$0xff] %v2328
    %2585 = vst [vmem:[#allocation8 + $0x248] sm:$0xff] %v2329
    %2586 = vst [vmem:[#allocation8 + $0x250] sm:$0xff] %v2330
    %2587 = vst [vmem:[#allocation8 + $0x258] sm:$0xff] %v2331
    %2588 = vst [vmem:[#allocation8 + $0x260] sm:$0xff] %v2332
    %2589 = vst [vmem:[#allocation8 + $0x268] sm:$0xff] %v2333
    %2590 = vst [vmem:[#allocation8 + $0x270] sm:$0xff] %v2334
    %2591 = vst [vmem:[#allocation8 + $0x278] sm:$0xff] %v2335
    %2592 = vst [vmem:[#allocation8 + $0x280] sm:$0xff] %v2336
    %2593 = vst [vmem:[#allocation8 + $0x288] sm:$0xff] %v2337
    %2594 = vst [vmem:[#allocation8 + $0x290] sm:$0xff] %v2338
    %2595 = vst [vmem:[#allocation8 + $0x298] sm:$0xff] %v2339
    %2596 = vst [vmem:[#allocation8 + $0x2a0] sm:$0xff] %v2340
    %2597 = vst [vmem:[#allocation8 + $0x2a8] sm:$0xff] %v2341
    %2598 = vst [vmem:[#allocation8 + $0x2b0] sm:$0xff] %v2342
    %2599 = vst [vmem:[#allocation8 + $0x2b8] sm:$0xff] %v2343
    %2600 = vst [vmem:[#allocation8 + $0x2c0] sm:$0xff] %v2344
    %2601 = vst [vmem:[#allocation8 + $0x2c8] sm:$0xff] %v2345
    %2602 = vst [vmem:[#allocation8 + $0x2d0] sm:$0xff] %v2346
    %2603 = vst [vmem:[#allocation8 + $0x2d8] sm:$0xff] %v2347
    %2604 = vst [vmem:[#allocation8 + $0x2e0] sm:$0xff] %v2348
    %2605 = vst [vmem:[#allocation8 + $0x2e8] sm:$0xff] %v2349
    %2606 = vst [vmem:[#allocation8 + $0x2f0] sm:$0xff] %v2350
    %2607 = vst [vmem:[#allocation8 + $0x2f8] sm:$0xff] %v2351
    %2608 = vst [vmem:[#allocation8 + $0x300] sm:$0xff] %v2352
    %2609 = vst [vmem:[#allocation8 + $0x308] sm:$0xff] %v2353
    %2610 = vst [vmem:[#allocation8 + $0x310] sm:$0xff] %v2354
    %2611 = vst [vmem:[#allocation8 + $0x318] sm:$0xff] %v2355
    %2612 = vst [vmem:[#allocation8 + $0x320] sm:$0xff] %v2356
    %2613 = vst [vmem:[#allocation8 + $0x328] sm:$0xff] %v2357
    %2614 = vst [vmem:[#allocation8 + $0x330] sm:$0xff] %v2358
    %2615 = vst [vmem:[#allocation8 + $0x338] sm:$0xff] %v2359
    %2616 = vst [vmem:[#allocation8 + $0x340] sm:$0xff] %v2360
    %2617 = vst [vmem:[#allocation8 + $0x348] sm:$0xff] %v2361
    %2618 = vst [vmem:[#allocation8 + $0x350] sm:$0xff] %v2362
    %2619 = vst [vmem:[#allocation8 + $0x358] sm:$0xff] %v2363
    %2620 = vst [vmem:[#allocation8 + $0x360] sm:$0xff] %v2364
    %2621 = vst [vmem:[#allocation8 + $0x368] sm:$0xff] %v2365
    %2622 = vst [vmem:[#allocation8 + $0x370] sm:$0xff] %v2366
    %2623 = vst [vmem:[#allocation8 + $0x378] sm:$0xff] %v2367
    %2624 = vst [vmem:[#allocation8 + $0x380] sm:$0xff] %v2368
    %2625 = vst [vmem:[#allocation8 + $0x388] sm:$0xff] %v2369
    %2626 = vst [vmem:[#allocation8 + $0x390] sm:$0xff] %v2370
    %2627 = vst [vmem:[#allocation8 + $0x398] sm:$0xff] %v2371
    %2628 = vst [vmem:[#allocation8 + $0x3a0] sm:$0xff] %v2372
    %2629 = vst [vmem:[#allocation8 + $0x3a8] sm:$0xff] %v2373
    %2630 = vst [vmem:[#allocation8 + $0x3b0] sm:$0xff] %v2374
    %2631 = vst [vmem:[#allocation8 + $0x3b8] sm:$0xff] %v2375
    %2632 = vst [vmem:[#allocation8 + $0x3c0] sm:$0xff] %v2376
    %2633 = vst [vmem:[#allocation8 + $0x3c8] sm:$0xff] %v2377
    %2634 = vst [vmem:[#allocation8 + $0x3d0] sm:$0xff] %v2378
    %2635 = vst [vmem:[#allocation8 + $0x3d8] sm:$0xff] %v2379
    %2636 = vst [vmem:[#allocation8 + $0x3e0] sm:$0xff] %v2380
    %2637 = vst [vmem:[#allocation8 + $0x3e8] sm:$0xff] %v2381
    %2638 = vst [vmem:[#allocation8 + $0x3f0] sm:$0xff] %v2382
    %2639 = vst [vmem:[#allocation8 + $0x3f8] sm:$0xff] %v2383
    %2640 = vst [vmem:[#allocation8 + $0x400] sm:$0xff] %v2384
    %2641 = vst [vmem:[#allocation8 + $0x408] sm:$0xff] %v2385
    %2642 = vst [vmem:[#allocation8 + $0x410] sm:$0xff] %v2386
    %2643 = vst [vmem:[#allocation8 + $0x418] sm:$0xff] %v2387
    %2644 = vst [vmem:[#allocation8 + $0x420] sm:$0xff] %v2388
    %2645 = vst [vmem:[#allocation8 + $0x428] sm:$0xff] %v2389
    %2646 = vst [vmem:[#allocation8 + $0x430] sm:$0xff] %v2390
    %2647 = vst [vmem:[#allocation8 + $0x438] sm:$0xff] %v2391
    %2648 = vst [vmem:[#allocation8 + $0x440] sm:$0xff] %v2392
    %2649 = vst [vmem:[#allocation8 + $0x448] sm:$0xff] %v2393
    %2650 = vst [vmem:[#allocation8 + $0x450] sm:$0xff] %v2394
    %2651 = vst [vmem:[#allocation8 + $0x458] sm:$0xff] %v2395
    %2652 = vst [vmem:[#allocation8 + $0x460] sm:$0xff] %v2396
    %2653 = vst [vmem:[#allocation8 + $0x468] sm:$0xff] %v2397
    %2654 = vst [vmem:[#allocation8 + $0x470] sm:$0xff] %v2398
    %2655 = vst [vmem:[#allocation8 + $0x478] sm:$0xff] %v2399
    %2656 = vst [vmem:[#allocation8 + $0x480] sm:$0xff] %v2400
    %2657 = vst [vmem:[#allocation8 + $0x488] sm:$0xff] %v2401
    %2658 = vst [vmem:[#allocation8 + $0x490] sm:$0xff] %v2402
    %2659 = vst [vmem:[#allocation8 + $0x498] sm:$0xff] %v2403
    %2660 = vst [vmem:[#allocation8 + $0x4a0] sm:$0xff] %v2404
    %2661 = vst [vmem:[#allocation8 + $0x4a8] sm:$0xff] %v2405
    %2662 = vst [vmem:[#allocation8 + $0x4b0] sm:$0xff] %v2406
    %2663 = vst [vmem:[#allocation8 + $0x4b8] sm:$0xff] %v2407
    %2664 = vst [vmem:[#allocation8 + $0x4c0] sm:$0xff] %v2408
    %2665 = vst [vmem:[#allocation8 + $0x4c8] sm:$0xff] %v2409
    %2666 = vst [vmem:[#allocation8 + $0x4d0] sm:$0xff] %v2410
    %2667 = vst [vmem:[#allocation8 + $0x4d8] sm:$0xff] %v2411
    %2668 = vst [vmem:[#allocation8 + $0x4e0] sm:$0xff] %v2412
    %2669 = vst [vmem:[#allocation8 + $0x4e8] sm:$0xff] %v2413
    %2670 = vst [vmem:[#allocation8 + $0x4f0] sm:$0xff] %v2414
    %2671 = vst [vmem:[#allocation8 + $0x4f8] sm:$0xff] %v2415
    %2672 = vst [vmem:[#allocation8 + $0x500] sm:$0xff] %v2416
    %2673 = vst [vmem:[#allocation8 + $0x508] sm:$0xff] %v2417
    %2674 = vst [vmem:[#allocation8 + $0x510] sm:$0xff] %v2418
    %2675 = vst [vmem:[#allocation8 + $0x518] sm:$0xff] %v2419
    %2676 = vst [vmem:[#allocation8 + $0x520] sm:$0xff] %v2420
    %2677 = vst [vmem:[#allocation8 + $0x528] sm:$0xff] %v2421
    %2678 = vst [vmem:[#allocation8 + $0x530] sm:$0xff] %v2422
    %2679 = vst [vmem:[#allocation8 + $0x538] sm:$0xff] %v2423
    %2680 = vst [vmem:[#allocation8 + $0x540] sm:$0xff] %v2424
    %2681 = vst [vmem:[#allocation8 + $0x548] sm:$0xff] %v2425
    %2682 = vst [vmem:[#allocation8 + $0x550] sm:$0xff] %v2426
    %2683 = vst [vmem:[#allocation8 + $0x558] sm:$0xff] %v2427
    %2684 = vst [vmem:[#allocation8 + $0x560] sm:$0xff] %v2428
    %2685 = vst [vmem:[#allocation8 + $0x568] sm:$0xff] %v2429
    %2686 = vst [vmem:[#allocation8 + $0x570] sm:$0xff] %v2430
    %2687 = vst [vmem:[#allocation8 + $0x578] sm:$0xff] %v2431
    %2688 = vst [vmem:[#allocation8 + $0x580] sm:$0xff] %v2432
    %2689 = vst [vmem:[#allocation8 + $0x588] sm:$0xff] %v2433
    %2690 = vst [vmem:[#allocation8 + $0x590] sm:$0xff] %v2434
    %2691 = vst [vmem:[#allocation8 + $0x598] sm:$0xff] %v2435
    %2692 = vst [vmem:[#allocation8 + $0x5a0] sm:$0xff] %v2436
    %2693 = vst [vmem:[#allocation8 + $0x5a8] sm:$0xff] %v2437
    %2694 = vst [vmem:[#allocation8 + $0x5b0] sm:$0xff] %v2438
    %2695 = vst [vmem:[#allocation8 + $0x5b8] sm:$0xff] %v2439
    %2696 = vst [vmem:[#allocation8 + $0x5c0] sm:$0xff] %v2440
    %2697 = vst [vmem:[#allocation8 + $0x5c8] sm:$0xff] %v2441
    %2698 = vst [vmem:[#allocation8 + $0x5d0] sm:$0xff] %v2442
    %2699 = vst [vmem:[#allocation8 + $0x5d8] sm:$0xff] %v2443
    %2700 = vst [vmem:[#allocation8 + $0x5e0] sm:$0xff] %v2444
    %2701 = vst [vmem:[#allocation8 + $0x5e8] sm:$0xff] %v2445
    %2702 = vst [vmem:[#allocation8 + $0x5f0] sm:$0xff] %v2446
    %2703 = vst [vmem:[#allocation8 + $0x5f8] sm:$0xff] %v2447
    %2704 = vst [vmem:[#allocation8 + $0x600] sm:$0xff] %v2448
    %2705 = vst [vmem:[#allocation8 + $0x608] sm:$0xff] %v2449
    %2706 = vst [vmem:[#allocation8 + $0x610] sm:$0xff] %v2450
    %2707 = vst [vmem:[#allocation8 + $0x618] sm:$0xff] %v2451
    %2708 = vst [vmem:[#allocation8 + $0x620] sm:$0xff] %v2452
    %2709 = vst [vmem:[#allocation8 + $0x628] sm:$0xff] %v2453
    %2710 = vst [vmem:[#allocation8 + $0x630] sm:$0xff] %v2454
    %2711 = vst [vmem:[#allocation8 + $0x638] sm:$0xff] %v2455
    %2712 = vst [vmem:[#allocation8 + $0x640] sm:$0xff] %v2456
    %2713 = vst [vmem:[#allocation8 + $0x648] sm:$0xff] %v2457
    %2714 = vst [vmem:[#allocation8 + $0x650] sm:$0xff] %v2458
    %2715 = vst [vmem:[#allocation8 + $0x658] sm:$0xff] %v2459
    %2716 = vst [vmem:[#allocation8 + $0x660] sm:$0xff] %v2460
    %2717 = vst [vmem:[#allocation8 + $0x668] sm:$0xff] %v2461
    %2718 = vst [vmem:[#allocation8 + $0x670] sm:$0xff] %v2462
    %2719 = vst [vmem:[#allocation8 + $0x678] sm:$0xff] %v2463
    %2720 = vst [vmem:[#allocation8 + $0x680] sm:$0xff] %v2464
    %2721 = vst [vmem:[#allocation8 + $0x688] sm:$0xff] %v2465
    %2722 = vst [vmem:[#allocation8 + $0x690] sm:$0xff] %v2466
    %2723 = vst [vmem:[#allocation8 + $0x698] sm:$0xff] %v2467
    %2724 = vst [vmem:[#allocation8 + $0x6a0] sm:$0xff] %v2468
    %2725 = vst [vmem:[#allocation8 + $0x6a8] sm:$0xff] %v2469
    %2726 = vst [vmem:[#allocation8 + $0x6b0] sm:$0xff] %v2470
    %2727 = vst [vmem:[#allocation8 + $0x6b8] sm:$0xff] %v2471
    %2728 = vst [vmem:[#allocation8 + $0x6c0] sm:$0xff] %v2472
    %2729 = vst [vmem:[#allocation8 + $0x6c8] sm:$0xff] %v2473
    %2730 = vst [vmem:[#allocation8 + $0x6d0] sm:$0xff] %v2474
    %2731 = vst [vmem:[#allocation8 + $0x6d8] sm:$0xff] %v2475
    %2732 = vst [vmem:[#allocation8 + $0x6e0] sm:$0xff] %v2476
    %2733 = vst [vmem:[#allocation8 + $0x6e8] sm:$0xff] %v2477
    %2734 = vst [vmem:[#allocation8 + $0x6f0] sm:$0xff] %v2478
    %2735 = vst [vmem:[#allocation8 + $0x6f8] sm:$0xff] %v2479
    %2736 = vst [vmem:[#allocation8 + $0x700] sm:$0xff] %v2480
    %2737 = vst [vmem:[#allocation8 + $0x708] sm:$0xff] %v2481
    %2738 = vst [vmem:[#allocation8 + $0x710] sm:$0xff] %v2482
    %2739 = vst [vmem:[#allocation8 + $0x718] sm:$0xff] %v2483
    %2740 = vst [vmem:[#allocation8 + $0x720] sm:$0xff] %v2484
    %2741 = vst [vmem:[#allocation8 + $0x728] sm:$0xff] %v2485
    %2742 = vst [vmem:[#allocation8 + $0x730] sm:$0xff] %v2486
    %2743 = vst [vmem:[#allocation8 + $0x738] sm:$0xff] %v2487
    %2744 = vst [vmem:[#allocation8 + $0x740] sm:$0xff] %v2488
    %2745 = vst [vmem:[#allocation8 + $0x748] sm:$0xff] %v2489
    %2746 = vst [vmem:[#allocation8 + $0x750] sm:$0xff] %v2490
    %2747 = vst [vmem:[#allocation8 + $0x758] sm:$0xff] %v2491
    %2748 = vst [vmem:[#allocation8 + $0x760] sm:$0xff] %v2492
    %2749 = vst [vmem:[#allocation8 + $0x768] sm:$0xff] %v2493
    %2750 = vst [vmem:[#allocation8 + $0x770] sm:$0xff] %v2494
    %2751 = vst [vmem:[#allocation8 + $0x778] sm:$0xff] %v2495
    %2752 = vst [vmem:[#allocation8 + $0x780] sm:$0xff] %v2496
    %2753 = vst [vmem:[#allocation8 + $0x788] sm:$0xff] %v2497
    %2754 = vst [vmem:[#allocation8 + $0x790] sm:$0xff] %v2498
    %2755 = vst [vmem:[#allocation8 + $0x798] sm:$0xff] %v2499
    %2756 = vst [vmem:[#allocation8 + $0x7a0] sm:$0xff] %v2500
    %2757 = vst [vmem:[#allocation8 + $0x7a8] sm:$0xff] %v2501
    %2758 = vst [vmem:[#allocation8 + $0x7b0] sm:$0xff] %v2502
    %2759 = vst [vmem:[#allocation8 + $0x7b8] sm:$0xff] %v2503
    %2760 = vst [vmem:[#allocation8 + $0x7c0] sm:$0xff] %v2504
    %2761 = vst [vmem:[#allocation8 + $0x7c8] sm:$0xff] %v2505
    %2762 = vst [vmem:[#allocation8 + $0x7d0] sm:$0xff] %v2506
    %2763 = vst [vmem:[#allocation8 + $0x7d8] sm:$0xff] %v2507
    %2764 = vst [vmem:[#allocation8 + $0x7e0] sm:$0xff] %v2508
    %2765 = vst [vmem:[#allocation8 + $0x7e8] sm:$0xff] %v2509
    %2766 = vst [vmem:[#allocation8 + $0x7f0] sm:$0xff] %v2510
    %2767 = vst [vmem:[#allocation8 + $0x7f8] sm:$0xff] %v2511
    // Predicated region
    $region26: #{tpu_custom_call.1} parent=1 // pred_check
      _
    $region27: #{tpu_custom_call.1} parent=1 // pred_check_branch
      %2769 = sbr.rel (0) target = $region29
    $region28: #{tpu_custom_call.1} parent=1 // pred_region
      %s2771 = ssub.s32 32768, 32768
      %2772 = vsyncadd [#allocation4], %s2771
      %s2773 = sshll.u32 [#allocation8], 4
      %s2774 = int_to_ptr.vmem [resolvable:$true] %s2773
      %2779 = dma.vmem_to_hbm [thread:$0]  %s2774, 32768, %s3, [#allocation4], 512, 512, 32
    $region29: #{tpu_custom_call.1} parent=1 // pred_fallthru
      _
    // Predicated region
    $region30: #{tpu_custom_call.1} parent=1 // pred_check
      _
    $region31: #{tpu_custom_call.1} parent=1 // pred_check_branch
      %2781 = sbr.rel (0) target = $region33
    $region32: #{tpu_custom_call.1} parent=1 // pred_region
      %2782 = dma.done [#allocation4], 32768
    $region33: #{tpu_custom_call.1} parent=1 // pred_fallthru
      _
    %2783 = vsyncpa [#allocation3], 1
    %2784 = vsyncpa [#allocation6], 1
    %2785 = vsyncpa [#allocation4], 1

</llo_original>
